<compile_context>
chip_gen: v7x
topology: tpu7x:2x2x1
jax: 0.10.0
libtpu: 0.0.40
codegen_flags: <defaults>
</compile_context>

<pallas_src>
import numpy as np
import jax
import jax.numpy as jnp
from jax.experimental import pallas as pl
from jax.experimental.pallas import tpu as pltpu

LANE = 128      # channel dims padded to multiples of the TPU lane width
SUBLANE = 8
LPAD = 8        # left zero-border width in the conv2 scratch (sublane aligned)


def _round_up(x, m):
    return (x + m - 1) // m * m


# ---------------------------------------------------------------------------
# kernel
# ---------------------------------------------------------------------------
def bottleneck_kernel(x_ref, xt_ref, xb_ref, w1_ref, w2_ref, w3_ref, bn_ref,
                      out_ref, t1pad_ref):
    # x_ref   : (1, TH, W, Cp)   input tile (conv1 input + residual)
    # xt_ref  : (1, 1,  W, Cp)   image row just above the tile (clamped)
    # xb_ref  : (1, 1,  W, Cp)   image row just below the tile (clamped)
    # w1_ref  : (Cp, Pp)     bf16   conv1 1x1
    # w2_ref  : (3, 3Pp, Pp) bf16   conv2 3x3, K layout [kx*Pp + cin]
    # w3_ref  : (Pp, C4p)    bf16   conv3 1x1
    # bn_ref  : (6, C4p)     f32    rows: s1,b1,s2,b2,s3,b3 (folded BN)
    # out_ref : (1, TH, W, C4p)
    # t1pad_ref: (TH+2, Wtot, Pp) bf16 scratch; interior cols [LPAD, LPAD+W)
    _, TH, W, Cp = x_ref.shape
    Pp = w1_ref.shape[1]
    C4p = w3_ref.shape[1]
    Wtot = t1pad_ref.shape[1]

    w1 = w1_ref[...]
    s1 = bn_ref[0:1, 0:Pp]
    b1 = bn_ref[1:2, 0:Pp]

    # ---- conv1 (1x1) + bn1 + relu on the tile rows (bf16 MXU, f32 acc) ----
    x_tile = x_ref[...].reshape(TH * W, Cp)
    t1 = jnp.dot(x_tile.astype(jnp.bfloat16), w1,
                 preferred_element_type=jnp.float32)
    t1 = jnp.maximum(t1 * s1 + b1, 0.0).astype(jnp.bfloat16)

    # ---- conv1 on the two halo rows (cheap 1x1 recompute).  At the image
    #      top/bottom the halo must be *zero* (conv2's zero padding applies to
    #      conv2's input), so mask the result with 0/1 scalars. ---------------
    xh = jnp.concatenate([xt_ref[...].reshape(W, Cp),
                          xb_ref[...].reshape(W, Cp)], axis=0)
    th = jnp.dot(xh.astype(jnp.bfloat16), w1,
                 preferred_element_type=jnp.float32)
    th = jnp.maximum(th * s1 + b1, 0.0)
    t = pl.program_id(1)
    not_top = (t > 0).astype(jnp.float32)
    not_bot = (t < pl.num_programs(1) - 1).astype(jnp.float32)
    top = (th[:W] * not_top).astype(jnp.bfloat16)
    bot = (th[W:] * not_bot).astype(jnp.bfloat16)

    # ---- stage conv1 output (bf16) into the zero-bordered scratch ----------
    # The thin border columns are rewritten every step (cheap) so the kernel
    # stays correct when the 'parallel' grid is sharded across TensorCores.
    t1pad_ref[:, 0:LPAD, :] = jnp.zeros((TH + 2, LPAD, Pp), jnp.bfloat16)
    t1pad_ref[:, LPAD + W:, :] = jnp.zeros((TH + 2, Wtot - LPAD - W, Pp),
                                           jnp.bfloat16)
    t1pad_ref[0:1, LPAD:LPAD + W, :] = top.reshape(1, W, Pp)
    t1pad_ref[TH + 1:TH + 2, LPAD:LPAD + W, :] = bot.reshape(1, W, Pp)
    t1pad_ref[1:TH + 1, LPAD:LPAD + W, :] = t1.reshape(TH, W, Pp)

    # ---- conv2 (3x3, stride 1, pad 1): 3 matmuls with K = 3*Pp -------------
    s2 = bn_ref[2:3, 0:Pp]
    b2 = bn_ref[3:4, 0:Pp]
    acc = jnp.zeros((TH * W, Pp), jnp.float32)
    for ky in range(3):
        rows = t1pad_ref[ky:ky + TH]                         # (TH, Wtot, Pp) bf16
        patch = jnp.concatenate(
            [rows[:, LPAD - 1:LPAD - 1 + W, :],
             rows[:, LPAD:LPAD + W, :],
             rows[:, LPAD + 1:LPAD + 1 + W, :]],
            axis=-1).reshape(TH * W, 3 * Pp)                 # bf16 patch
        acc = acc + jnp.dot(patch, w2_ref[ky],
                            preferred_element_type=jnp.float32)
    t2 = jnp.maximum(acc * s2 + b2, 0.0).astype(jnp.bfloat16)

    # ---- conv3 (1x1) + bn3 + residual + relu --------------------------------
    s3 = bn_ref[4:5, :]
    b3 = bn_ref[5:6, :]
    t3 = jnp.dot(t2, w3_ref[...], preferred_element_type=jnp.float32)
    t3 = t3 * s3 + b3
    # downsample=None => Cin == 4*planes (Cp == C4p).  Re-read x_ref here
    # instead of keeping the conv1 operand live across the whole body.
    res = x_ref[...].reshape(TH * W, Cp).astype(jnp.float32)
    out = jnp.maximum(t3 + res, 0.0)
    out_ref[...] = out.reshape(1, TH, W, C4p).astype(out_ref.dtype)


# ---------------------------------------------------------------------------
# parameter preparation (one-time): fold BN, pad channels to lane width
# ---------------------------------------------------------------------------
def fold_bn(gamma, beta, mean, var, eps=1e-5):
    s = gamma / jnp.sqrt(var + eps)
    return s, beta - mean * s


def prepare_params(w1_pt, w2_pt, w3_pt, bn1, bn2, bn3, eps=1e-5):
    """PyTorch-layout (OIHW, bias=False) conv weights + BN (gamma,beta,mean,var)
    -> lane-padded, BN-folded kernel parameters (weights in bf16)."""
    P, Cin = int(w1_pt.shape[0]), int(w1_pt.shape[1])
    C4 = int(w3_pt.shape[0])
    Cp, Pp, C4p = _round_up(Cin, LANE), _round_up(P, LANE), _round_up(C4, LANE)

    w1 = jnp.zeros((Cp, Pp), jnp.float32).at[:Cin, :P].set(
        jnp.transpose(w1_pt[:, :, 0, 0], (1, 0)))
    w2 = jnp.zeros((3, 3, Pp, Pp), jnp.float32).at[:, :, :P, :P].set(
        jnp.transpose(w2_pt, (2, 3, 1, 0)))                  # (ky, kx, cin, cout)
    w2 = w2.reshape(3, 3 * Pp, Pp)
    w3 = jnp.zeros((Pp, C4p), jnp.float32).at[:P, :C4].set(
        jnp.transpose(w3_pt[:, :, 0, 0], (1, 0)))

    s1, b1 = fold_bn(*bn1, eps)
    s2, b2 = fold_bn(*bn2, eps)
    s3, b3 = fold_bn(*bn3, eps)
    bn = jnp.zeros((6, C4p), jnp.float32)
    bn = bn.at[0, :P].set(s1).at[1, :P].set(b1)
    bn = bn.at[2, :P].set(s2).at[3, :P].set(b2)
    bn = bn.at[4, :C4].set(s3).at[5, :C4].set(b3)

    return dict(w1=w1.astype(jnp.bfloat16), w2=w2.astype(jnp.bfloat16),
                w3=w3.astype(jnp.bfloat16), bn=bn,
                Cin=Cin, P=P, C4=C4, Cp=Cp, Pp=Pp, C4p=C4p)


# ---------------------------------------------------------------------------
# VMEM budgeting + row-tile selection (generation aware)
# ---------------------------------------------------------------------------
def _vmem_cap_bytes():
    # Stay well under the smallest per-core physical VMEM (v7x: 64 MiB/TC),
    # leaving headroom for compiler scratch and DMA descriptors.
    try:
        cap = int(pltpu.get_tpu_info().vmem_capacity_bytes)
    except Exception:
        cap = 64 << 20
    return min(int(cap * 0.78), 100 << 20)


def _tile_vmem_bytes(TH, W, Cp, Pp, C4p, Wtot, io_bytes):
    x_blk = TH * W * Cp * io_bytes
    halo = 2 * W * Cp * io_bytes
    out_blk = TH * W * C4p * io_bytes
    wts = (Cp * Pp + 9 * Pp * Pp + Pp * C4p) * 2 + 6 * C4p * 4
    scratch = (TH + 2) * Wtot * Pp * 2
    # in-kernel intermediates: t1/t2 (f32 + bf16), acc (f32), im2col patch
    # (bf16), t3/out (f32) -- explicit sum, no fudge factor
    interm = TH * W * (Pp * (4 + 2 + 4 + 2) + 3 * Pp * 2 + C4p * (4 + 4))
    return 2 * (x_blk + halo + out_blk + wts) + scratch + interm


def _choose_row_tile(H, W, Cp, Pp, C4p, io_bytes, budget):
    wtot = LPAD + _round_up(W + 1, SUBLANE)
    divisors = [d for d in range(1, H + 1) if H % d == 0]
    fitting = [d for d in divisors
               if _tile_vmem_bytes(d, W, Cp, Pp, C4p, wtot, io_bytes) <= budget]
    if not fitting:
        return 1
    # Prefer >= 2 row tiles (pipelining + both v7x TensorCores at N == 1) and
    # 8..32-row tiles; relax if the shape does not allow it.
    for pred in (lambda d: H // d >= 2 and d <= 32,
                 lambda d: H // d >= 2,
                 lambda d: True):
        cand = [d for d in fitting if pred(d)]
        if cand:
            return max(cand)
    return max(fitting)


# ---------------------------------------------------------------------------
# forward wrappers
# ---------------------------------------------------------------------------
def bottleneck_forward_nhwc(x_nhwc, params):
    """x_nhwc: (N, H, W, Cin), float32 or bfloat16 (bf16 halves HBM traffic on
    v5e/v6e).  Returns (N, H, W, 4*planes) in x's dtype.  NHWC callers should
    use this entry point directly and skip the NCHW transposes."""
    N, H, W, Cin = x_nhwc.shape
    assert Cin == params["Cin"], "input channels do not match the weights"
    assert Cin == params["C4"], (
        "this kernel implements stride=1 / downsample=None, which requires "
        "inplanes == planes * 4")
    Cp, Pp, C4p = params["Cp"], params["Pp"], params["C4p"]
    assert Cp == C4p

    io_bytes = jnp.dtype(x_nhwc.dtype).itemsize
    x_p = x_nhwc if Cin == Cp else jnp.pad(
        x_nhwc, ((0, 0), (0, 0), (0, 0), (0, Cp - Cin)))

    cap = _vmem_cap_bytes()
    TH = _choose_row_tile(H, W, Cp, Pp, C4p, io_bytes, int(cap * 0.8))
    T = H // TH
    Wtot = LPAD + _round_up(W + 1, SUBLANE)

    est = _tile_vmem_bytes(TH, W, Cp, Pp, C4p, Wtot, io_bytes)
    vmem_limit = int(min(cap, max(est + (8 << 20), 32 << 20)))

    def tile_map(n, t):
        return (n, t, 0, 0)

    def top_map(n, t):   # one image row above the tile, clamped at the top
        return (n, jnp.maximum(t * TH - 1, 0), 0, 0)

    def bot_map(n, t):   # one image row below the tile, clamped at the bottom
        return (n, jnp.minimum((t + 1) * TH, H - 1), 0, 0)

    out_p = pl.pallas_call(
        bottleneck_kernel,
        out_shape=jax.ShapeDtypeStruct((N, H, W, C4p), x_nhwc.dtype),
        grid_spec=pltpu.PrefetchScalarGridSpec(
            num_scalar_prefetch=0,
            grid=(N, T),
            in_specs=[
                pl.BlockSpec((1, TH, W, Cp), tile_map),
                pl.BlockSpec((1, 1, W, Cp), top_map),
                pl.BlockSpec((1, 1, W, Cp), bot_map),
                pl.BlockSpec((Cp, Pp), lambda n, t: (0, 0)),
                pl.BlockSpec((3, 3 * Pp, Pp), lambda n, t: (0, 0, 0)),
                pl.BlockSpec((Pp, C4p), lambda n, t: (0, 0)),
                pl.BlockSpec((6, C4p), lambda n, t: (0, 0)),
            ],
            out_specs=pl.BlockSpec((1, TH, W, C4p), tile_map),
            scratch_shapes=[pltpu.VMEM((TH + 2, Wtot, Pp), jnp.bfloat16)],
        ),
        compiler_params=pltpu.CompilerParams(
            dimension_semantics=("parallel", "parallel"),
            vmem_limit_bytes=vmem_limit),
    )(x_p, x_p, x_p, params["w1"], params["w2"], params["w3"], params["bn"])

    if C4p == params["C4"]:
        return out_p
    return out_p[..., :params["C4"]]


def bottleneck_forward(x_nchw, params):
    """NCHW adapter matching the PyTorch module interface (extra transposes)."""
    x = jnp.transpose(x_nchw, (0, 2, 3, 1))                   # NCHW -> NHWC
    out = bottleneck_forward_nhwc(x, params)
    return jnp.transpose(out, (0, 3, 1, 2))                   # NHWC -> NCHW


# ----------------------- pure-JAX reference (NCHW, f32) ----------------------
def ref_bottleneck(x, w1_pt, w2_pt, w3_pt, bn1, bn2, bn3, eps=1e-5):
    def conv(x, w, pad):
        return jax.lax.conv_general_dilated(
            x, w, window_strides=(1, 1), padding=pad,
            dimension_numbers=('NCHW', 'OIHW', 'NCHW'))

    def bn(x, p):
        g, b, m, v = p
        inv = g / jnp.sqrt(v + eps)
        return (x - m[None, :, None, None]) * inv[None, :, None, None] \
            + b[None, :, None, None]

    out = jax.nn.relu(bn(conv(x, w1_pt, 'VALID'), bn1))
    out = jax.nn.relu(bn(conv(out, w2_pt, ((1, 1), (1, 1))), bn2))
    out = bn(conv(out, w3_pt, 'VALID'), bn3)
    return jax.nn.relu(out + x)


if __name__ == "__main__":
    key = jax.random.PRNGKey(0)
    keys = jax.random.split(key, 8)

    # Small shapes consistent with the module: downsample=None, stride=1
    # requires inplanes == planes * expansion.
    N, H, W = 2, 16, 16
    planes = 4
    inplanes = planes * 4          # 16
    C4 = planes * 4                # 16
    eps = 1e-5

    x = jax.random.normal(keys[0], (N, inplanes, H, W), jnp.float32)

    # PyTorch-layout conv weights (OIHW), bias=False
    w1_pt = 0.2 * jax.random.normal(keys[1], (planes, inplanes, 1, 1), jnp.float32)
    w2_pt = 0.2 * jax.random.normal(keys[2], (planes, planes, 3, 3), jnp.float32)
    w3_pt = 0.2 * jax.random.normal(keys[3], (C4, planes, 1, 1), jnp.float32)

    def bn_params(k, c):
        k1, k2, k3, k4 = jax.random.split(k, 4)
        gamma = 1.0 + 0.1 * jax.random.normal(k1, (c,), jnp.float32)
        beta = 0.1 * jax.random.normal(k2, (c,), jnp.float32)
        mean = 0.1 * jax.random.normal(k3, (c,), jnp.float32)
        var = 0.5 + 0.5 * jnp.abs(jax.random.normal(k4, (c,), jnp.float32))
        return gamma, beta, mean, var

    bn1 = bn_params(keys[4], planes)
    bn2 = bn_params(keys[5], planes)
    bn3 = bn_params(keys[6], C4)

    params = prepare_params(w1_pt, w2_pt, w3_pt, bn1, bn2, bn3, eps)

    # f32 activation I/O (matches the PyTorch module dtype)
    out = jax.block_until_ready(bottleneck_forward(x, params))
    ref = jax.block_until_ready(
        ref_bottleneck(x, w1_pt, w2_pt, w3_pt, bn1, bn2, bn3, eps))
    # bf16 matmuls with f32 accumulation -> looser tolerance than pure f32.
    np.testing.assert_allclose(np.asarray(out), np.asarray(ref),
                               rtol=5e-2, atol=1e-1)

    # bf16 activation I/O path (halves HBM traffic on v5e/v6e); looser check.
    x_bf16_nhwc = jnp.transpose(x, (0, 2, 3, 1)).astype(jnp.bfloat16)
    out_bf16 = jax.block_until_ready(
        bottleneck_forward_nhwc(x_bf16_nhwc, params))
    ref_nhwc = jnp.transpose(ref, (0, 2, 3, 1))
    np.testing.assert_allclose(np.asarray(out_bf16.astype(jnp.float32)),
                               np.asarray(ref_nhwc),
                               rtol=1e-1, atol=2.5e-1)

    print("KERNEL_OK")
</pallas_src>

<mosaic_0001>
module attributes {stable_mosaic.version = 11 : i64} {
  func.func @bottleneck_kernel(%arg0: i32, %arg1: i32, %arg2: memref<1x8x16x128xf32, #tpu.memory_space<vmem>>, %arg3: memref<1x1x16x128xf32, #tpu.memory_space<vmem>>, %arg4: memref<1x1x16x128xf32, #tpu.memory_space<vmem>>, %arg5: memref<128x128xbf16, #tpu.memory_space<vmem>>, %arg6: memref<3x384x128xbf16, #tpu.memory_space<vmem>>, %arg7: memref<128x128xbf16, #tpu.memory_space<vmem>>, %arg8: memref<6x128xf32, #tpu.memory_space<vmem>>, %arg9: memref<1x8x16x128xf32, #tpu.memory_space<vmem>>, %arg10: memref<10x32x128xbf16, #tpu.memory_space<vmem>>) attributes {dimension_semantics = [#tpu.dimension_semantics<parallel>, #tpu.dimension_semantics<parallel>], iteration_bounds = array<i64: 2, 2>, scalar_prefetch = 0 : i64, scratch_operands = 1 : i64, tpu.core_type = #tpu.core_type<tc>, window_params = [{transform_indices = @transform_0, window_bounds = array<i64: 1, 8, 16, 128>}, {transform_indices = @transform_1, window_bounds = array<i64: 1, 1, 16, 128>}, {transform_indices = @transform_2, window_bounds = array<i64: 1, 1, 16, 128>}, {pipeline_mode = #tpu.pipeline_mode<synchronous>, transform_indices = @transform_3, window_bounds = array<i64: 128, 128>}, {pipeline_mode = #tpu.pipeline_mode<synchronous>, transform_indices = @transform_4, window_bounds = array<i64: 3, 384, 128>}, {pipeline_mode = #tpu.pipeline_mode<synchronous>, transform_indices = @transform_5, window_bounds = array<i64: 128, 128>}, {pipeline_mode = #tpu.pipeline_mode<synchronous>, transform_indices = @transform_6, window_bounds = array<i64: 6, 128>}, {transform_indices = @transform_7, window_bounds = array<i64: 1, 8, 16, 128>}]} {
    %c0 = arith.constant 0 : index
    %c0_0 = arith.constant 0 : index
    %0 = vector.load %arg5[%c0, %c0_0] : memref<128x128xbf16, #tpu.memory_space<vmem>>, vector<128x128xbf16>
    %c0_1 = arith.constant 0 : index
    %c0_2 = arith.constant 0 : index
    %1 = vector.load %arg8[%c0_1, %c0_2] : memref<6x128xf32, #tpu.memory_space<vmem>>, vector<1x128xf32>
    %c1 = arith.constant 1 : index
    %c0_3 = arith.constant 0 : index
    %2 = vector.load %arg8[%c1, %c0_3] : memref<6x128xf32, #tpu.memory_space<vmem>>, vector<1x128xf32>
    %c0_4 = arith.constant 0 : index
    %c0_5 = arith.constant 0 : index
    %c0_6 = arith.constant 0 : index
    %c0_7 = arith.constant 0 : index
    %3 = vector.load %arg2[%c0_4, %c0_5, %c0_6, %c0_7] : memref<1x8x16x128xf32, #tpu.memory_space<vmem>>, vector<1x8x16x128xf32>
    %4 = vector.shape_cast %3 : vector<1x8x16x128xf32> to vector<128x128xf32>
    %5 = arith.truncf %4 : vector<128x128xf32> to vector<128x128xbf16>
    %cst = arith.constant dense<0.000000e+00> : vector<128x128xf32>
    %6 = tpu.matmul %5, %0, %cst {dimension_numbers = #tpu.dot_dimension_numbers<[1], [0], [0], [1], [0, 0, 1, 1], [], []>} : vector<128x128xbf16>, vector<128x128xbf16>, vector<128x128xf32> -> vector<128x128xf32>
    %7 = vector.broadcast %1 : vector<1x128xf32> to vector<128x128xf32>
    %8 = arith.mulf %6, %7 : vector<128x128xf32>
    %9 = vector.broadcast %2 : vector<1x128xf32> to vector<128x128xf32>
    %10 = arith.addf %8, %9 : vector<128x128xf32>
    %cst_8 = arith.constant 0.000000e+00 : f32
    %11 = vector.broadcast %cst_8 : f32 to vector<128x128xf32>
    %12 = arith.maximumf %10, %11 : vector<128x128xf32>
    %13 = arith.truncf %12 : vector<128x128xf32> to vector<128x128xbf16>
    %c0_9 = arith.constant 0 : index
    %c0_10 = arith.constant 0 : index
    %c0_11 = arith.constant 0 : index
    %c0_12 = arith.constant 0 : index
    %14 = vector.load %arg3[%c0_9, %c0_10, %c0_11, %c0_12] : memref<1x1x16x128xf32, #tpu.memory_space<vmem>>, vector<1x1x16x128xf32>
    %15 = vector.shape_cast %14 : vector<1x1x16x128xf32> to vector<16x128xf32>
    %c0_13 = arith.constant 0 : index
    %c0_14 = arith.constant 0 : index
    %c0_15 = arith.constant 0 : index
    %c0_16 = arith.constant 0 : index
    %16 = vector.load %arg4[%c0_13, %c0_14, %c0_15, %c0_16] : memref<1x1x16x128xf32, #tpu.memory_space<vmem>>, vector<1x1x16x128xf32>
    %17 = vector.shape_cast %16 : vector<1x1x16x128xf32> to vector<16x128xf32>
    %18 = tpu.concatenate %15, %17 in 0 : vector<16x128xf32>, vector<16x128xf32> -> vector<32x128xf32>
    %19 = arith.truncf %18 : vector<32x128xf32> to vector<32x128xbf16>
    %cst_17 = arith.constant dense<0.000000e+00> : vector<32x128xf32>
    %20 = tpu.matmul %19, %0, %cst_17 {dimension_numbers = #tpu.dot_dimension_numbers<[1], [0], [0], [1], [0, 0, 1, 1], [], []>} : vector<32x128xbf16>, vector<128x128xbf16>, vector<32x128xf32> -> vector<32x128xf32>
    %21 = vector.broadcast %1 : vector<1x128xf32> to vector<32x128xf32>
    %22 = arith.mulf %20, %21 : vector<32x128xf32>
    %23 = vector.broadcast %2 : vector<1x128xf32> to vector<32x128xf32>
    %24 = arith.addf %22, %23 : vector<32x128xf32>
    %cst_18 = arith.constant 0.000000e+00 : f32
    %25 = vector.broadcast %cst_18 : f32 to vector<32x128xf32>
    %26 = arith.maximumf %24, %25 : vector<32x128xf32>
    %c0_i32 = arith.constant 0 : i32
    %27 = arith.cmpi sgt, %arg1, %c0_i32 : i32
    %28 = arith.extui %27 : i1 to i32
    %29 = arith.sitofp %28 : i32 to f32
    %c1_i32 = arith.constant 1 : i32
    %30 = arith.cmpi slt, %arg1, %c1_i32 : i32
    %31 = arith.extui %30 : i1 to i32
    %32 = arith.sitofp %31 : i32 to f32
    %33 = vector.extract_strided_slice %26 {offsets = [0, 0], sizes = [16, 128], strides = [1, 1]} : vector<32x128xf32> to vector<16x128xf32>
    %34 = vector.broadcast %29 : f32 to vector<16x128xf32>
    %35 = arith.mulf %33, %34 : vector<16x128xf32>
    %36 = arith.truncf %35 : vector<16x128xf32> to vector<16x128xbf16>
    %37 = vector.extract_strided_slice %26 {offsets = [16, 0], sizes = [16, 128], strides = [1, 1]} : vector<32x128xf32> to vector<16x128xf32>
    %38 = vector.broadcast %32 : f32 to vector<16x128xf32>
    %39 = arith.mulf %37, %38 : vector<16x128xf32>
    %40 = arith.truncf %39 : vector<16x128xf32> to vector<16x128xbf16>
    %cst_19 = arith.constant 0.000000e+00 : bf16
    %41 = vector.broadcast %cst_19 : bf16 to vector<10x8x128xbf16>
    %c0_20 = arith.constant 0 : index
    %c0_21 = arith.constant 0 : index
    %c0_22 = arith.constant 0 : index
    %42 = vector.load %arg10[%c0_20, %c0_21, %c0_22] : memref<10x32x128xbf16, #tpu.memory_space<vmem>>, vector<10x8x128xbf16>
    tpu.vector_store %arg10[%c0_20, %c0_21, %c0_22], %41 {strides = array<i32>} : memref<10x32x128xbf16, #tpu.memory_space<vmem>>, vector<10x8x128xbf16>,
    %cst_23 = arith.constant 0.000000e+00 : bf16
    %43 = vector.broadcast %cst_23 : bf16 to vector<10x8x128xbf16>
    %c0_24 = arith.constant 0 : index
    %c24 = arith.constant 24 : index
    %c0_25 = arith.constant 0 : index
    %44 = vector.load %arg10[%c0_24, %c24, %c0_25] : memref<10x32x128xbf16, #tpu.memory_space<vmem>>, vector<10x8x128xbf16>
    tpu.vector_store %arg10[%c0_24, %c24, %c0_25], %43 {strides = array<i32>} : memref<10x32x128xbf16, #tpu.memory_space<vmem>>, vector<10x8x128xbf16>,
    %45 = vector.shape_cast %36 : vector<16x128xbf16> to vector<1x16x128xbf16>
    %c0_26 = arith.constant 0 : index
    %c8 = arith.constant 8 : index
    %c0_27 = arith.constant 0 : index
    %46 = vector.load %arg10[%c0_26, %c8, %c0_27] : memref<10x32x128xbf16, #tpu.memory_space<vmem>>, vector<1x16x128xbf16>
    tpu.vector_store %arg10[%c0_26, %c8, %c0_27], %45 {strides = array<i32>} : memref<10x32x128xbf16, #tpu.memory_space<vmem>>, vector<1x16x128xbf16>,
    %47 = vector.shape_cast %40 : vector<16x128xbf16> to vector<1x16x128xbf16>
    %c9 = arith.constant 9 : index
    %c8_28 = arith.constant 8 : index
    %c0_29 = arith.constant 0 : index
    %48 = vector.load %arg10[%c9, %c8_28, %c0_29] : memref<10x32x128xbf16, #tpu.memory_space<vmem>>, vector<1x16x128xbf16>
    tpu.vector_store %arg10[%c9, %c8_28, %c0_29], %47 {strides = array<i32>} : memref<10x32x128xbf16, #tpu.memory_space<vmem>>, vector<1x16x128xbf16>,
    %49 = vector.shape_cast %13 : vector<128x128xbf16> to vector<8x16x128xbf16>
    %c1_30 = arith.constant 1 : index
    %c8_31 = arith.constant 8 : index
    %c0_32 = arith.constant 0 : index
    %50 = vector.load %arg10[%c1_30, %c8_31, %c0_32] : memref<10x32x128xbf16, #tpu.memory_space<vmem>>, vector<8x16x128xbf16>
    tpu.vector_store %arg10[%c1_30, %c8_31, %c0_32], %49 {strides = array<i32>} : memref<10x32x128xbf16, #tpu.memory_space<vmem>>, vector<8x16x128xbf16>,
    %c2 = arith.constant 2 : index
    %c0_33 = arith.constant 0 : index
    %51 = vector.load %arg8[%c2, %c0_33] : memref<6x128xf32, #tpu.memory_space<vmem>>, vector<1x128xf32>
    %c3 = arith.constant 3 : index
    %c0_34 = arith.constant 0 : index
    %52 = vector.load %arg8[%c3, %c0_34] : memref<6x128xf32, #tpu.memory_space<vmem>>, vector<1x128xf32>
    %cst_35 = arith.constant 0.000000e+00 : f32
    %53 = vector.broadcast %cst_35 : f32 to vector<128x128xf32>
    %c0_36 = arith.constant 0 : index
    %c0_37 = arith.constant 0 : index
    %c0_38 = arith.constant 0 : index
    %54 = vector.load %arg10[%c0_36, %c0_37, %c0_38] : memref<10x32x128xbf16, #tpu.memory_space<vmem>>, vector<8x32x128xbf16>
    %55 = vector.extract_strided_slice %54 {offsets = [0, 7, 0], sizes = [8, 16, 128], strides = [1, 1, 1]} : vector<8x32x128xbf16> to vector<8x16x128xbf16>
    %56 = vector.extract_strided_slice %54 {offsets = [0, 8, 0], sizes = [8, 16, 128], strides = [1, 1, 1]} : vector<8x32x128xbf16> to vector<8x16x128xbf16>
    %57 = vector.extract_strided_slice %54 {offsets = [0, 9, 0], sizes = [8, 16, 128], strides = [1, 1, 1]} : vector<8x32x128xbf16> to vector<8x16x128xbf16>
    %58 = tpu.concatenate %55, %56, %57 in 2 : vector<8x16x128xbf16>, vector<8x16x128xbf16>, vector<8x16x128xbf16> -> vector<8x16x384xbf16>
    %59 = vector.shape_cast %58 : vector<8x16x384xbf16> to vector<128x384xbf16>
    %c0_39 = arith.constant 0 : index
    %c0_40 = arith.constant 0 : index
    %c0_41 = arith.constant 0 : index
    %60 = vector.load %arg6[%c0_39, %c0_40, %c0_41] : memref<3x384x128xbf16, #tpu.memory_space<vmem>>, vector<1x384x128xbf16>
    %61 = vector.shape_cast %60 : vector<1x384x128xbf16> to vector<384x128xbf16>
    %cst_42 = arith.constant dense<0.000000e+00> : vector<128x128xf32>
    %62 = tpu.matmul %59, %61, %cst_42 {dimension_numbers = #tpu.dot_dimension_numbers<[1], [0], [0], [1], [0, 0, 1, 1], [], []>} : vector<128x384xbf16>, vector<384x128xbf16>, vector<128x128xf32> -> vector<128x128xf32>
    %63 = arith.addf %53, %62 : vector<128x128xf32>
    %c1_43 = arith.constant 1 : index
    %c0_44 = arith.constant 0 : index
    %c0_45 = arith.constant 0 : index
    %64 = vector.load %arg10[%c1_43, %c0_44, %c0_45] : memref<10x32x128xbf16, #tpu.memory_space<vmem>>, vector<8x32x128xbf16>
    %65 = vector.extract_strided_slice %64 {offsets = [0, 7, 0], sizes = [8, 16, 128], strides = [1, 1, 1]} : vector<8x32x128xbf16> to vector<8x16x128xbf16>
    %66 = vector.extract_strided_slice %64 {offsets = [0, 8, 0], sizes = [8, 16, 128], strides = [1, 1, 1]} : vector<8x32x128xbf16> to vector<8x16x128xbf16>
    %67 = vector.extract_strided_slice %64 {offsets = [0, 9, 0], sizes = [8, 16, 128], strides = [1, 1, 1]} : vector<8x32x128xbf16> to vector<8x16x128xbf16>
    %68 = tpu.concatenate %65, %66, %67 in 2 : vector<8x16x128xbf16>, vector<8x16x128xbf16>, vector<8x16x128xbf16> -> vector<8x16x384xbf16>
    %69 = vector.shape_cast %68 : vector<8x16x384xbf16> to vector<128x384xbf16>
    %c1_46 = arith.constant 1 : index
    %c0_47 = arith.constant 0 : index
    %c0_48 = arith.constant 0 : index
    %70 = vector.load %arg6[%c1_46, %c0_47, %c0_48] : memref<3x384x128xbf16, #tpu.memory_space<vmem>>, vector<1x384x128xbf16>
    %71 = vector.shape_cast %70 : vector<1x384x128xbf16> to vector<384x128xbf16>
    %cst_49 = arith.constant dense<0.000000e+00> : vector<128x128xf32>
    %72 = tpu.matmul %69, %71, %cst_49 {dimension_numbers = #tpu.dot_dimension_numbers<[1], [0], [0], [1], [0, 0, 1, 1], [], []>} : vector<128x384xbf16>, vector<384x128xbf16>, vector<128x128xf32> -> vector<128x128xf32>
    %73 = arith.addf %63, %72 : vector<128x128xf32>
    %c2_50 = arith.constant 2 : index
    %c0_51 = arith.constant 0 : index
    %c0_52 = arith.constant 0 : index
    %74 = vector.load %arg10[%c2_50, %c0_51, %c0_52] : memref<10x32x128xbf16, #tpu.memory_space<vmem>>, vector<8x32x128xbf16>
    %75 = vector.extract_strided_slice %74 {offsets = [0, 7, 0], sizes = [8, 16, 128], strides = [1, 1, 1]} : vector<8x32x128xbf16> to vector<8x16x128xbf16>
    %76 = vector.extract_strided_slice %74 {offsets = [0, 8, 0], sizes = [8, 16, 128], strides = [1, 1, 1]} : vector<8x32x128xbf16> to vector<8x16x128xbf16>
    %77 = vector.extract_strided_slice %74 {offsets = [0, 9, 0], sizes = [8, 16, 128], strides = [1, 1, 1]} : vector<8x32x128xbf16> to vector<8x16x128xbf16>
    %78 = tpu.concatenate %75, %76, %77 in 2 : vector<8x16x128xbf16>, vector<8x16x128xbf16>, vector<8x16x128xbf16> -> vector<8x16x384xbf16>
    %79 = vector.shape_cast %78 : vector<8x16x384xbf16> to vector<128x384xbf16>
    %c2_53 = arith.constant 2 : index
    %c0_54 = arith.constant 0 : index
    %c0_55 = arith.constant 0 : index
    %80 = vector.load %arg6[%c2_53, %c0_54, %c0_55] : memref<3x384x128xbf16, #tpu.memory_space<vmem>>, vector<1x384x128xbf16>
    %81 = vector.shape_cast %80 : vector<1x384x128xbf16> to vector<384x128xbf16>
    %cst_56 = arith.constant dense<0.000000e+00> : vector<128x128xf32>
    %82 = tpu.matmul %79, %81, %cst_56 {dimension_numbers = #tpu.dot_dimension_numbers<[1], [0], [0], [1], [0, 0, 1, 1], [], []>} : vector<128x384xbf16>, vector<384x128xbf16>, vector<128x128xf32> -> vector<128x128xf32>
    %83 = arith.addf %73, %82 : vector<128x128xf32>
    %84 = vector.broadcast %51 : vector<1x128xf32> to vector<128x128xf32>
    %85 = arith.mulf %83, %84 : vector<128x128xf32>
    %86 = vector.broadcast %52 : vector<1x128xf32> to vector<128x128xf32>
    %87 = arith.addf %85, %86 : vector<128x128xf32>
    %cst_57 = arith.constant 0.000000e+00 : f32
    %88 = vector.broadcast %cst_57 : f32 to vector<128x128xf32>
    %89 = arith.maximumf %87, %88 : vector<128x128xf32>
    %90 = arith.truncf %89 : vector<128x128xf32> to vector<128x128xbf16>
    %c4 = arith.constant 4 : index
    %c0_58 = arith.constant 0 : index
    %91 = vector.load %arg8[%c4, %c0_58] : memref<6x128xf32, #tpu.memory_space<vmem>>, vector<1x128xf32>
    %c5 = arith.constant 5 : index
    %c0_59 = arith.constant 0 : index
    %92 = vector.load %arg8[%c5, %c0_59] : memref<6x128xf32, #tpu.memory_space<vmem>>, vector<1x128xf32>
    %c0_60 = arith.constant 0 : index
    %c0_61 = arith.constant 0 : index
    %93 = vector.load %arg7[%c0_60, %c0_61] : memref<128x128xbf16, #tpu.memory_space<vmem>>, vector<128x128xbf16>
    %cst_62 = arith.constant dense<0.000000e+00> : vector<128x128xf32>
    %94 = tpu.matmul %90, %93, %cst_62 {dimension_numbers = #tpu.dot_dimension_numbers<[1], [0], [0], [1], [0, 0, 1, 1], [], []>} : vector<128x128xbf16>, vector<128x128xbf16>, vector<128x128xf32> -> vector<128x128xf32>
    %95 = vector.broadcast %91 : vector<1x128xf32> to vector<128x128xf32>
    %96 = arith.mulf %94, %95 : vector<128x128xf32>
    %97 = vector.broadcast %92 : vector<1x128xf32> to vector<128x128xf32>
    %98 = arith.addf %96, %97 : vector<128x128xf32>
    %c0_63 = arith.constant 0 : index
    %c0_64 = arith.constant 0 : index
    %c0_65 = arith.constant 0 : index
    %c0_66 = arith.constant 0 : index
    %99 = vector.load %arg2[%c0_63, %c0_64, %c0_65, %c0_66] : memref<1x8x16x128xf32, #tpu.memory_space<vmem>>, vector<1x8x16x128xf32>
    %100 = vector.shape_cast %99 : vector<1x8x16x128xf32> to vector<128x128xf32>
    %101 = arith.addf %98, %100 : vector<128x128xf32>
    %cst_67 = arith.constant 0.000000e+00 : f32
    %102 = vector.broadcast %cst_67 : f32 to vector<128x128xf32>
    %103 = arith.maximumf %101, %102 : vector<128x128xf32>
    %104 = vector.shape_cast %103 : vector<128x128xf32> to vector<1x8x16x128xf32>
    %c0_68 = arith.constant 0 : index
    %c0_69 = arith.constant 0 : index
    %c0_70 = arith.constant 0 : index
    %c0_71 = arith.constant 0 : index
    %105 = vector.load %arg9[%c0_68, %c0_69, %c0_70, %c0_71] : memref<1x8x16x128xf32, #tpu.memory_space<vmem>>, vector<1x8x16x128xf32>
    tpu.vector_store %arg9[%c0_68, %c0_69, %c0_70, %c0_71], %104 {strides = array<i32>} : memref<1x8x16x128xf32, #tpu.memory_space<vmem>>, vector<1x8x16x128xf32>,
    return
  }
  func.func @transform_0(%arg0: i32, %arg1: i32) -> (i32, i32, i32, i32) {
    %c0_i32 = arith.constant 0 : i32
    %c0_i32_0 = arith.constant 0 : i32
    %c0_i32_1 = arith.constant 0 : i32
    return %arg0, %arg1, %c0_i32, %c0_i32_0 : i32, i32, i32, i32
  }
  func.func @transform_1(%arg0: i32, %arg1: i32) -> (i32, i32, i32, i32) {
    %c8_i32 = arith.constant 8 : i32
    %0 = arith.muli %arg1, %c8_i32 : i32
    %c1_i32 = arith.constant 1 : i32
    %1 = arith.subi %0, %c1_i32 : i32
    %c0_i32 = arith.constant 0 : i32
    %2 = arith.maxsi %1, %c0_i32 : i32
    %c0_i32_0 = arith.constant 0 : i32
    %c0_i32_1 = arith.constant 0 : i32
    %c0_i32_2 = arith.constant 0 : i32
    return %arg0, %2, %c0_i32_0, %c0_i32_1 : i32, i32, i32, i32
  }
  func.func @transform_2(%arg0: i32, %arg1: i32) -> (i32, i32, i32, i32) {
    %c1_i32 = arith.constant 1 : i32
    %0 = arith.addi %arg1, %c1_i32 : i32
    %c8_i32 = arith.constant 8 : i32
    %1 = arith.muli %0, %c8_i32 : i32
    %c15_i32 = arith.constant 15 : i32
    %2 = arith.minsi %1, %c15_i32 : i32
    %c0_i32 = arith.constant 0 : i32
    %c0_i32_0 = arith.constant 0 : i32
    %c0_i32_1 = arith.constant 0 : i32
    return %arg0, %2, %c0_i32, %c0_i32_0 : i32, i32, i32, i32
  }
  func.func @transform_3(%arg0: i32, %arg1: i32) -> (i32, i32) {
    %c0_i32 = arith.constant 0 : i32
    %c0_i32_0 = arith.constant 0 : i32
    %c0_i32_1 = arith.constant 0 : i32
    return %c0_i32, %c0_i32_0 : i32, i32
  }
  func.func @transform_4(%arg0: i32, %arg1: i32) -> (i32, i32, i32) {
    %c0_i32 = arith.constant 0 : i32
    %c0_i32_0 = arith.constant 0 : i32
    %c0_i32_1 = arith.constant 0 : i32
    %c0_i32_2 = arith.constant 0 : i32
    return %c0_i32, %c0_i32_0, %c0_i32_1 : i32, i32, i32
  }
  func.func @transform_5(%arg0: i32, %arg1: i32) -> (i32, i32) {
    %c0_i32 = arith.constant 0 : i32
    %c0_i32_0 = arith.constant 0 : i32
    %c0_i32_1 = arith.constant 0 : i32
    return %c0_i32, %c0_i32_0 : i32, i32
  }
  func.func @transform_6(%arg0: i32, %arg1: i32) -> (i32, i32) {
    %c0_i32 = arith.constant 0 : i32
    %c0_i32_0 = arith.constant 0 : i32
    %c0_i32_1 = arith.constant 0 : i32
    return %c0_i32, %c0_i32_0 : i32, i32
  }
  func.func @transform_7(%arg0: i32, %arg1: i32) -> (i32, i32, i32, i32) {
    %c0_i32 = arith.constant 0 : i32
    %c0_i32_0 = arith.constant 0 : i32
    %c0_i32_1 = arith.constant 0 : i32
    return %arg0, %arg1, %c0_i32, %c0_i32_0 : i32, i32, i32, i32
  }
}

</mosaic_0001>

<llo_original>
// kernel: tpu_custom_call.1
$region0: #{tpu_custom_call.1}
  #allocation0 [shape = 'u32[]', space=smem, size = 0x4, offset = 0x4, fixed_abs, tag = 'smem constant byte address 0x4 - core index']
  #allocation1 [shape = 'u32[144,128]{1,0:T(1,128)}', space=vmem, size = 0x12000, scoped, tag = 'internal scratch']
  #allocation2 [shape = 'bf16[10,32,128]{2,1,0:T(16,128)(2,1)}', space=vmem, size = 0x14000, scoped, tag = 'scratch operand']
  %s0 = inlined_call_operand.hbm [shape: f32[2,16,16,128], index: 0, kind: input, shape index: {}]
  %s1 = inlined_call_operand.hbm [shape: f32[2,16,16,128], index: 1, kind: input, shape index: {}]
  %s2 = inlined_call_operand.hbm [shape: f32[2,16,16,128], index: 2, kind: input, shape index: {}]
  %s3 = inlined_call_operand.hbm [shape: bf16[128,128], index: 3, kind: input, shape index: {}]
  %s4 = inlined_call_operand.hbm [shape: bf16[3,384,128], index: 4, kind: input, shape index: {}]
  %s5 = inlined_call_operand.hbm [shape: bf16[128,128], index: 5, kind: input, shape index: {}]
  %s6 = inlined_call_operand.vmem [shape: f32[6,128], index: 6, kind: input, shape index: {}]
  %s7 = inlined_call_operand.hbm [shape: f32[2,16,16,128], index: 7, kind: output, shape index: {}]
  %s8 = sld [smem:[#allocation0]]
  $region85: #{tpu_custom_call.1} parent=0
    _
  %s10 = ssub.s32 1, %s8
  %s11 = scalar_select 0, %s10, %s8
  $region1: #{tpu_custom_call.1} parent=0
    #allocation3 [shape = 'u8[131072]{0}', space=vmem, size = 0x20000, scoped, tag = 'input window, operand 0']
    #allocation4 [shape = 's32[2]{0}', space=sflag, size = 0x8, scoped, tag = 'scoped memory for tpu_custom_call.1']
    #allocation5 [shape = 's32[2]{0}', space=sflag, size = 0x8, scoped, tag = 'scoped memory for tpu_custom_call.1']
    #allocation6 [shape = 'u8[16384]{0}', space=vmem, size = 0x4000, scoped, tag = 'input window, operand 1']
    #allocation7 [shape = 's32[2]{0}', space=sflag, size = 0x8, scoped, tag = 'scoped memory for tpu_custom_call.1']
    #allocation8 [shape = 'u8[16384]{0}', space=vmem, size = 0x4000, scoped, tag = 'input window, operand 2']
    #allocation9 [shape = 'u8[32768]{0}', space=vmem, size = 0x8000, scoped, tag = 'input window, operand 3, single buffered']
    #allocation10 [shape = 's32[1]{0}', space=sflag, size = 0x4, scoped, tag = 'scoped memory for tpu_custom_call.1']
    #allocation11 [shape = 'u8[294912]{0}', space=vmem, size = 0x48000, scoped, tag = 'input window, operand 4, single buffered']
    #allocation12 [shape = 'u8[32768]{0}', space=vmem, size = 0x8000, scoped, tag = 'input window, operand 5, single buffered']
    #allocation13 [shape = 's32[1]{0}', space=sflag, size = 0x4, scoped, tag = 'scoped memory for tpu_custom_call.1']
    #allocation14 [shape = 'u8[131072]{0}', space=vmem, size = 0x20000, scoped, tag = 'output window, operand 0']
    %12 = vsyncpa [#allocation4], 0
    %s13 = scalar_lea.sflag [#allocation4], 1
    %14 = vsyncpa %s13, 0
    %15 = vsyncpa [#allocation7], 0
    %s16 = scalar_lea.sflag [#allocation7], 1
    %17 = vsyncpa %s16, 0
    %18 = vsyncpa [#allocation10], 0
    %19 = vsyncpa [#allocation13], 0
    %20 = vsyncpa [#allocation5], 0
    %s21 = scalar_lea.sflag [#allocation5], 1
    %22 = vsyncpa %s21, 0
    loop: start=0, step=1, limit=6
    $region2: #{tpu_custom_call.1} parent=1 // loop_pre_header
      _
    $region3: #{tpu_custom_call.1} parent=1 // loop_header
      %s24 = sphi 0, %s28
      %p25 = scmp.ge.s32.totalorder %s24, 6
      %s31 = sphi 0, %s43
      %s32 = sphi 0, %s39
      %s33 = sphi 0, %s31
      %s34 = sphi 0, %s32
      %s35 = sphi 0, %s33
      %s36 = sphi 0, %s34
      %s48 = sphi 0, %s50
      %s51 = sphi 0, %s48
      %s52 = sphi 0, %s51
      %s68 = sphi 0, %s52
      %s84 = sphi 0, %s86
      %s87 = sphi 0, %s84
      %s88 = sphi 0, %s87
      %s104 = sphi 0, %s88
      %s120 = sphi 0, %s122
      %s123 = sphi 0, %s120
      %s124 = sphi 0, %s123
      %s140 = sphi 0, %s124
      %s144 = sphi 0, %s144
      %s146 = sphi 0, %s144
      %s147 = sphi 0, %s146
      %s161 = sphi 0, %s147
      %s165 = sphi 0, %s165
      %s167 = sphi 0, %s165
      %s168 = sphi 0, %s167
      %s182 = sphi 0, %s168
      %s186 = sphi 0, %s186
      %s188 = sphi 0, %s186
      %s189 = sphi 0, %s188
      %s203 = sphi 0, %s189
      %s207 = sphi 0, %s207
      %s209 = sphi 0, %s207
      %s210 = sphi 0, %s209
      %s224 = sphi 0, %s210
      %s232 = sphi 0, %s234
      %s235 = sphi 0, %s232
      %s236 = sphi 0, %s235
      %s252 = sphi 0, %s236
    $region4: #{tpu_custom_call.1} parent=1 // loop_header_branch
      %27 = sbr.rel (%p25) target = $region8
    $region5: #{tpu_custom_call.1} parent=1 // loop_body
      %s29 = ssub.s32 %s24, 1
      %s30 = ssub.s32 %s24, 2
      %s37 = sadd.s32 1, %s32
      %p38 = scmp.ge.s32.totalorder %s37, 2
      %s39 = scalar_select %p38, 0, %s37
      %s40 = sadd.s32 1, %s31
      %s41 = scalar_select %p38, %s40, %s31
      %p42 = scmp.ge.s32.totalorder %s41, 2
      %s43 = scalar_select %p42, 0, %s41
      %s44 = ssub.s32 %s31, %s43
      %s45 = ssub.s32 %s32, %s39
      %s46 = sor.u32 %s44, %s45
      %p47 = scmp.eq.s32.totalorder %s46, 0
      %s49 = sadd.s32 %s48, 1
      %s50 = scalar_select %p47, %s48, %s49
      %p53 = pneg %p47
      %p54 = scmp.eq.s32.totalorder %s24, 3
      %p55 = por %p53, %p54
      %p56 = scmp.ne.s32.totalorder %s48, %s51
      %p57 = scmp.eq.s32.totalorder %s24, 0
      %p58 = por %p56, %p57
      %p59 = scmp.ne.s32.totalorder %s48, %s51
      %p60 = scmp.eq.s32.totalorder %s29, 3
      %p61 = por %p59, %p60
      %p62 = scmp.ne.s32.totalorder %s51, %s52
      %p63 = scmp.eq.s32.totalorder %s29, 0
      %p64 = por %p62, %p63
      %p65 = scmp.ne.s32.totalorder %s51, %s52
      %p66 = scmp.eq.s32.totalorder %s30, 3
      %p67 = por %p65, %p66
      %p69 = scmp.ne.s32.totalorder %s52, %s68
      %p70 = scmp.eq.s32.totalorder %s30, 0
      %p71 = por %p69, %p70
      %s72 = smul.u32 %s32, 8
      %s73 = ssub.s32 %s72, 1
      %p74 = scmp.gt.s32.totalorder %s73, 0
      %s75 = scalar_select %p74, %s73, 0
      %s76 = smul.u32 %s39, 8
      %s77 = ssub.s32 %s76, 1
      %p78 = scmp.gt.s32.totalorder %s77, 0
      %s79 = scalar_select %p78, %s77, 0
      %s80 = ssub.s32 %s31, %s43
      %s81 = ssub.s32 %s75, %s79
      %s82 = sor.u32 %s80, %s81
      %p83 = scmp.eq.s32.totalorder %s82, 0
      %s85 = sadd.s32 %s84, 1
      %s86 = scalar_select %p83, %s84, %s85
      %p89 = pneg %p83
      %p90 = scmp.eq.s32.totalorder %s24, 3
      %p91 = por %p89, %p90
      %p92 = scmp.ne.s32.totalorder %s84, %s87
      %p93 = scmp.eq.s32.totalorder %s24, 0
      %p94 = por %p92, %p93
      %p95 = scmp.ne.s32.totalorder %s84, %s87
      %p96 = scmp.eq.s32.totalorder %s29, 3
      %p97 = por %p95, %p96
      %p98 = scmp.ne.s32.totalorder %s87, %s88
      %p99 = scmp.eq.s32.totalorder %s29, 0
      %p100 = por %p98, %p99
      %p101 = scmp.ne.s32.totalorder %s87, %s88
      %p102 = scmp.eq.s32.totalorder %s30, 3
      %p103 = por %p101, %p102
      %p105 = scmp.ne.s32.totalorder %s88, %s104
      %p106 = scmp.eq.s32.totalorder %s30, 0
      %p107 = por %p105, %p106
      %s108 = sadd.s32 %s32, 1
      %s109 = smul.u32 %s108, 8
      %p110 = scmp.lt.s32.totalorder %s109, 15
      %s111 = scalar_select %p110, %s109, 15
      %s112 = sadd.s32 %s39, 1
      %s113 = smul.u32 %s112, 8
      %p114 = scmp.lt.s32.totalorder %s113, 15
      %s115 = scalar_select %p114, %s113, 15
      %s116 = ssub.s32 %s31, %s43
      %s117 = ssub.s32 %s111, %s115
      %s118 = sor.u32 %s116, %s117
      %p119 = scmp.eq.s32.totalorder %s118, 0
      %s121 = sadd.s32 %s120, 1
      %s122 = scalar_select %p119, %s120, %s121
      %p125 = pneg %p119
      %p126 = scmp.eq.s32.totalorder %s24, 3
      %p127 = por %p125, %p126
      %p128 = scmp.ne.s32.totalorder %s120, %s123
      %p129 = scmp.eq.s32.totalorder %s24, 0
      %p130 = por %p128, %p129
      %p131 = scmp.ne.s32.totalorder %s120, %s123
      %p132 = scmp.eq.s32.totalorder %s29, 3
      %p133 = por %p131, %p132
      %p134 = scmp.ne.s32.totalorder %s123, %s124
      %p135 = scmp.eq.s32.totalorder %s29, 0
      %p136 = por %p134, %p135
      %p137 = scmp.ne.s32.totalorder %s123, %s124
      %p138 = scmp.eq.s32.totalorder %s30, 3
      %p139 = por %p137, %p138
      %p141 = scmp.ne.s32.totalorder %s124, %s140
      %p142 = scmp.eq.s32.totalorder %s30, 0
      %p143 = por %p141, %p142
      %s145 = sadd.s32 %s144, 1
      %p148 = scmp.eq.s32.totalorder %s24, 3
      %p149 = scmp.ne.s32.totalorder %s144, %s146
      %p150 = scmp.eq.s32.totalorder %s24, 0
      %p151 = por %p149, %p150
      %p152 = scmp.ne.s32.totalorder %s144, %s146
      %p153 = scmp.eq.s32.totalorder %s29, 3
      %p154 = por %p152, %p153
      %p155 = scmp.ne.s32.totalorder %s146, %s147
      %p156 = scmp.eq.s32.totalorder %s29, 0
      %p157 = por %p155, %p156
      %p158 = scmp.ne.s32.totalorder %s146, %s147
      %p159 = scmp.eq.s32.totalorder %s30, 3
      %p160 = por %p158, %p159
      %p162 = scmp.ne.s32.totalorder %s147, %s161
      %p163 = scmp.eq.s32.totalorder %s30, 0
      %p164 = por %p162, %p163
      %s166 = sadd.s32 %s165, 1
      %p169 = scmp.eq.s32.totalorder %s24, 3
      %p170 = scmp.ne.s32.totalorder %s165, %s167
      %p171 = scmp.eq.s32.totalorder %s24, 0
      %p172 = por %p170, %p171
      %p173 = scmp.ne.s32.totalorder %s165, %s167
      %p174 = scmp.eq.s32.totalorder %s29, 3
      %p175 = por %p173, %p174
      %p176 = scmp.ne.s32.totalorder %s167, %s168
      %p177 = scmp.eq.s32.totalorder %s29, 0
      %p178 = por %p176, %p177
      %p179 = scmp.ne.s32.totalorder %s167, %s168
      %p180 = scmp.eq.s32.totalorder %s30, 3
      %p181 = por %p179, %p180
      %p183 = scmp.ne.s32.totalorder %s168, %s182
      %p184 = scmp.eq.s32.totalorder %s30, 0
      %p185 = por %p183, %p184
      %s187 = sadd.s32 %s186, 1
      %p190 = scmp.eq.s32.totalorder %s24, 3
      %p191 = scmp.ne.s32.totalorder %s186, %s188
      %p192 = scmp.eq.s32.totalorder %s24, 0
      %p193 = por %p191, %p192
      %p194 = scmp.ne.s32.totalorder %s186, %s188
      %p195 = scmp.eq.s32.totalorder %s29, 3
      %p196 = por %p194, %p195
      %p197 = scmp.ne.s32.totalorder %s188, %s189
      %p198 = scmp.eq.s32.totalorder %s29, 0
      %p199 = por %p197, %p198
      %p200 = scmp.ne.s32.totalorder %s188, %s189
      %p201 = scmp.eq.s32.totalorder %s30, 3
      %p202 = por %p200, %p201
      %p204 = scmp.ne.s32.totalorder %s189, %s203
      %p205 = scmp.eq.s32.totalorder %s30, 0
      %p206 = por %p204, %p205
      %s208 = sadd.s32 %s207, 1
      %p211 = scmp.eq.s32.totalorder %s24, 3
      %p212 = scmp.ne.s32.totalorder %s207, %s209
      %p213 = scmp.eq.s32.totalorder %s24, 0
      %p214 = por %p212, %p213
      %p215 = scmp.ne.s32.totalorder %s207, %s209
      %p216 = scmp.eq.s32.totalorder %s29, 3
      %p217 = por %p215, %p216
      %p218 = scmp.ne.s32.totalorder %s209, %s210
      %p219 = scmp.eq.s32.totalorder %s29, 0
      %p220 = por %p218, %p219
      %p221 = scmp.ne.s32.totalorder %s209, %s210
      %p222 = scmp.eq.s32.totalorder %s30, 3
      %p223 = por %p221, %p222
      %p225 = scmp.ne.s32.totalorder %s210, %s224
      %p226 = scmp.eq.s32.totalorder %s30, 0
      %p227 = por %p225, %p226
      %s228 = ssub.s32 %s31, %s43
      %s229 = ssub.s32 %s32, %s39
      %s230 = sor.u32 %s228, %s229
      %p231 = scmp.eq.s32.totalorder %s230, 0
      %s233 = sadd.s32 %s232, 1
      %s234 = scalar_select %p231, %s232, %s233
      %p237 = pneg %p231
      %p238 = scmp.eq.s32.totalorder %s24, 3
      %p239 = por %p237, %p238
      %p240 = scmp.ne.s32.totalorder %s232, %s235
      %p241 = scmp.eq.s32.totalorder %s24, 0
      %p242 = por %p240, %p241
      %p243 = scmp.ne.s32.totalorder %s232, %s235
      %p244 = scmp.eq.s32.totalorder %s29, 3
      %p245 = por %p243, %p244
      %p246 = scmp.ne.s32.totalorder %s235, %s236
      %p247 = scmp.eq.s32.totalorder %s29, 0
      %p248 = por %p246, %p247
      %p249 = scmp.ne.s32.totalorder %s235, %s236
      %p250 = scmp.eq.s32.totalorder %s30, 3
      %p251 = por %p249, %p250
      %p253 = scmp.ne.s32.totalorder %s236, %s252
      %p254 = scmp.eq.s32.totalorder %s30, 0
      %p255 = por %p253, %p254
      %p256 = scmp.le.s32.totalorder 1, %s24
      %p257 = scmp.lt.s32.totalorder %s24, 5
      %p258 = pnand %p256, %p257
      %p259 = pneg %p258
      // Predicated region
      $region9: #{tpu_custom_call.1} parent=5 // pred_check
        _
      $region10: #{tpu_custom_call.1} parent=5 // pred_check_branch
        %261 = sbr.rel (%p258) target = $region12
      $region11: #{tpu_custom_call.1} parent=5 // pred_region
        %s262 = ssub.s32 %s24, 1
        // Predicated region
        $region13: #{tpu_custom_call.1} parent=11 // pred_check
          %p263 = pneg %p157
        $region14: #{tpu_custom_call.1} parent=11 // pred_check_branch
          %265 = sbr.rel (%p263) target = $region16
        $region15: #{tpu_custom_call.1} parent=11 // pred_region
          %s267 = ssub.s32 1024, 1024
          %268 = vsyncadd [#allocation10], %s267
          %s269 = sshll.u32 [#allocation9], 4
          %s270 = int_to_ptr.vmem [resolvable:$true] %s269
          %275 = dma.hbm_to_vmem [thread:$0]  %s3, 1024, %s270, [#allocation10], 64, 64, 4
        $region16: #{tpu_custom_call.1} parent=11 // pred_fallthru
          _
        // Predicated region
        $region17: #{tpu_custom_call.1} parent=11 // pred_check
          %p276 = pneg %p178
        $region18: #{tpu_custom_call.1} parent=11 // pred_check_branch
          %278 = sbr.rel (%p276) target = $region20
        $region19: #{tpu_custom_call.1} parent=11 // pred_region
          %s280 = ssub.s32 9216, 9216
          %281 = vsyncadd [#allocation10], %s280
          %s282 = sshll.u32 [#allocation11], 4
          %s283 = int_to_ptr.vmem [resolvable:$true] %s282
          %288 = dma.hbm_to_vmem [thread:$0]  %s4, 9216, %s283, [#allocation10], 64, 64, 4
        $region20: #{tpu_custom_call.1} parent=11 // pred_fallthru
          _
        // Predicated region
        $region21: #{tpu_custom_call.1} parent=11 // pred_check
          %p289 = pneg %p199
        $region22: #{tpu_custom_call.1} parent=11 // pred_check_branch
          %291 = sbr.rel (%p289) target = $region24
        $region23: #{tpu_custom_call.1} parent=11 // pred_region
          %s293 = ssub.s32 1024, 1024
          %294 = vsyncadd [#allocation13], %s293
          %s295 = sshll.u32 [#allocation12], 4
          %s296 = int_to_ptr.vmem [resolvable:$true] %s295
          %301 = dma.hbm_to_vmem [thread:$0]  %s5, 1024, %s296, [#allocation13], 64, 64, 4
        $region24: #{tpu_custom_call.1} parent=11 // pred_fallthru
          _
        // Predicated region
        $region25: #{tpu_custom_call.1} parent=11 // pred_check
          %p302 = pneg %p220
        $region26: #{tpu_custom_call.1} parent=11 // pred_check_branch
          %304 = sbr.rel (%p302) target = $region28
        $region27: #{tpu_custom_call.1} parent=11 // pred_region
          _
        $region28: #{tpu_custom_call.1} parent=11 // pred_fallthru
          _
      $region12: #{tpu_custom_call.1} parent=5 // pred_fallthru
        _
      %p305 = scmp.lt.s32.totalorder %s24, 4
      // Predicated region
      $region29: #{tpu_custom_call.1} parent=5 // pred_check
        %p306 = pneg %p305
      $region30: #{tpu_custom_call.1} parent=5 // pred_check_branch
        %308 = sbr.rel (%p306) target = $region32
      $region31: #{tpu_custom_call.1} parent=5 // pred_region
        // Predicated region
        $region33: #{tpu_custom_call.1} parent=31 // pred_check
          %p309 = pneg %p58
        $region34: #{tpu_custom_call.1} parent=31 // pred_check_branch
          %311 = sbr.rel (%p309) target = $region36
        $region35: #{tpu_custom_call.1} parent=31 // pred_region
          %s312 = sand.u32 %s48, 1
          %s313 = scalar_lea.sflag [#allocation4], %s312
          %s314 = sand.u32 %s48, 1
          %s315 = smul.addr %s314, 128
          %s316 = scalar_lea.vmem [#allocation3], %s315
          %s317 = smul.u32 8, %s32
          %s319 = ssub.s32 2048, 2048
          %320 = vsyncadd %s313, %s319
          %s321 = smul.addr %s317, 2
          %s322 = smul.addr %s31, 32
          %s323 = sadd.s32 %s321, %s322
          %s324 = smul.addr %s323, 128
          %s325 = scalar_lea.hbm %s0, %s324
          %s326 = sshll.u32 %s316, 4
          %s327 = int_to_ptr.vmem [resolvable:$true] %s326
          %332 = dma.hbm_to_vmem [thread:$0]  %s325, 2048, %s327, %s313, 128, 128, 8
        $region36: #{tpu_custom_call.1} parent=31 // pred_fallthru
          _
        // Predicated region
        $region37: #{tpu_custom_call.1} parent=31 // pred_check
          %p333 = pneg %p94
        $region38: #{tpu_custom_call.1} parent=31 // pred_check_branch
          %335 = sbr.rel (%p333) target = $region40
        $region39: #{tpu_custom_call.1} parent=31 // pred_region
          %s336 = sand.u32 %s24, 1
          %s337 = scalar_lea.sflag [#allocation7], %s336
          %s338 = sand.u32 %s84, 1
          %s339 = smul.addr %s338, 16
          %s340 = scalar_lea.vmem [#allocation6], %s339
          %s341 = smul.u32 %s32, 8
          %s342 = ssub.s32 %s341, 1
          %p343 = scmp.gt.s32.totalorder %s342, 0
          %s344 = scalar_select %p343, %s342, 0
          %s346 = ssub.s32 256, 256
          %347 = vsyncadd %s337, %s346
          %s348 = smul.addr %s344, 2
          %s349 = smul.addr %s31, 32
          %s350 = sadd.s32 %s348, %s349
          %s351 = smul.addr %s350, 128
          %s352 = scalar_lea.hbm %s1, %s351
          %s353 = sshll.u32 %s340, 4
          %s354 = int_to_ptr.vmem [resolvable:$true] %s353
          %359 = dma.hbm_to_vmem [thread:$0]  %s352, 256, %s354, %s337, 128, 128, 8
        $region40: #{tpu_custom_call.1} parent=31 // pred_fallthru
          _
        // Predicated region
        $region41: #{tpu_custom_call.1} parent=31 // pred_check
          %p360 = pneg %p130
        $region42: #{tpu_custom_call.1} parent=31 // pred_check_branch
          %362 = sbr.rel (%p360) target = $region44
        $region43: #{tpu_custom_call.1} parent=31 // pred_region
          %s363 = sand.u32 %s24, 1
          %s364 = scalar_lea.sflag [#allocation7], %s363
          %s365 = sand.u32 %s120, 1
          %s366 = smul.addr %s365, 16
          %s367 = scalar_lea.vmem [#allocation8], %s366
          %s368 = sadd.s32 %s32, 1
          %s369 = smul.u32 %s368, 8
          %p370 = scmp.lt.s32.totalorder %s369, 15
          %s371 = scalar_select %p370, %s369, 15
          %s373 = ssub.s32 256, 256
          %374 = vsyncadd %s364, %s373
          %s375 = smul.addr %s371, 2
          %s376 = smul.addr %s31, 32
          %s377 = sadd.s32 %s375, %s376
          %s378 = smul.addr %s377, 128
          %s379 = scalar_lea.hbm %s2, %s378
          %s380 = sshll.u32 %s367, 4
          %s381 = int_to_ptr.vmem [resolvable:$true] %s380
          %386 = dma.hbm_to_vmem [thread:$0]  %s379, 256, %s381, %s364, 128, 128, 8
        $region44: #{tpu_custom_call.1} parent=31 // pred_fallthru
          _
      $region32: #{tpu_custom_call.1} parent=5 // pred_fallthru
        _
      %p387 = scmp.le.s32.totalorder 1, %s24
      %p388 = scmp.lt.s32.totalorder %s24, 5
      %p389 = pnand %p387, %p388
      %p390 = pneg %p389
      // Predicated region
      $region45: #{tpu_custom_call.1} parent=5 // pred_check
        _
      $region46: #{tpu_custom_call.1} parent=5 // pred_check_branch
        %392 = sbr.rel (%p389) target = $region48
      $region47: #{tpu_custom_call.1} parent=5 // pred_region
        %s393 = ssub.s32 %s24, 1
        %s394 = sand.u32 %s51, 1
        %s395 = scalar_lea.sflag [#allocation4], %s394
        %s396 = sand.u32 %s51, 1
        %s397 = smul.addr %s396, 128
        %s398 = scalar_lea.vmem [#allocation3], %s397
        // Predicated region
        $region49: #{tpu_custom_call.1} parent=47 // pred_check
          %p399 = pneg %p64
        $region50: #{tpu_custom_call.1} parent=47 // pred_check_branch
          %401 = sbr.rel (%p399) target = $region52
        $region51: #{tpu_custom_call.1} parent=47 // pred_region
          %402 = dma.done %s395, 2048
        $region52: #{tpu_custom_call.1} parent=47 // pred_fallthru
          _
        %s403 = sand.u32 %s29, 1
        %s404 = scalar_lea.sflag [#allocation7], %s403
        %s405 = sand.u32 %s87, 1
        %s406 = smul.addr %s405, 16
        %s407 = scalar_lea.vmem [#allocation6], %s406
        // Predicated region
        $region53: #{tpu_custom_call.1} parent=47 // pred_check
          %p408 = pneg %p100
        $region54: #{tpu_custom_call.1} parent=47 // pred_check_branch
          %410 = sbr.rel (%p408) target = $region56
        $region55: #{tpu_custom_call.1} parent=47 // pred_region
          %411 = dma.done %s404, 256
        $region56: #{tpu_custom_call.1} parent=47 // pred_fallthru
          _
        %s412 = sand.u32 %s29, 1
        %s413 = scalar_lea.sflag [#allocation7], %s412
        %s414 = sand.u32 %s123, 1
        %s415 = smul.addr %s414, 16
        %s416 = scalar_lea.vmem [#allocation8], %s415
        // Predicated region
        $region57: #{tpu_custom_call.1} parent=47 // pred_check
          %p417 = pneg %p136
        $region58: #{tpu_custom_call.1} parent=47 // pred_check_branch
          %419 = sbr.rel (%p417) target = $region60
        $region59: #{tpu_custom_call.1} parent=47 // pred_region
          %420 = dma.done %s413, 256
        $region60: #{tpu_custom_call.1} parent=47 // pred_fallthru
          _
        // Predicated region
        $region61: #{tpu_custom_call.1} parent=47 // pred_check
          %p421 = pneg %p157
        $region62: #{tpu_custom_call.1} parent=47 // pred_check_branch
          %423 = sbr.rel (%p421) target = $region64
        $region63: #{tpu_custom_call.1} parent=47 // pred_region
          %424 = dma.done [#allocation10], 1024
        $region64: #{tpu_custom_call.1} parent=47 // pred_fallthru
          _
        // Predicated region
        $region65: #{tpu_custom_call.1} parent=47 // pred_check
          %p425 = pneg %p178
        $region66: #{tpu_custom_call.1} parent=47 // pred_check_branch
          %427 = sbr.rel (%p425) target = $region68
        $region67: #{tpu_custom_call.1} parent=47 // pred_region
          %428 = dma.done [#allocation10], 9216
        $region68: #{tpu_custom_call.1} parent=47 // pred_fallthru
          _
        // Predicated region
        $region69: #{tpu_custom_call.1} parent=47 // pred_check
          %p429 = pneg %p199
        $region70: #{tpu_custom_call.1} parent=47 // pred_check_branch
          %431 = sbr.rel (%p429) target = $region72
        $region71: #{tpu_custom_call.1} parent=47 // pred_region
          %432 = dma.done [#allocation13], 1024
        $region72: #{tpu_custom_call.1} parent=47 // pred_fallthru
          _
        %s433 = sand.u32 %s51, 1
        %s434 = scalar_lea.sflag [#allocation4], %s433
        %s435 = sand.u32 %s51, 1
        %s436 = smul.addr %s435, 128
        %s437 = scalar_lea.vmem [#allocation3], %s436
        %p438 = pneg %p64
        %p439 = pneg %p61
        %s440 = sand.u32 %s29, 1
        %s441 = scalar_lea.sflag [#allocation7], %s440
        %s442 = sand.u32 %s87, 1
        %s443 = smul.addr %s442, 16
        %s444 = scalar_lea.vmem [#allocation6], %s443
        %p445 = pneg %p100
        %p446 = pneg %p97
        %s447 = sand.u32 %s29, 1
        %s448 = scalar_lea.sflag [#allocation7], %s447
        %s449 = sand.u32 %s123, 1
        %s450 = smul.addr %s449, 16
        %s451 = scalar_lea.vmem [#allocation8], %s450
        %p452 = pneg %p136
        %p453 = pneg %p133
        %p454 = pneg %p157
        %p455 = pneg %p154
        %p456 = pneg %p178
        %p457 = pneg %p175
        %p458 = pneg %p199
        %p459 = pneg %p196
        %p460 = pneg %p220
        %p461 = pneg %p217
        %p462 = pneg %p248
        %p463 = pneg %p245
        %s464 = sand.u32 %s235, 1
        %s465 = scalar_lea.sflag [#allocation5], %s464
        %s466 = sand.u32 %s235, 1
        %s467 = smul.addr %s466, 128
        %s468 = scalar_lea.vmem [#allocation14], %s467
        %s469 = smul.u32 8, %s34
        %s470 = smul.u32 %s34, 8
        %s471 = ssub.s32 %s470, 1
        %p472 = scmp.gt.s32.totalorder %s471, 0
        %s473 = scalar_select %p472, %s471, 0
        %s474 = sadd.s32 %s34, 1
        %s475 = smul.u32 %s474, 8
        %p476 = scmp.lt.s32.totalorder %s475, 15
        %s477 = scalar_select %p476, %s475, 15
        %s478 = smul.u32 8, %s34
        %v480 = vld [vmem:[#allocation9] sm:$0xf]
        %v481 = vld [vmem:[#allocation9 + $0x4] sm:$0xf]
        %v482 = vld [vmem:[#allocation9 + $0x8] sm:$0xf]
        %v483 = vld [vmem:[#allocation9 + $0xc] sm:$0xf]
        %v484 = vld [vmem:[#allocation9 + $0x10] sm:$0xf]
        %v485 = vld [vmem:[#allocation9 + $0x14] sm:$0xf]
        %v486 = vld [vmem:[#allocation9 + $0x18] sm:$0xf]
        %v487 = vld [vmem:[#allocation9 + $0x1c] sm:$0xf]
        %v488 = vld [vmem:[#allocation9 + $0x20] sm:$0xf]
        %v489 = vld [vmem:[#allocation9 + $0x24] sm:$0xf]
        %v490 = vld [vmem:[#allocation9 + $0x28] sm:$0xf]
        %v491 = vld [vmem:[#allocation9 + $0x2c] sm:$0xf]
        %v492 = vld [vmem:[#allocation9 + $0x30] sm:$0xf]
        %v493 = vld [vmem:[#allocation9 + $0x34] sm:$0xf]
        %v494 = vld [vmem:[#allocation9 + $0x38] sm:$0xf]
        %v495 = vld [vmem:[#allocation9 + $0x3c] sm:$0xf]
        %v496 = vld [vmem:[%s6] sm:$0x1]
        %v497 = vld [vmem:[%s6 + $0x1] sm:$0x1]
        %v498 = vld [vmem:[%s398] sm:$0xff]
        %v499 = vld [vmem:[%s398 + $0x8] sm:$0xff]
        %v500 = vld [vmem:[%s398 + $0x10] sm:$0xff]
        %v501 = vld [vmem:[%s398 + $0x18] sm:$0xff]
        %v502 = vld [vmem:[%s398 + $0x20] sm:$0xff]
        %v503 = vld [vmem:[%s398 + $0x28] sm:$0xff]
        %v504 = vld [vmem:[%s398 + $0x30] sm:$0xff]
        %v505 = vld [vmem:[%s398 + $0x38] sm:$0xff]
        %v506 = vld [vmem:[%s398 + $0x40] sm:$0xff]
        %v507 = vld [vmem:[%s398 + $0x48] sm:$0xff]
        %v508 = vld [vmem:[%s398 + $0x50] sm:$0xff]
        %v509 = vld [vmem:[%s398 + $0x58] sm:$0xff]
        %v510 = vld [vmem:[%s398 + $0x60] sm:$0xff]
        %v511 = vld [vmem:[%s398 + $0x68] sm:$0xff]
        %v512 = vld [vmem:[%s398 + $0x70] sm:$0xff]
        %v513 = vld [vmem:[%s398 + $0x78] sm:$0xff]
        %v514 = vpack.c.bf16 %v499, %v498
        %v515 = vpack.c.bf16 %v501, %v500
        %v516 = vpack.c.bf16 %v503, %v502
        %v517 = vpack.c.bf16 %v505, %v504
        %v518 = vpack.c.bf16 %v507, %v506
        %v519 = vpack.c.bf16 %v509, %v508
        %v520 = vpack.c.bf16 %v511, %v510
        %v521 = vpack.c.bf16 %v513, %v512
        %v538 = vunpack.c.l.b16 %v480
        %v539 = vunpack.c.l.b16 %v481
        %v540 = vunpack.c.l.b16 %v482
        %v541 = vunpack.c.l.b16 %v483
        %v542 = vunpack.c.l.b16 %v484
        %v543 = vunpack.c.l.b16 %v485
        %v544 = vunpack.c.l.b16 %v486
        %v545 = vunpack.c.l.b16 %v487
        %v546 = vunpack.c.l.b16 %v488
        %v547 = vunpack.c.l.b16 %v489
        %v548 = vunpack.c.l.b16 %v490
        %v549 = vunpack.c.l.b16 %v491
        %v550 = vunpack.c.l.b16 %v492
        %v551 = vunpack.c.l.b16 %v493
        %v552 = vunpack.c.l.b16 %v494
        %v553 = vunpack.c.l.b16 %v495
        %v554 = vpack.c.b16 %v539, %v538
        %v555 = vpack.c.b16 %v541, %v540
        %v556 = vpack.c.b16 %v543, %v542
        %v557 = vpack.c.b16 %v545, %v544
        %v558 = vpack.c.b16 %v547, %v546
        %v559 = vpack.c.b16 %v549, %v548
        %v560 = vpack.c.b16 %v551, %v550
        %v561 = vpack.c.b16 %v553, %v552
        %570 = vmatprep.subr.bf16.mxu0 0
        %571 = vmatpush1.bf16.msra.mxu0 %v554
        %572 = vmatprep.subr.bf16.mxu0 0
        %573 = vmatpush1.bf16.msra.mxu0 %v555
        %574 = vmatprep.subr.bf16.mxu0 0
        %575 = vmatpush1.bf16.msra.mxu0 %v556
        %576 = vmatprep.subr.bf16.mxu0 0
        %577 = vmatpush1.bf16.msra.mxu0 %v557
        %578 = vmatprep.subr.bf16.mxu0 0
        %579 = vmatpush1.bf16.msra.mxu0 %v558
        %580 = vmatprep.subr.bf16.mxu0 0
        %581 = vmatpush1.bf16.msra.mxu0 %v559
        %582 = vmatprep.subr.bf16.mxu0 0
        %583 = vmatpush1.bf16.msra.mxu0 %v560
        %584 = vmatprep.subr.bf16.mxu0 0
        %585 = vmatpush1.bf16.msra.mxu0 %v561
        %586 = vmatprep.subr.bf16.mxu0 0
        %587 = vmatpush1.bf16.msra.mxu0 0
        %588 = vmatprep.subr.bf16.mxu0 0
        %589 = vmatpush1.bf16.msra.mxu0 0
        %590 = vmatprep.subr.bf16.mxu0 0
        %591 = vmatpush1.bf16.msra.mxu0 0
        %592 = vmatprep.subr.bf16.mxu0 0
        %593 = vmatpush1.bf16.msra.mxu0 0
        %594 = vmatprep.subr.bf16.mxu0 0
        %595 = vmatpush1.bf16.msra.mxu0 0
        %596 = vmatprep.subr.bf16.mxu0 0
        %597 = vmatpush1.bf16.msra.mxu0 0
        %598 = vmatprep.subr.bf16.mxu0 0
        %599 = vmatpush1.bf16.msra.mxu0 0
        %600 = vmatprep.subr.bf16.mxu0 0
        %601 = vmatpush1.bf16.msra.mxu0 0
        %602 = vmatprep.mubr.bf16.mxu0 0
        %603 = vmatmul.mubr.bf16.gmra.mrb[0].mxu0 %v514
        %v604 = vpop.f32.mrb[0].mxu0
        %v605 = vadd.f32 0.0, %v604
        %v606 = vpop.f32.mrb[0].mxu0
        %v607 = vpop.f32.mrb[0].mxu0
        %v608 = vadd.f32 0.0, %v607
        %v609 = vpop.f32.mrb[0].mxu0
        %610 = vmatprep.mubr.bf16.mxu0 0
        %611 = vmatmul.mubr.bf16.gmra.mrb[0].mxu0 %v515
        %v612 = vpop.f32.mrb[0].mxu0
        %v613 = vadd.f32 0.0, %v612
        %v614 = vpop.f32.mrb[0].mxu0
        %v615 = vpop.f32.mrb[0].mxu0
        %v616 = vadd.f32 0.0, %v615
        %v617 = vpop.f32.mrb[0].mxu0
        %618 = vmatprep.mubr.bf16.mxu0 0
        %619 = vmatmul.mubr.bf16.gmra.mrb[0].mxu0 %v516
        %v620 = vpop.f32.mrb[0].mxu0
        %v621 = vadd.f32 0.0, %v620
        %v622 = vpop.f32.mrb[0].mxu0
        %v623 = vpop.f32.mrb[0].mxu0
        %v624 = vadd.f32 0.0, %v623
        %v625 = vpop.f32.mrb[0].mxu0
        %626 = vmatprep.mubr.bf16.mxu0 0
        %627 = vmatmul.mubr.bf16.gmra.mrb[0].mxu0 %v517
        %v628 = vpop.f32.mrb[0].mxu0
        %v629 = vadd.f32 0.0, %v628
        %v630 = vpop.f32.mrb[0].mxu0
        %v631 = vpop.f32.mrb[0].mxu0
        %v632 = vadd.f32 0.0, %v631
        %v633 = vpop.f32.mrb[0].mxu0
        %634 = vmatprep.mubr.bf16.mxu0 0
        %635 = vmatmul.mubr.bf16.gmra.mrb[0].mxu0 %v518
        %v636 = vpop.f32.mrb[0].mxu0
        %v637 = vadd.f32 0.0, %v636
        %v638 = vpop.f32.mrb[0].mxu0
        %v639 = vpop.f32.mrb[0].mxu0
        %v640 = vadd.f32 0.0, %v639
        %v641 = vpop.f32.mrb[0].mxu0
        %642 = vmatprep.mubr.bf16.mxu0 0
        %643 = vmatmul.mubr.bf16.gmra.mrb[0].mxu0 %v519
        %v644 = vpop.f32.mrb[0].mxu0
        %v645 = vadd.f32 0.0, %v644
        %v646 = vpop.f32.mrb[0].mxu0
        %v647 = vpop.f32.mrb[0].mxu0
        %v648 = vadd.f32 0.0, %v647
        %v649 = vpop.f32.mrb[0].mxu0
        %650 = vmatprep.mubr.bf16.mxu0 0
        %651 = vmatmul.mubr.bf16.gmra.mrb[0].mxu0 %v520
        %v652 = vpop.f32.mrb[0].mxu0
        %v653 = vadd.f32 0.0, %v652
        %v654 = vpop.f32.mrb[0].mxu0
        %v655 = vpop.f32.mrb[0].mxu0
        %v656 = vadd.f32 0.0, %v655
        %v657 = vpop.f32.mrb[0].mxu0
        %658 = vmatprep.mubr.bf16.mxu0 0
        %659 = vmatmul.mubr.bf16.gmra.mrb[0].mxu0 %v521
        %v660 = vpop.f32.mrb[0].mxu0
        %v661 = vadd.f32 0.0, %v660
        %v662 = vpop.f32.mrb[0].mxu0
        %v663 = vpop.f32.mrb[0].mxu0
        %v664 = vadd.f32 0.0, %v663
        %v665 = vpop.f32.mrb[0].mxu0
        %666 = vdwg.mxu0
        %v667 = vlaneseq
        %v668 = vshrl.u32 %v667, 7
        %v669 = vsub.s32 0, %v668
        %v670 = vrot.slane %v496, %v669
        %v671 = vmul.f32 %v605, %v670
        %v672 = vmul.f32 %v608, %v670
        %v673 = vmul.f32 %v613, %v670
        %v674 = vmul.f32 %v616, %v670
        %v675 = vmul.f32 %v621, %v670
        %v676 = vmul.f32 %v624, %v670
        %v677 = vmul.f32 %v629, %v670
        %v678 = vmul.f32 %v632, %v670
        %v679 = vmul.f32 %v637, %v670
        %v680 = vmul.f32 %v640, %v670
        %v681 = vmul.f32 %v645, %v670
        %v682 = vmul.f32 %v648, %v670
        %v683 = vmul.f32 %v653, %v670
        %v684 = vmul.f32 %v656, %v670
        %v685 = vmul.f32 %v661, %v670
        %v686 = vmul.f32 %v664, %v670
        %v687 = vlaneseq
        %v688 = vshrl.u32 %v687, 7
        %v689 = vsub.s32 0, %v688
        %v690 = vrot.slane %v497, %v689
        %v691 = vadd.f32 %v671, %v690
        %v692 = vadd.f32 %v672, %v690
        %v693 = vadd.f32 %v673, %v690
        %v694 = vadd.f32 %v674, %v690
        %v695 = vadd.f32 %v675, %v690
        %v696 = vadd.f32 %v676, %v690
        %v697 = vadd.f32 %v677, %v690
        %v698 = vadd.f32 %v678, %v690
        %v699 = vadd.f32 %v679, %v690
        %v700 = vadd.f32 %v680, %v690
        %v701 = vadd.f32 %v681, %v690
        %v702 = vadd.f32 %v682, %v690
        %v703 = vadd.f32 %v683, %v690
        %v704 = vadd.f32 %v684, %v690
        %v705 = vadd.f32 %v685, %v690
        %v706 = vadd.f32 %v686, %v690
        %v707 = vmax.f32 %v691, 0.0
        %v708 = vmax.f32 %v692, 0.0
        %v709 = vmax.f32 %v693, 0.0
        %v710 = vmax.f32 %v694, 0.0
        %v711 = vmax.f32 %v695, 0.0
        %v712 = vmax.f32 %v696, 0.0
        %v713 = vmax.f32 %v697, 0.0
        %v714 = vmax.f32 %v698, 0.0
        %v715 = vmax.f32 %v699, 0.0
        %v716 = vmax.f32 %v700, 0.0
        %v717 = vmax.f32 %v701, 0.0
        %v718 = vmax.f32 %v702, 0.0
        %v719 = vmax.f32 %v703, 0.0
        %v720 = vmax.f32 %v704, 0.0
        %v721 = vmax.f32 %v705, 0.0
        %v722 = vmax.f32 %v706, 0.0
        %v723 = vpack.c.bf16 %v708, %v707
        %v724 = vpack.c.bf16 %v710, %v709
        %v725 = vpack.c.bf16 %v712, %v711
        %v726 = vpack.c.bf16 %v714, %v713
        %v727 = vpack.c.bf16 %v716, %v715
        %v728 = vpack.c.bf16 %v718, %v717
        %v729 = vpack.c.bf16 %v720, %v719
        %v730 = vpack.c.bf16 %v722, %v721
        %v731 = vld [vmem:[%s407] sm:$0xff]
        %v732 = vld [vmem:[%s407 + $0x8] sm:$0xff]
        %v733 = vld [vmem:[%s416] sm:$0xff]
        %v734 = vld [vmem:[%s416 + $0x8] sm:$0xff]
        %v735 = vpack.c.bf16 %v732, %v731
        %v736 = vpack.c.bf16 %v734, %v733
        %737 = vmatprep.subr.bf16.mxu0 0
        %738 = vmatpush1.bf16.msra.mxu0 %v554
        %739 = vmatprep.subr.bf16.mxu0 0
        %740 = vmatpush1.bf16.msra.mxu0 %v555
        %741 = vmatprep.subr.bf16.mxu0 0
        %742 = vmatpush1.bf16.msra.mxu0 %v556
        %743 = vmatprep.subr.bf16.mxu0 0
        %744 = vmatpush1.bf16.msra.mxu0 %v557
        %745 = vmatprep.subr.bf16.mxu0 0
        %746 = vmatpush1.bf16.msra.mxu0 %v558
        %747 = vmatprep.subr.bf16.mxu0 0
        %748 = vmatpush1.bf16.msra.mxu0 %v559
        %749 = vmatprep.subr.bf16.mxu0 0
        %750 = vmatpush1.bf16.msra.mxu0 %v560
        %751 = vmatprep.subr.bf16.mxu0 0
        %752 = vmatpush1.bf16.msra.mxu0 %v561
        %753 = vmatprep.subr.bf16.mxu0 0
        %754 = vmatpush1.bf16.msra.mxu0 0
        %755 = vmatprep.subr.bf16.mxu0 0
        %756 = vmatpush1.bf16.msra.mxu0 0
        %757 = vmatprep.subr.bf16.mxu0 0
        %758 = vmatpush1.bf16.msra.mxu0 0
        %759 = vmatprep.subr.bf16.mxu0 0
        %760 = vmatpush1.bf16.msra.mxu0 0
        %761 = vmatprep.subr.bf16.mxu0 0
        %762 = vmatpush1.bf16.msra.mxu0 0
        %763 = vmatprep.subr.bf16.mxu0 0
        %764 = vmatpush1.bf16.msra.mxu0 0
        %765 = vmatprep.subr.bf16.mxu0 0
        %766 = vmatpush1.bf16.msra.mxu0 0
        %767 = vmatprep.subr.bf16.mxu0 0
        %768 = vmatpush1.bf16.msra.mxu0 0
        %769 = vmatprep.mubr.bf16.mxu0 0
        %770 = vmatmul.mubr.bf16.gmra.mrb[0].mxu0 %v735
        %v771 = vpop.f32.mrb[0].mxu0
        %v772 = vadd.f32 0.0, %v771
        %v773 = vpop.f32.mrb[0].mxu0
        %v774 = vpop.f32.mrb[0].mxu0
        %v775 = vadd.f32 0.0, %v774
        %v776 = vpop.f32.mrb[0].mxu0
        %777 = vmatprep.mubr.bf16.mxu0 0
        %778 = vmatmul.mubr.bf16.gmra.mrb[0].mxu0 %v736
        %v779 = vpop.f32.mrb[0].mxu0
        %v780 = vadd.f32 0.0, %v779
        %v781 = vpop.f32.mrb[0].mxu0
        %v782 = vpop.f32.mrb[0].mxu0
        %v783 = vadd.f32 0.0, %v782
        %v784 = vpop.f32.mrb[0].mxu0
        %785 = vdwg.mxu0
        %v786 = vmul.f32 %v772, %v670
        %v787 = vmul.f32 %v775, %v670
        %v788 = vmul.f32 %v780, %v670
        %v789 = vmul.f32 %v783, %v670
        %v790 = vadd.f32 %v786, %v690
        %v791 = vadd.f32 %v787, %v690
        %v792 = vadd.f32 %v788, %v690
        %v793 = vadd.f32 %v789, %v690
        %v794 = vmax.f32 %v790, 0.0
        %v795 = vmax.f32 %v791, 0.0
        %v796 = vmax.f32 %v792, 0.0
        %v797 = vmax.f32 %v793, 0.0
        %p798 = scmp.gt.s32.totalorder %s34, 0
        %s799 = scalar_select %p798, 1, 0
        %s800 = scvt.s32.f32 %s799
        %p801 = scmp.lt.s32.totalorder %s34, 1
        %s802 = scalar_select %p801, 1, 0
        %s803 = scvt.s32.f32 %s802
        %v804 = vstv %s800
        %v805 = vmul.f32 %v794, %v804
        %v806 = vmul.f32 %v795, %v804
        %v807 = vpack.c.bf16 %v806, %v805
        %v808 = vstv %s803
        %v809 = vmul.f32 %v796, %v808
        %v810 = vmul.f32 %v797, %v808
        %v811 = vpack.c.bf16 %v810, %v809
        %812 = vst [vmem:[#allocation2] sm:$0xf] 0
        %813 = vst [vmem:[#allocation2 + $0x10] sm:$0xf] 0
        %814 = vst [vmem:[#allocation2 + $0x20] sm:$0xf] 0
        %815 = vst [vmem:[#allocation2 + $0x30] sm:$0xf] 0
        %816 = vst [vmem:[#allocation2 + $0x40] sm:$0xf] 0
        %817 = vst [vmem:[#allocation2 + $0x50] sm:$0xf] 0
        %818 = vst [vmem:[#allocation2 + $0x60] sm:$0xf] 0
        %819 = vst [vmem:[#allocation2 + $0x70] sm:$0xf] 0
        %820 = vst [vmem:[#allocation2 + $0x80] sm:$0xf] 0
        %821 = vst [vmem:[#allocation2 + $0x90] sm:$0xf] 0
        %822 = vst [vmem:[#allocation2 + $0x8] sm:$0xf0] 0
        %823 = vst [vmem:[#allocation2 + $0x18] sm:$0xf0] 0
        %824 = vst [vmem:[#allocation2 + $0x28] sm:$0xf0] 0
        %825 = vst [vmem:[#allocation2 + $0x38] sm:$0xf0] 0
        %826 = vst [vmem:[#allocation2 + $0x48] sm:$0xf0] 0
        %827 = vst [vmem:[#allocation2 + $0x58] sm:$0xf0] 0
        %828 = vst [vmem:[#allocation2 + $0x68] sm:$0xf0] 0
        %829 = vst [vmem:[#allocation2 + $0x78] sm:$0xf0] 0
        %830 = vst [vmem:[#allocation2 + $0x88] sm:$0xf0] 0
        %831 = vst [vmem:[#allocation2 + $0x98] sm:$0xf0] 0
        %v833 = vrot.slane %v807, 4
        %835 = vst [vmem:[#allocation2] sm:$0xf0] %v833
        %836 = vst [vmem:[#allocation2 + $0x8] sm:$0xf] %v833
        %v838 = vrot.slane %v811, 4
        %s840 = scalar_lea.vmem [#allocation2], 144
        %841 = vst [vmem:[%s840] sm:$0xf0] %v838
        %842 = vst [vmem:[%s840 + $0x8] sm:$0xf] %v838
        %v851 = vrot.slane %v723, 4
        %v852 = vrot.slane %v724, 4
        %v853 = vrot.slane %v725, 4
        %v854 = vrot.slane %v726, 4
        %v855 = vrot.slane %v727, 4
        %v856 = vrot.slane %v728, 4
        %v857 = vrot.slane %v729, 4
        %v858 = vrot.slane %v730, 4
        %s867 = scalar_lea.vmem [#allocation2], 16
        %868 = vst [vmem:[%s867] sm:$0xf0] %v851
        %869 = vst [vmem:[%s867 + $0x8] sm:$0xf] %v851
        %870 = vst [vmem:[%s867 + $0x10] sm:$0xf0] %v852
        %871 = vst [vmem:[%s867 + $0x18] sm:$0xf] %v852
        %872 = vst [vmem:[%s867 + $0x20] sm:$0xf0] %v853
        %873 = vst [vmem:[%s867 + $0x28] sm:$0xf] %v853
        %874 = vst [vmem:[%s867 + $0x30] sm:$0xf0] %v854
        %875 = vst [vmem:[%s867 + $0x38] sm:$0xf] %v854
        %876 = vst [vmem:[%s867 + $0x40] sm:$0xf0] %v855
        %877 = vst [vmem:[%s867 + $0x48] sm:$0xf] %v855
        %878 = vst [vmem:[%s867 + $0x50] sm:$0xf0] %v856
        %879 = vst [vmem:[%s867 + $0x58] sm:$0xf] %v856
        %880 = vst [vmem:[%s867 + $0x60] sm:$0xf0] %v857
        %881 = vst [vmem:[%s867 + $0x68] sm:$0xf] %v857
        %882 = vst [vmem:[%s867 + $0x70] sm:$0xf0] %v858
        %883 = vst [vmem:[%s867 + $0x78] sm:$0xf] %v858
        %v884 = vld [vmem:[%s6 + $0x2] sm:$0x1]
        %v885 = vld [vmem:[%s6 + $0x3] sm:$0x1]
        %v886 = vld [vmem:[#allocation2] sm:$0xff]
        %v887 = vld [vmem:[#allocation2 + $0x8] sm:$0xff]
        %v888 = vld [vmem:[#allocation2 + $0x10] sm:$0xff]
        %v889 = vld [vmem:[#allocation2 + $0x18] sm:$0xff]
        %v890 = vld [vmem:[#allocation2 + $0x20] sm:$0xff]
        %v891 = vld [vmem:[#allocation2 + $0x28] sm:$0xff]
        %v892 = vld [vmem:[#allocation2 + $0x30] sm:$0xff]
        %v893 = vld [vmem:[#allocation2 + $0x38] sm:$0xff]
        %v894 = vld [vmem:[#allocation2 + $0x40] sm:$0xff]
        %v895 = vld [vmem:[#allocation2 + $0x48] sm:$0xff]
        %v896 = vld [vmem:[#allocation2 + $0x50] sm:$0xff]
        %v897 = vld [vmem:[#allocation2 + $0x58] sm:$0xff]
        %v898 = vld [vmem:[#allocation2 + $0x60] sm:$0xff]
        %v899 = vld [vmem:[#allocation2 + $0x68] sm:$0xff]
        %v900 = vld [vmem:[#allocation2 + $0x70] sm:$0xff]
        %v901 = vld [vmem:[#allocation2 + $0x78] sm:$0xff]
        %vm902 = vsmask.f32 7424
        %v904 = vshrl.u32 %v886, 16
        %v906 = vshll.u32 %v886, 16
        %v908 = vrot.slane %v906, 1
        %v909 = vor.u32 %v904, %v908
        %v911 = vshll.u32 %v887, 16
        %v913 = vrot.slane %v911, 1
        %v914 = vsel %vm902, %v909, %v913
        %v915 = vshrl.u32 %v887, 16
        %v917 = vor.u32 %v915, %v913
        %v919 = vshrl.u32 %v888, 16
        %v921 = vshll.u32 %v888, 16
        %v923 = vrot.slane %v921, 1
        %v924 = vor.u32 %v919, %v923
        %v926 = vshll.u32 %v889, 16
        %v928 = vrot.slane %v926, 1
        %v929 = vsel %vm902, %v924, %v928
        %v930 = vshrl.u32 %v889, 16
        %v932 = vor.u32 %v930, %v928
        %v934 = vshrl.u32 %v890, 16
        %v936 = vshll.u32 %v890, 16
        %v938 = vrot.slane %v936, 1
        %v939 = vor.u32 %v934, %v938
        %v941 = vshll.u32 %v891, 16
        %v943 = vrot.slane %v941, 1
        %v944 = vsel %vm902, %v939, %v943
        %v945 = vshrl.u32 %v891, 16
        %v947 = vor.u32 %v945, %v943
        %v949 = vshrl.u32 %v892, 16
        %v951 = vshll.u32 %v892, 16
        %v953 = vrot.slane %v951, 1
        %v954 = vor.u32 %v949, %v953
        %v956 = vshll.u32 %v893, 16
        %v958 = vrot.slane %v956, 1
        %v959 = vsel %vm902, %v954, %v958
        %v960 = vshrl.u32 %v893, 16
        %v962 = vor.u32 %v960, %v958
        %v964 = vshrl.u32 %v894, 16
        %v966 = vshll.u32 %v894, 16
        %v968 = vrot.slane %v966, 1
        %v969 = vor.u32 %v964, %v968
        %v971 = vshll.u32 %v895, 16
        %v973 = vrot.slane %v971, 1
        %v974 = vsel %vm902, %v969, %v973
        %v975 = vshrl.u32 %v895, 16
        %v977 = vor.u32 %v975, %v973
        %v979 = vshrl.u32 %v896, 16
        %v981 = vshll.u32 %v896, 16
        %v983 = vrot.slane %v981, 1
        %v984 = vor.u32 %v979, %v983
        %v986 = vshll.u32 %v897, 16
        %v988 = vrot.slane %v986, 1
        %v989 = vsel %vm902, %v984, %v988
        %v990 = vshrl.u32 %v897, 16
        %v992 = vor.u32 %v990, %v988
        %v994 = vshrl.u32 %v898, 16
        %v996 = vshll.u32 %v898, 16
        %v998 = vrot.slane %v996, 1
        %v999 = vor.u32 %v994, %v998
        %v1001 = vshll.u32 %v899, 16
        %v1003 = vrot.slane %v1001, 1
        %v1004 = vsel %vm902, %v999, %v1003
        %v1005 = vshrl.u32 %v899, 16
        %v1007 = vor.u32 %v1005, %v1003
        %v1009 = vshrl.u32 %v900, 16
        %v1011 = vshll.u32 %v900, 16
        %v1013 = vrot.slane %v1011, 1
        %v1014 = vor.u32 %v1009, %v1013
        %v1016 = vshll.u32 %v901, 16
        %v1018 = vrot.slane %v1016, 1
        %v1019 = vsel %vm902, %v1014, %v1018
        %v1020 = vshrl.u32 %v901, 16
        %v1022 = vor.u32 %v1020, %v1018
        %vm1039 = vcmask 1046528
        %v1040 = vrot.slane %v886, 1
        %v1041 = vrot.slane %v887, 1
        %v1042 = vsel %vm1039, %v1040, %v1041
        %v1043 = vrot.slane %v888, 1
        %v1044 = vrot.slane %v889, 1
        %v1045 = vsel %vm1039, %v1043, %v1044
        %v1046 = vrot.slane %v890, 1
        %v1047 = vrot.slane %v891, 1
        %v1048 = vsel %vm1039, %v1046, %v1047
        %v1049 = vrot.slane %v892, 1
        %v1050 = vrot.slane %v893, 1
        %v1051 = vsel %vm1039, %v1049, %v1050
        %v1052 = vrot.slane %v894, 1
        %v1053 = vrot.slane %v895, 1
        %v1054 = vsel %vm1039, %v1052, %v1053
        %v1055 = vrot.slane %v896, 1
        %v1056 = vrot.slane %v897, 1
        %v1057 = vsel %vm1039, %v1055, %v1056
        %v1058 = vrot.slane %v898, 1
        %v1059 = vrot.slane %v899, 1
        %v1060 = vsel %vm1039, %v1058, %v1059
        %v1061 = vrot.slane %v900, 1
        %v1062 = vrot.slane %v901, 1
        %v1063 = vsel %vm1039, %v1061, %v1062
        %vm1064 = vsmask.f32 4352
        %v1065 = vrot.slane %v904, 3
        %v1066 = vrot.slane %v906, 4
        %v1067 = vor.u32 %v1065, %v1066
        %v1068 = vrot.slane %v915, 3
        %v1069 = vrot.slane %v911, 4
        %v1070 = vor.u32 %v1068, %v1069
        %v1071 = vsel %vm1064, %v1067, %v1070
        %v1073 = vshrl.u32 %v914, 16
        %v1075 = vrot.slane %v1073, 3
        %v1076 = vshll.u32 %v914, 16
        %v1078 = vrot.slane %v1076, 4
        %v1079 = vor.u32 %v1075, %v1078
        %v1081 = vshrl.u32 %v917, 16
        %v1083 = vrot.slane %v1081, 3
        %v1084 = vshll.u32 %v917, 16
        %v1086 = vrot.slane %v1084, 4
        %v1087 = vor.u32 %v1083, %v1086
        %v1088 = vsel %vm1064, %v1079, %v1087
        %v1090 = vshrl.u32 %v1042, 16
        %v1092 = vrot.slane %v1090, 3
        %v1093 = vshll.u32 %v1042, 16
        %v1095 = vrot.slane %v1093, 4
        %v1096 = vor.u32 %v1092, %v1095
        %v1098 = vshrl.u32 %v1041, 16
        %v1100 = vrot.slane %v1098, 3
        %v1101 = vshll.u32 %v1041, 16
        %v1103 = vrot.slane %v1101, 4
        %v1104 = vor.u32 %v1100, %v1103
        %v1105 = vsel %vm1064, %v1096, %v1104
        %v1106 = vrot.slane %v919, 3
        %v1107 = vrot.slane %v921, 4
        %v1108 = vor.u32 %v1106, %v1107
        %v1109 = vrot.slane %v930, 3
        %v1110 = vrot.slane %v926, 4
        %v1111 = vor.u32 %v1109, %v1110
        %v1112 = vsel %vm1064, %v1108, %v1111
        %v1114 = vshrl.u32 %v929, 16
        %v1116 = vrot.slane %v1114, 3
        %v1117 = vshll.u32 %v929, 16
        %v1119 = vrot.slane %v1117, 4
        %v1120 = vor.u32 %v1116, %v1119
        %v1122 = vshrl.u32 %v932, 16
        %v1124 = vrot.slane %v1122, 3
        %v1125 = vshll.u32 %v932, 16
        %v1127 = vrot.slane %v1125, 4
        %v1128 = vor.u32 %v1124, %v1127
        %v1129 = vsel %vm1064, %v1120, %v1128
        %v1131 = vshrl.u32 %v1045, 16
        %v1133 = vrot.slane %v1131, 3
        %v1134 = vshll.u32 %v1045, 16
        %v1136 = vrot.slane %v1134, 4
        %v1137 = vor.u32 %v1133, %v1136
        %v1139 = vshrl.u32 %v1044, 16
        %v1141 = vrot.slane %v1139, 3
        %v1142 = vshll.u32 %v1044, 16
        %v1144 = vrot.slane %v1142, 4
        %v1145 = vor.u32 %v1141, %v1144
        %v1146 = vsel %vm1064, %v1137, %v1145
        %v1147 = vrot.slane %v934, 3
        %v1148 = vrot.slane %v936, 4
        %v1149 = vor.u32 %v1147, %v1148
        %v1150 = vrot.slane %v945, 3
        %v1151 = vrot.slane %v941, 4
        %v1152 = vor.u32 %v1150, %v1151
        %v1153 = vsel %vm1064, %v1149, %v1152
        %v1155 = vshrl.u32 %v944, 16
        %v1157 = vrot.slane %v1155, 3
        %v1158 = vshll.u32 %v944, 16
        %v1160 = vrot.slane %v1158, 4
        %v1161 = vor.u32 %v1157, %v1160
        %v1163 = vshrl.u32 %v947, 16
        %v1165 = vrot.slane %v1163, 3
        %v1166 = vshll.u32 %v947, 16
        %v1168 = vrot.slane %v1166, 4
        %v1169 = vor.u32 %v1165, %v1168
        %v1170 = vsel %vm1064, %v1161, %v1169
        %v1172 = vshrl.u32 %v1048, 16
        %v1174 = vrot.slane %v1172, 3
        %v1175 = vshll.u32 %v1048, 16
        %v1177 = vrot.slane %v1175, 4
        %v1178 = vor.u32 %v1174, %v1177
        %v1180 = vshrl.u32 %v1047, 16
        %v1182 = vrot.slane %v1180, 3
        %v1183 = vshll.u32 %v1047, 16
        %v1185 = vrot.slane %v1183, 4
        %v1186 = vor.u32 %v1182, %v1185
        %v1187 = vsel %vm1064, %v1178, %v1186
        %v1188 = vrot.slane %v949, 3
        %v1189 = vrot.slane %v951, 4
        %v1190 = vor.u32 %v1188, %v1189
        %v1191 = vrot.slane %v960, 3
        %v1192 = vrot.slane %v956, 4
        %v1193 = vor.u32 %v1191, %v1192
        %v1194 = vsel %vm1064, %v1190, %v1193
        %v1196 = vshrl.u32 %v959, 16
        %v1198 = vrot.slane %v1196, 3
        %v1199 = vshll.u32 %v959, 16
        %v1201 = vrot.slane %v1199, 4
        %v1202 = vor.u32 %v1198, %v1201
        %v1204 = vshrl.u32 %v962, 16
        %v1206 = vrot.slane %v1204, 3
        %v1207 = vshll.u32 %v962, 16
        %v1209 = vrot.slane %v1207, 4
        %v1210 = vor.u32 %v1206, %v1209
        %v1211 = vsel %vm1064, %v1202, %v1210
        %v1213 = vshrl.u32 %v1051, 16
        %v1215 = vrot.slane %v1213, 3
        %v1216 = vshll.u32 %v1051, 16
        %v1218 = vrot.slane %v1216, 4
        %v1219 = vor.u32 %v1215, %v1218
        %v1221 = vshrl.u32 %v1050, 16
        %v1223 = vrot.slane %v1221, 3
        %v1224 = vshll.u32 %v1050, 16
        %v1226 = vrot.slane %v1224, 4
        %v1227 = vor.u32 %v1223, %v1226
        %v1228 = vsel %vm1064, %v1219, %v1227
        %v1229 = vrot.slane %v964, 3
        %v1230 = vrot.slane %v966, 4
        %v1231 = vor.u32 %v1229, %v1230
        %v1232 = vrot.slane %v975, 3
        %v1233 = vrot.slane %v971, 4
        %v1234 = vor.u32 %v1232, %v1233
        %v1235 = vsel %vm1064, %v1231, %v1234
        %v1237 = vshrl.u32 %v974, 16
        %v1239 = vrot.slane %v1237, 3
        %v1240 = vshll.u32 %v974, 16
        %v1242 = vrot.slane %v1240, 4
        %v1243 = vor.u32 %v1239, %v1242
        %v1245 = vshrl.u32 %v977, 16
        %v1247 = vrot.slane %v1245, 3
        %v1248 = vshll.u32 %v977, 16
        %v1250 = vrot.slane %v1248, 4
        %v1251 = vor.u32 %v1247, %v1250
        %v1252 = vsel %vm1064, %v1243, %v1251
        %v1254 = vshrl.u32 %v1054, 16
        %v1256 = vrot.slane %v1254, 3
        %v1257 = vshll.u32 %v1054, 16
        %v1259 = vrot.slane %v1257, 4
        %v1260 = vor.u32 %v1256, %v1259
        %v1262 = vshrl.u32 %v1053, 16
        %v1264 = vrot.slane %v1262, 3
        %v1265 = vshll.u32 %v1053, 16
        %v1267 = vrot.slane %v1265, 4
        %v1268 = vor.u32 %v1264, %v1267
        %v1269 = vsel %vm1064, %v1260, %v1268
        %v1270 = vrot.slane %v979, 3
        %v1271 = vrot.slane %v981, 4
        %v1272 = vor.u32 %v1270, %v1271
        %v1273 = vrot.slane %v990, 3
        %v1274 = vrot.slane %v986, 4
        %v1275 = vor.u32 %v1273, %v1274
        %v1276 = vsel %vm1064, %v1272, %v1275
        %v1278 = vshrl.u32 %v989, 16
        %v1280 = vrot.slane %v1278, 3
        %v1281 = vshll.u32 %v989, 16
        %v1283 = vrot.slane %v1281, 4
        %v1284 = vor.u32 %v1280, %v1283
        %v1286 = vshrl.u32 %v992, 16
        %v1288 = vrot.slane %v1286, 3
        %v1289 = vshll.u32 %v992, 16
        %v1291 = vrot.slane %v1289, 4
        %v1292 = vor.u32 %v1288, %v1291
        %v1293 = vsel %vm1064, %v1284, %v1292
        %v1295 = vshrl.u32 %v1057, 16
        %v1297 = vrot.slane %v1295, 3
        %v1298 = vshll.u32 %v1057, 16
        %v1300 = vrot.slane %v1298, 4
        %v1301 = vor.u32 %v1297, %v1300
        %v1303 = vshrl.u32 %v1056, 16
        %v1305 = vrot.slane %v1303, 3
        %v1306 = vshll.u32 %v1056, 16
        %v1308 = vrot.slane %v1306, 4
        %v1309 = vor.u32 %v1305, %v1308
        %v1310 = vsel %vm1064, %v1301, %v1309
        %v1311 = vrot.slane %v994, 3
        %v1312 = vrot.slane %v996, 4
        %v1313 = vor.u32 %v1311, %v1312
        %v1314 = vrot.slane %v1005, 3
        %v1315 = vrot.slane %v1001, 4
        %v1316 = vor.u32 %v1314, %v1315
        %v1317 = vsel %vm1064, %v1313, %v1316
        %v1319 = vshrl.u32 %v1004, 16
        %v1321 = vrot.slane %v1319, 3
        %v1322 = vshll.u32 %v1004, 16
        %v1324 = vrot.slane %v1322, 4
        %v1325 = vor.u32 %v1321, %v1324
        %v1327 = vshrl.u32 %v1007, 16
        %v1329 = vrot.slane %v1327, 3
        %v1330 = vshll.u32 %v1007, 16
        %v1332 = vrot.slane %v1330, 4
        %v1333 = vor.u32 %v1329, %v1332
        %v1334 = vsel %vm1064, %v1325, %v1333
        %v1336 = vshrl.u32 %v1060, 16
        %v1338 = vrot.slane %v1336, 3
        %v1339 = vshll.u32 %v1060, 16
        %v1341 = vrot.slane %v1339, 4
        %v1342 = vor.u32 %v1338, %v1341
        %v1344 = vshrl.u32 %v1059, 16
        %v1346 = vrot.slane %v1344, 3
        %v1347 = vshll.u32 %v1059, 16
        %v1349 = vrot.slane %v1347, 4
        %v1350 = vor.u32 %v1346, %v1349
        %v1351 = vsel %vm1064, %v1342, %v1350
        %v1352 = vrot.slane %v1009, 3
        %v1353 = vrot.slane %v1011, 4
        %v1354 = vor.u32 %v1352, %v1353
        %v1355 = vrot.slane %v1020, 3
        %v1356 = vrot.slane %v1016, 4
        %v1357 = vor.u32 %v1355, %v1356
        %v1358 = vsel %vm1064, %v1354, %v1357
        %v1360 = vshrl.u32 %v1019, 16
        %v1362 = vrot.slane %v1360, 3
        %v1363 = vshll.u32 %v1019, 16
        %v1365 = vrot.slane %v1363, 4
        %v1366 = vor.u32 %v1362, %v1365
        %v1368 = vshrl.u32 %v1022, 16
        %v1370 = vrot.slane %v1368, 3
        %v1371 = vshll.u32 %v1022, 16
        %v1373 = vrot.slane %v1371, 4
        %v1374 = vor.u32 %v1370, %v1373
        %v1375 = vsel %vm1064, %v1366, %v1374
        %v1377 = vshrl.u32 %v1063, 16
        %v1379 = vrot.slane %v1377, 3
        %v1380 = vshll.u32 %v1063, 16
        %v1382 = vrot.slane %v1380, 4
        %v1383 = vor.u32 %v1379, %v1382
        %v1385 = vshrl.u32 %v1062, 16
        %v1387 = vrot.slane %v1385, 3
        %v1388 = vshll.u32 %v1062, 16
        %v1390 = vrot.slane %v1388, 4
        %v1391 = vor.u32 %v1387, %v1390
        %v1392 = vsel %vm1064, %v1383, %v1391
        %v1417 = vld [vmem:[#allocation11] sm:$0xf]
        %v1418 = vld [vmem:[#allocation11 + $0x4] sm:$0xf]
        %v1419 = vld [vmem:[#allocation11 + $0x8] sm:$0xf]
        %v1420 = vld [vmem:[#allocation11 + $0xc] sm:$0xf]
        %v1421 = vld [vmem:[#allocation11 + $0x10] sm:$0xf]
        %v1422 = vld [vmem:[#allocation11 + $0x14] sm:$0xf]
        %v1423 = vld [vmem:[#allocation11 + $0x18] sm:$0xf]
        %v1424 = vld [vmem:[#allocation11 + $0x1c] sm:$0xf]
        %v1425 = vld [vmem:[#allocation11 + $0x20] sm:$0xf]
        %v1426 = vld [vmem:[#allocation11 + $0x24] sm:$0xf]
        %v1427 = vld [vmem:[#allocation11 + $0x28] sm:$0xf]
        %v1428 = vld [vmem:[#allocation11 + $0x2c] sm:$0xf]
        %v1429 = vld [vmem:[#allocation11 + $0x30] sm:$0xf]
        %v1430 = vld [vmem:[#allocation11 + $0x34] sm:$0xf]
        %v1431 = vld [vmem:[#allocation11 + $0x38] sm:$0xf]
        %v1432 = vld [vmem:[#allocation11 + $0x3c] sm:$0xf]
        %v1433 = vld [vmem:[#allocation11 + $0x40] sm:$0xf]
        %v1434 = vld [vmem:[#allocation11 + $0x44] sm:$0xf]
        %v1435 = vld [vmem:[#allocation11 + $0x48] sm:$0xf]
        %v1436 = vld [vmem:[#allocation11 + $0x4c] sm:$0xf]
        %v1437 = vld [vmem:[#allocation11 + $0x50] sm:$0xf]
        %v1438 = vld [vmem:[#allocation11 + $0x54] sm:$0xf]
        %v1439 = vld [vmem:[#allocation11 + $0x58] sm:$0xf]
        %v1440 = vld [vmem:[#allocation11 + $0x5c] sm:$0xf]
        %v1441 = vld [vmem:[#allocation11 + $0x60] sm:$0xf]
        %v1442 = vld [vmem:[#allocation11 + $0x64] sm:$0xf]
        %v1443 = vld [vmem:[#allocation11 + $0x68] sm:$0xf]
        %v1444 = vld [vmem:[#allocation11 + $0x6c] sm:$0xf]
        %v1445 = vld [vmem:[#allocation11 + $0x70] sm:$0xf]
        %v1446 = vld [vmem:[#allocation11 + $0x74] sm:$0xf]
        %v1447 = vld [vmem:[#allocation11 + $0x78] sm:$0xf]
        %v1448 = vld [vmem:[#allocation11 + $0x7c] sm:$0xf]
        %v1449 = vld [vmem:[#allocation11 + $0x80] sm:$0xf]
        %v1450 = vld [vmem:[#allocation11 + $0x84] sm:$0xf]
        %v1451 = vld [vmem:[#allocation11 + $0x88] sm:$0xf]
        %v1452 = vld [vmem:[#allocation11 + $0x8c] sm:$0xf]
        %v1453 = vld [vmem:[#allocation11 + $0x90] sm:$0xf]
        %v1454 = vld [vmem:[#allocation11 + $0x94] sm:$0xf]
        %v1455 = vld [vmem:[#allocation11 + $0x98] sm:$0xf]
        %v1456 = vld [vmem:[#allocation11 + $0x9c] sm:$0xf]
        %v1457 = vld [vmem:[#allocation11 + $0xa0] sm:$0xf]
        %v1458 = vld [vmem:[#allocation11 + $0xa4] sm:$0xf]
        %v1459 = vld [vmem:[#allocation11 + $0xa8] sm:$0xf]
        %v1460 = vld [vmem:[#allocation11 + $0xac] sm:$0xf]
        %v1461 = vld [vmem:[#allocation11 + $0xb0] sm:$0xf]
        %v1462 = vld [vmem:[#allocation11 + $0xb4] sm:$0xf]
        %v1463 = vld [vmem:[#allocation11 + $0xb8] sm:$0xf]
        %v1464 = vld [vmem:[#allocation11 + $0xbc] sm:$0xf]
        %v1465 = vld [vmem:[%s867] sm:$0xff]
        %v1466 = vld [vmem:[%s867 + $0x8] sm:$0xff]
        %v1467 = vld [vmem:[%s867 + $0x10] sm:$0xff]
        %v1468 = vld [vmem:[%s867 + $0x18] sm:$0xff]
        %v1469 = vld [vmem:[%s867 + $0x20] sm:$0xff]
        %v1470 = vld [vmem:[%s867 + $0x28] sm:$0xff]
        %v1471 = vld [vmem:[%s867 + $0x30] sm:$0xff]
        %v1472 = vld [vmem:[%s867 + $0x38] sm:$0xff]
        %v1473 = vld [vmem:[%s867 + $0x40] sm:$0xff]
        %v1474 = vld [vmem:[%s867 + $0x48] sm:$0xff]
        %v1475 = vld [vmem:[%s867 + $0x50] sm:$0xff]
        %v1476 = vld [vmem:[%s867 + $0x58] sm:$0xff]
        %v1477 = vld [vmem:[%s867 + $0x60] sm:$0xff]
        %v1478 = vld [vmem:[%s867 + $0x68] sm:$0xff]
        %v1479 = vld [vmem:[%s867 + $0x70] sm:$0xff]
        %v1480 = vld [vmem:[%s867 + $0x78] sm:$0xff]
        %v1482 = vshrl.u32 %v1465, 16
        %v1484 = vshll.u32 %v1465, 16
        %v1486 = vrot.slane %v1484, 1
        %v1487 = vor.u32 %v1482, %v1486
        %v1489 = vshll.u32 %v1466, 16
        %v1491 = vrot.slane %v1489, 1
        %v1492 = vsel %vm902, %v1487, %v1491
        %v1493 = vshrl.u32 %v1466, 16
        %v1495 = vor.u32 %v1493, %v1491
        %v1497 = vshrl.u32 %v1467, 16
        %v1499 = vshll.u32 %v1467, 16
        %v1501 = vrot.slane %v1499, 1
        %v1502 = vor.u32 %v1497, %v1501
        %v1504 = vshll.u32 %v1468, 16
        %v1506 = vrot.slane %v1504, 1
        %v1507 = vsel %vm902, %v1502, %v1506
        %v1508 = vshrl.u32 %v1468, 16
        %v1510 = vor.u32 %v1508, %v1506
        %v1512 = vshrl.u32 %v1469, 16
        %v1514 = vshll.u32 %v1469, 16
        %v1516 = vrot.slane %v1514, 1
        %v1517 = vor.u32 %v1512, %v1516
        %v1519 = vshll.u32 %v1470, 16
        %v1521 = vrot.slane %v1519, 1
        %v1522 = vsel %vm902, %v1517, %v1521
        %v1523 = vshrl.u32 %v1470, 16
        %v1525 = vor.u32 %v1523, %v1521
        %v1527 = vshrl.u32 %v1471, 16
        %v1529 = vshll.u32 %v1471, 16
        %v1531 = vrot.slane %v1529, 1
        %v1532 = vor.u32 %v1527, %v1531
        %v1534 = vshll.u32 %v1472, 16
        %v1536 = vrot.slane %v1534, 1
        %v1537 = vsel %vm902, %v1532, %v1536
        %v1538 = vshrl.u32 %v1472, 16
        %v1540 = vor.u32 %v1538, %v1536
        %v1542 = vshrl.u32 %v1473, 16
        %v1544 = vshll.u32 %v1473, 16
        %v1546 = vrot.slane %v1544, 1
        %v1547 = vor.u32 %v1542, %v1546
        %v1549 = vshll.u32 %v1474, 16
        %v1551 = vrot.slane %v1549, 1
        %v1552 = vsel %vm902, %v1547, %v1551
        %v1553 = vshrl.u32 %v1474, 16
        %v1555 = vor.u32 %v1553, %v1551
        %v1557 = vshrl.u32 %v1475, 16
        %v1559 = vshll.u32 %v1475, 16
        %v1561 = vrot.slane %v1559, 1
        %v1562 = vor.u32 %v1557, %v1561
        %v1564 = vshll.u32 %v1476, 16
        %v1566 = vrot.slane %v1564, 1
        %v1567 = vsel %vm902, %v1562, %v1566
        %v1568 = vshrl.u32 %v1476, 16
        %v1570 = vor.u32 %v1568, %v1566
        %v1572 = vshrl.u32 %v1477, 16
        %v1574 = vshll.u32 %v1477, 16
        %v1576 = vrot.slane %v1574, 1
        %v1577 = vor.u32 %v1572, %v1576
        %v1579 = vshll.u32 %v1478, 16
        %v1581 = vrot.slane %v1579, 1
        %v1582 = vsel %vm902, %v1577, %v1581
        %v1583 = vshrl.u32 %v1478, 16
        %v1585 = vor.u32 %v1583, %v1581
        %v1587 = vshrl.u32 %v1479, 16
        %v1589 = vshll.u32 %v1479, 16
        %v1591 = vrot.slane %v1589, 1
        %v1592 = vor.u32 %v1587, %v1591
        %v1594 = vshll.u32 %v1480, 16
        %v1596 = vrot.slane %v1594, 1
        %v1597 = vsel %vm902, %v1592, %v1596
        %v1598 = vshrl.u32 %v1480, 16
        %v1600 = vor.u32 %v1598, %v1596
        %v1617 = vrot.slane %v1465, 1
        %v1618 = vrot.slane %v1466, 1
        %v1619 = vsel %vm1039, %v1617, %v1618
        %v1620 = vrot.slane %v1467, 1
        %v1621 = vrot.slane %v1468, 1
        %v1622 = vsel %vm1039, %v1620, %v1621
        %v1623 = vrot.slane %v1469, 1
        %v1624 = vrot.slane %v1470, 1
        %v1625 = vsel %vm1039, %v1623, %v1624
        %v1626 = vrot.slane %v1471, 1
        %v1627 = vrot.slane %v1472, 1
        %v1628 = vsel %vm1039, %v1626, %v1627
        %v1629 = vrot.slane %v1473, 1
        %v1630 = vrot.slane %v1474, 1
        %v1631 = vsel %vm1039, %v1629, %v1630
        %v1632 = vrot.slane %v1475, 1
        %v1633 = vrot.slane %v1476, 1
        %v1634 = vsel %vm1039, %v1632, %v1633
        %v1635 = vrot.slane %v1477, 1
        %v1636 = vrot.slane %v1478, 1
        %v1637 = vsel %vm1039, %v1635, %v1636
        %v1638 = vrot.slane %v1479, 1
        %v1639 = vrot.slane %v1480, 1
        %v1640 = vsel %vm1039, %v1638, %v1639
        %v1641 = vrot.slane %v1482, 3
        %v1642 = vrot.slane %v1484, 4
        %v1643 = vor.u32 %v1641, %v1642
        %v1644 = vrot.slane %v1493, 3
        %v1645 = vrot.slane %v1489, 4
        %v1646 = vor.u32 %v1644, %v1645
        %v1647 = vsel %vm1064, %v1643, %v1646
        %v1649 = vshrl.u32 %v1492, 16
        %v1651 = vrot.slane %v1649, 3
        %v1652 = vshll.u32 %v1492, 16
        %v1654 = vrot.slane %v1652, 4
        %v1655 = vor.u32 %v1651, %v1654
        %v1657 = vshrl.u32 %v1495, 16
        %v1659 = vrot.slane %v1657, 3
        %v1660 = vshll.u32 %v1495, 16
        %v1662 = vrot.slane %v1660, 4
        %v1663 = vor.u32 %v1659, %v1662
        %v1664 = vsel %vm1064, %v1655, %v1663
        %v1666 = vshrl.u32 %v1619, 16
        %v1668 = vrot.slane %v1666, 3
        %v1669 = vshll.u32 %v1619, 16
        %v1671 = vrot.slane %v1669, 4
        %v1672 = vor.u32 %v1668, %v1671
        %v1674 = vshrl.u32 %v1618, 16
        %v1676 = vrot.slane %v1674, 3
        %v1677 = vshll.u32 %v1618, 16
        %v1679 = vrot.slane %v1677, 4
        %v1680 = vor.u32 %v1676, %v1679
        %v1681 = vsel %vm1064, %v1672, %v1680
        %v1682 = vrot.slane %v1497, 3
        %v1683 = vrot.slane %v1499, 4
        %v1684 = vor.u32 %v1682, %v1683
        %v1685 = vrot.slane %v1508, 3
        %v1686 = vrot.slane %v1504, 4
        %v1687 = vor.u32 %v1685, %v1686
        %v1688 = vsel %vm1064, %v1684, %v1687
        %v1690 = vshrl.u32 %v1507, 16
        %v1692 = vrot.slane %v1690, 3
        %v1693 = vshll.u32 %v1507, 16
        %v1695 = vrot.slane %v1693, 4
        %v1696 = vor.u32 %v1692, %v1695
        %v1698 = vshrl.u32 %v1510, 16
        %v1700 = vrot.slane %v1698, 3
        %v1701 = vshll.u32 %v1510, 16
        %v1703 = vrot.slane %v1701, 4
        %v1704 = vor.u32 %v1700, %v1703
        %v1705 = vsel %vm1064, %v1696, %v1704
        %v1707 = vshrl.u32 %v1622, 16
        %v1709 = vrot.slane %v1707, 3
        %v1710 = vshll.u32 %v1622, 16
        %v1712 = vrot.slane %v1710, 4
        %v1713 = vor.u32 %v1709, %v1712
        %v1715 = vshrl.u32 %v1621, 16
        %v1717 = vrot.slane %v1715, 3
        %v1718 = vshll.u32 %v1621, 16
        %v1720 = vrot.slane %v1718, 4
        %v1721 = vor.u32 %v1717, %v1720
        %v1722 = vsel %vm1064, %v1713, %v1721
        %v1723 = vrot.slane %v1512, 3
        %v1724 = vrot.slane %v1514, 4
        %v1725 = vor.u32 %v1723, %v1724
        %v1726 = vrot.slane %v1523, 3
        %v1727 = vrot.slane %v1519, 4
        %v1728 = vor.u32 %v1726, %v1727
        %v1729 = vsel %vm1064, %v1725, %v1728
        %v1731 = vshrl.u32 %v1522, 16
        %v1733 = vrot.slane %v1731, 3
        %v1734 = vshll.u32 %v1522, 16
        %v1736 = vrot.slane %v1734, 4
        %v1737 = vor.u32 %v1733, %v1736
        %v1739 = vshrl.u32 %v1525, 16
        %v1741 = vrot.slane %v1739, 3
        %v1742 = vshll.u32 %v1525, 16
        %v1744 = vrot.slane %v1742, 4
        %v1745 = vor.u32 %v1741, %v1744
        %v1746 = vsel %vm1064, %v1737, %v1745
        %v1748 = vshrl.u32 %v1625, 16
        %v1750 = vrot.slane %v1748, 3
        %v1751 = vshll.u32 %v1625, 16
        %v1753 = vrot.slane %v1751, 4
        %v1754 = vor.u32 %v1750, %v1753
        %v1756 = vshrl.u32 %v1624, 16
        %v1758 = vrot.slane %v1756, 3
        %v1759 = vshll.u32 %v1624, 16
        %v1761 = vrot.slane %v1759, 4
        %v1762 = vor.u32 %v1758, %v1761
        %v1763 = vsel %vm1064, %v1754, %v1762
        %v1764 = vrot.slane %v1527, 3
        %v1765 = vrot.slane %v1529, 4
        %v1766 = vor.u32 %v1764, %v1765
        %v1767 = vrot.slane %v1538, 3
        %v1768 = vrot.slane %v1534, 4
        %v1769 = vor.u32 %v1767, %v1768
        %v1770 = vsel %vm1064, %v1766, %v1769
        %v1772 = vshrl.u32 %v1537, 16
        %v1774 = vrot.slane %v1772, 3
        %v1775 = vshll.u32 %v1537, 16
        %v1777 = vrot.slane %v1775, 4
        %v1778 = vor.u32 %v1774, %v1777
        %v1780 = vshrl.u32 %v1540, 16
        %v1782 = vrot.slane %v1780, 3
        %v1783 = vshll.u32 %v1540, 16
        %v1785 = vrot.slane %v1783, 4
        %v1786 = vor.u32 %v1782, %v1785
        %v1787 = vsel %vm1064, %v1778, %v1786
        %v1789 = vshrl.u32 %v1628, 16
        %v1791 = vrot.slane %v1789, 3
        %v1792 = vshll.u32 %v1628, 16
        %v1794 = vrot.slane %v1792, 4
        %v1795 = vor.u32 %v1791, %v1794
        %v1797 = vshrl.u32 %v1627, 16
        %v1799 = vrot.slane %v1797, 3
        %v1800 = vshll.u32 %v1627, 16
        %v1802 = vrot.slane %v1800, 4
        %v1803 = vor.u32 %v1799, %v1802
        %v1804 = vsel %vm1064, %v1795, %v1803
        %v1805 = vrot.slane %v1542, 3
        %v1806 = vrot.slane %v1544, 4
        %v1807 = vor.u32 %v1805, %v1806
        %v1808 = vrot.slane %v1553, 3
        %v1809 = vrot.slane %v1549, 4
        %v1810 = vor.u32 %v1808, %v1809
        %v1811 = vsel %vm1064, %v1807, %v1810
        %v1813 = vshrl.u32 %v1552, 16
        %v1815 = vrot.slane %v1813, 3
        %v1816 = vshll.u32 %v1552, 16
        %v1818 = vrot.slane %v1816, 4
        %v1819 = vor.u32 %v1815, %v1818
        %v1821 = vshrl.u32 %v1555, 16
        %v1823 = vrot.slane %v1821, 3
        %v1824 = vshll.u32 %v1555, 16
        %v1826 = vrot.slane %v1824, 4
        %v1827 = vor.u32 %v1823, %v1826
        %v1828 = vsel %vm1064, %v1819, %v1827
        %v1830 = vshrl.u32 %v1631, 16
        %v1832 = vrot.slane %v1830, 3
        %v1833 = vshll.u32 %v1631, 16
        %v1835 = vrot.slane %v1833, 4
        %v1836 = vor.u32 %v1832, %v1835
        %v1838 = vshrl.u32 %v1630, 16
        %v1840 = vrot.slane %v1838, 3
        %v1841 = vshll.u32 %v1630, 16
        %v1843 = vrot.slane %v1841, 4
        %v1844 = vor.u32 %v1840, %v1843
        %v1845 = vsel %vm1064, %v1836, %v1844
        %v1846 = vrot.slane %v1557, 3
        %v1847 = vrot.slane %v1559, 4
        %v1848 = vor.u32 %v1846, %v1847
        %v1849 = vrot.slane %v1568, 3
        %v1850 = vrot.slane %v1564, 4
        %v1851 = vor.u32 %v1849, %v1850
        %v1852 = vsel %vm1064, %v1848, %v1851
        %v1854 = vshrl.u32 %v1567, 16
        %v1856 = vrot.slane %v1854, 3
        %v1857 = vshll.u32 %v1567, 16
        %v1859 = vrot.slane %v1857, 4
        %v1860 = vor.u32 %v1856, %v1859
        %v1862 = vshrl.u32 %v1570, 16
        %v1864 = vrot.slane %v1862, 3
        %v1865 = vshll.u32 %v1570, 16
        %v1867 = vrot.slane %v1865, 4
        %v1868 = vor.u32 %v1864, %v1867
        %v1869 = vsel %vm1064, %v1860, %v1868
        %v1871 = vshrl.u32 %v1634, 16
        %v1873 = vrot.slane %v1871, 3
        %v1874 = vshll.u32 %v1634, 16
        %v1876 = vrot.slane %v1874, 4
        %v1877 = vor.u32 %v1873, %v1876
        %v1879 = vshrl.u32 %v1633, 16
        %v1881 = vrot.slane %v1879, 3
        %v1882 = vshll.u32 %v1633, 16
        %v1884 = vrot.slane %v1882, 4
        %v1885 = vor.u32 %v1881, %v1884
        %v1886 = vsel %vm1064, %v1877, %v1885
        %v1887 = vrot.slane %v1572, 3
        %v1888 = vrot.slane %v1574, 4
        %v1889 = vor.u32 %v1887, %v1888
        %v1890 = vrot.slane %v1583, 3
        %v1891 = vrot.slane %v1579, 4
        %v1892 = vor.u32 %v1890, %v1891
        %v1893 = vsel %vm1064, %v1889, %v1892
        %v1895 = vshrl.u32 %v1582, 16
        %v1897 = vrot.slane %v1895, 3
        %v1898 = vshll.u32 %v1582, 16
        %v1900 = vrot.slane %v1898, 4
        %v1901 = vor.u32 %v1897, %v1900
        %v1903 = vshrl.u32 %v1585, 16
        %v1905 = vrot.slane %v1903, 3
        %v1906 = vshll.u32 %v1585, 16
        %v1908 = vrot.slane %v1906, 4
        %v1909 = vor.u32 %v1905, %v1908
        %v1910 = vsel %vm1064, %v1901, %v1909
        %v1912 = vshrl.u32 %v1637, 16
        %v1914 = vrot.slane %v1912, 3
        %v1915 = vshll.u32 %v1637, 16
        %v1917 = vrot.slane %v1915, 4
        %v1918 = vor.u32 %v1914, %v1917
        %v1920 = vshrl.u32 %v1636, 16
        %v1922 = vrot.slane %v1920, 3
        %v1923 = vshll.u32 %v1636, 16
        %v1925 = vrot.slane %v1923, 4
        %v1926 = vor.u32 %v1922, %v1925
        %v1927 = vsel %vm1064, %v1918, %v1926
        %v1928 = vrot.slane %v1587, 3
        %v1929 = vrot.slane %v1589, 4
        %v1930 = vor.u32 %v1928, %v1929
        %v1931 = vrot.slane %v1598, 3
        %v1932 = vrot.slane %v1594, 4
        %v1933 = vor.u32 %v1931, %v1932
        %v1934 = vsel %vm1064, %v1930, %v1933
        %v1936 = vshrl.u32 %v1597, 16
        %v1938 = vrot.slane %v1936, 3
        %v1939 = vshll.u32 %v1597, 16
        %v1941 = vrot.slane %v1939, 4
        %v1942 = vor.u32 %v1938, %v1941
        %v1944 = vshrl.u32 %v1600, 16
        %v1946 = vrot.slane %v1944, 3
        %v1947 = vshll.u32 %v1600, 16
        %v1949 = vrot.slane %v1947, 4
        %v1950 = vor.u32 %v1946, %v1949
        %v1951 = vsel %vm1064, %v1942, %v1950
        %v1953 = vshrl.u32 %v1640, 16
        %v1955 = vrot.slane %v1953, 3
        %v1956 = vshll.u32 %v1640, 16
        %v1958 = vrot.slane %v1956, 4
        %v1959 = vor.u32 %v1955, %v1958
        %v1961 = vshrl.u32 %v1639, 16
        %v1963 = vrot.slane %v1961, 3
        %v1964 = vshll.u32 %v1639, 16
        %v1966 = vrot.slane %v1964, 4
        %v1967 = vor.u32 %v1963, %v1966
        %v1968 = vsel %vm1064, %v1959, %v1967
        %s1993 = scalar_lea.vmem [#allocation11], 192
        %v1994 = vld [vmem:[%s1993] sm:$0xf]
        %v1995 = vld [vmem:[%s1993 + $0x4] sm:$0xf]
        %v1996 = vld [vmem:[%s1993 + $0x8] sm:$0xf]
        %v1997 = vld [vmem:[%s1993 + $0xc] sm:$0xf]
        %v1998 = vld [vmem:[%s1993 + $0x10] sm:$0xf]
        %v1999 = vld [vmem:[%s1993 + $0x14] sm:$0xf]
        %v2000 = vld [vmem:[%s1993 + $0x18] sm:$0xf]
        %v2001 = vld [vmem:[%s1993 + $0x1c] sm:$0xf]
        %v2002 = vld [vmem:[%s1993 + $0x20] sm:$0xf]
        %v2003 = vld [vmem:[%s1993 + $0x24] sm:$0xf]
        %v2004 = vld [vmem:[%s1993 + $0x28] sm:$0xf]
        %v2005 = vld [vmem:[%s1993 + $0x2c] sm:$0xf]
        %v2006 = vld [vmem:[%s1993 + $0x30] sm:$0xf]
        %v2007 = vld [vmem:[%s1993 + $0x34] sm:$0xf]
        %v2008 = vld [vmem:[%s1993 + $0x38] sm:$0xf]
        %v2009 = vld [vmem:[%s1993 + $0x3c] sm:$0xf]
        %v2010 = vld [vmem:[%s1993 + $0x40] sm:$0xf]
        %v2011 = vld [vmem:[%s1993 + $0x44] sm:$0xf]
        %v2012 = vld [vmem:[%s1993 + $0x48] sm:$0xf]
        %v2013 = vld [vmem:[%s1993 + $0x4c] sm:$0xf]
        %v2014 = vld [vmem:[%s1993 + $0x50] sm:$0xf]
        %v2015 = vld [vmem:[%s1993 + $0x54] sm:$0xf]
        %v2016 = vld [vmem:[%s1993 + $0x58] sm:$0xf]
        %v2017 = vld [vmem:[%s1993 + $0x5c] sm:$0xf]
        %v2018 = vld [vmem:[%s1993 + $0x60] sm:$0xf]
        %v2019 = vld [vmem:[%s1993 + $0x64] sm:$0xf]
        %v2020 = vld [vmem:[%s1993 + $0x68] sm:$0xf]
        %v2021 = vld [vmem:[%s1993 + $0x6c] sm:$0xf]
        %v2022 = vld [vmem:[%s1993 + $0x70] sm:$0xf]
        %v2023 = vld [vmem:[%s1993 + $0x74] sm:$0xf]
        %v2024 = vld [vmem:[%s1993 + $0x78] sm:$0xf]
        %v2025 = vld [vmem:[%s1993 + $0x7c] sm:$0xf]
        %v2026 = vld [vmem:[%s1993 + $0x80] sm:$0xf]
        %v2027 = vld [vmem:[%s1993 + $0x84] sm:$0xf]
        %v2028 = vld [vmem:[%s1993 + $0x88] sm:$0xf]
        %v2029 = vld [vmem:[%s1993 + $0x8c] sm:$0xf]
        %v2030 = vld [vmem:[%s1993 + $0x90] sm:$0xf]
        %v2031 = vld [vmem:[%s1993 + $0x94] sm:$0xf]
        %v2032 = vld [vmem:[%s1993 + $0x98] sm:$0xf]
        %v2033 = vld [vmem:[%s1993 + $0x9c] sm:$0xf]
        %v2034 = vld [vmem:[%s1993 + $0xa0] sm:$0xf]
        %v2035 = vld [vmem:[%s1993 + $0xa4] sm:$0xf]
        %v2036 = vld [vmem:[%s1993 + $0xa8] sm:$0xf]
        %v2037 = vld [vmem:[%s1993 + $0xac] sm:$0xf]
        %v2038 = vld [vmem:[%s1993 + $0xb0] sm:$0xf]
        %v2039 = vld [vmem:[%s1993 + $0xb4] sm:$0xf]
        %v2040 = vld [vmem:[%s1993 + $0xb8] sm:$0xf]
        %v2041 = vld [vmem:[%s1993 + $0xbc] sm:$0xf]
        %v2090 = vunpack.c.l.b16 %v1994
        %v2091 = vunpack.c.l.b16 %v1995
        %v2092 = vunpack.c.l.b16 %v1996
        %v2093 = vunpack.c.l.b16 %v1997
        %v2094 = vunpack.c.l.b16 %v1998
        %v2095 = vunpack.c.l.b16 %v1999
        %v2096 = vunpack.c.l.b16 %v2000
        %v2097 = vunpack.c.l.b16 %v2001
        %v2098 = vunpack.c.l.b16 %v2002
        %v2099 = vunpack.c.l.b16 %v2003
        %v2100 = vunpack.c.l.b16 %v2004
        %v2101 = vunpack.c.l.b16 %v2005
        %v2102 = vunpack.c.l.b16 %v2006
        %v2103 = vunpack.c.l.b16 %v2007
        %v2104 = vunpack.c.l.b16 %v2008
        %v2105 = vunpack.c.l.b16 %v2009
        %v2106 = vunpack.c.l.b16 %v2010
        %v2107 = vunpack.c.l.b16 %v2011
        %v2108 = vunpack.c.l.b16 %v2012
        %v2109 = vunpack.c.l.b16 %v2013
        %v2110 = vunpack.c.l.b16 %v2014
        %v2111 = vunpack.c.l.b16 %v2015
        %v2112 = vunpack.c.l.b16 %v2016
        %v2113 = vunpack.c.l.b16 %v2017
        %v2114 = vunpack.c.l.b16 %v2018
        %v2115 = vunpack.c.l.b16 %v2019
        %v2116 = vunpack.c.l.b16 %v2020
        %v2117 = vunpack.c.l.b16 %v2021
        %v2118 = vunpack.c.l.b16 %v2022
        %v2119 = vunpack.c.l.b16 %v2023
        %v2120 = vunpack.c.l.b16 %v2024
        %v2121 = vunpack.c.l.b16 %v2025
        %v2122 = vunpack.c.l.b16 %v2026
        %v2123 = vunpack.c.l.b16 %v2027
        %v2124 = vunpack.c.l.b16 %v2028
        %v2125 = vunpack.c.l.b16 %v2029
        %v2126 = vunpack.c.l.b16 %v2030
        %v2127 = vunpack.c.l.b16 %v2031
        %v2128 = vunpack.c.l.b16 %v2032
        %v2129 = vunpack.c.l.b16 %v2033
        %v2130 = vunpack.c.l.b16 %v2034
        %v2131 = vunpack.c.l.b16 %v2035
        %v2132 = vunpack.c.l.b16 %v2036
        %v2133 = vunpack.c.l.b16 %v2037
        %v2134 = vunpack.c.l.b16 %v2038
        %v2135 = vunpack.c.l.b16 %v2039
        %v2136 = vunpack.c.l.b16 %v2040
        %v2137 = vunpack.c.l.b16 %v2041
        %v2138 = vpack.c.b16 %v2091, %v2090
        %v2139 = vpack.c.b16 %v2093, %v2092
        %v2140 = vpack.c.b16 %v2095, %v2094
        %v2141 = vpack.c.b16 %v2097, %v2096
        %v2142 = vpack.c.b16 %v2099, %v2098
        %v2143 = vpack.c.b16 %v2101, %v2100
        %v2144 = vpack.c.b16 %v2103, %v2102
        %v2145 = vpack.c.b16 %v2105, %v2104
        %v2146 = vpack.c.b16 %v2107, %v2106
        %v2147 = vpack.c.b16 %v2109, %v2108
        %v2148 = vpack.c.b16 %v2111, %v2110
        %v2149 = vpack.c.b16 %v2113, %v2112
        %v2150 = vpack.c.b16 %v2115, %v2114
        %v2151 = vpack.c.b16 %v2117, %v2116
        %v2152 = vpack.c.b16 %v2119, %v2118
        %v2153 = vpack.c.b16 %v2121, %v2120
        %v2154 = vpack.c.b16 %v2123, %v2122
        %v2155 = vpack.c.b16 %v2125, %v2124
        %v2156 = vpack.c.b16 %v2127, %v2126
        %v2157 = vpack.c.b16 %v2129, %v2128
        %v2158 = vpack.c.b16 %v2131, %v2130
        %v2159 = vpack.c.b16 %v2133, %v2132
        %v2160 = vpack.c.b16 %v2135, %v2134
        %v2161 = vpack.c.b16 %v2137, %v2136
        %2186 = vmatprep.subr.bf16.mxu0 0
        %2187 = vmatpush1.bf16.msra.mxu0 %v2138
        %2188 = vmatprep.subr.bf16.mxu0 0
        %2189 = vmatpush1.bf16.msra.mxu0 %v2139
        %2190 = vmatprep.subr.bf16.mxu0 0
        %2191 = vmatpush1.bf16.msra.mxu0 %v2140
        %2192 = vmatprep.subr.bf16.mxu0 0
        %2193 = vmatpush1.bf16.msra.mxu0 %v2141
        %2194 = vmatprep.subr.bf16.mxu0 0
        %2195 = vmatpush1.bf16.msra.mxu0 %v2142
        %2196 = vmatprep.subr.bf16.mxu0 0
        %2197 = vmatpush1.bf16.msra.mxu0 %v2143
        %2198 = vmatprep.subr.bf16.mxu0 0
        %2199 = vmatpush1.bf16.msra.mxu0 %v2144
        %2200 = vmatprep.subr.bf16.mxu0 0
        %2201 = vmatpush1.bf16.msra.mxu0 %v2145
        %2202 = vmatprep.subr.bf16.mxu0 0
        %2203 = vmatpush1.bf16.msra.mxu0 %v2146
        %2204 = vmatprep.subr.bf16.mxu0 0
        %2205 = vmatpush1.bf16.msra.mxu0 %v2147
        %2206 = vmatprep.subr.bf16.mxu0 0
        %2207 = vmatpush1.bf16.msra.mxu0 %v2148
        %2208 = vmatprep.subr.bf16.mxu0 0
        %2209 = vmatpush1.bf16.msra.mxu0 %v2149
        %2210 = vmatprep.subr.bf16.mxu0 0
        %2211 = vmatpush1.bf16.msra.mxu0 %v2150
        %2212 = vmatprep.subr.bf16.mxu0 0
        %2213 = vmatpush1.bf16.msra.mxu0 %v2151
        %2214 = vmatprep.subr.bf16.mxu0 0
        %2215 = vmatpush1.bf16.msra.mxu0 %v2152
        %2216 = vmatprep.subr.bf16.mxu0 0
        %2217 = vmatpush1.bf16.msra.mxu0 %v2153
        %2218 = vmatprep.mubr.bf16.mxu0 %v1664
        %2219 = vmatmul.mubr.bf16.gmra.mrb[0].mxu0 %v1647
        %v2220 = vpop.f32.mrb[0].mxu0
        %v2221 = vadd.f32 0.0, %v2220
        %v2222 = vpop.f32.mrb[0].mxu0
        %v2223 = vpop.f32.mrb[0].mxu0
        %v2224 = vadd.f32 0.0, %v2223
        %v2225 = vpop.f32.mrb[0].mxu0
        %2226 = vmatprep.mubr.bf16.mxu0 %v1705
        %2227 = vmatmul.mubr.bf16.gmra.mrb[0].mxu0 %v1688
        %v2228 = vpop.f32.mrb[0].mxu0
        %v2229 = vadd.f32 0.0, %v2228
        %v2230 = vpop.f32.mrb[0].mxu0
        %v2231 = vpop.f32.mrb[0].mxu0
        %v2232 = vadd.f32 0.0, %v2231
        %v2233 = vpop.f32.mrb[0].mxu0
        %2234 = vmatprep.mubr.bf16.mxu0 %v1746
        %2235 = vmatmul.mubr.bf16.gmra.mrb[0].mxu0 %v1729
        %v2236 = vpop.f32.mrb[0].mxu0
        %v2237 = vadd.f32 0.0, %v2236
        %v2238 = vpop.f32.mrb[0].mxu0
        %v2239 = vpop.f32.mrb[0].mxu0
        %v2240 = vadd.f32 0.0, %v2239
        %v2241 = vpop.f32.mrb[0].mxu0
        %2242 = vmatprep.mubr.bf16.mxu0 %v1787
        %2243 = vmatmul.mubr.bf16.gmra.mrb[0].mxu0 %v1770
        %v2244 = vpop.f32.mrb[0].mxu0
        %v2245 = vadd.f32 0.0, %v2244
        %v2246 = vpop.f32.mrb[0].mxu0
        %v2247 = vpop.f32.mrb[0].mxu0
        %v2248 = vadd.f32 0.0, %v2247
        %v2249 = vpop.f32.mrb[0].mxu0
        %2250 = vmatprep.mubr.bf16.mxu0 %v1828
        %2251 = vmatmul.mubr.bf16.gmra.mrb[0].mxu0 %v1811
        %v2252 = vpop.f32.mrb[0].mxu0
        %v2253 = vadd.f32 0.0, %v2252
        %v2254 = vpop.f32.mrb[0].mxu0
        %v2255 = vpop.f32.mrb[0].mxu0
        %v2256 = vadd.f32 0.0, %v2255
        %v2257 = vpop.f32.mrb[0].mxu0
        %2258 = vmatprep.mubr.bf16.mxu0 %v1869
        %2259 = vmatmul.mubr.bf16.gmra.mrb[0].mxu0 %v1852
        %v2260 = vpop.f32.mrb[0].mxu0
        %v2261 = vadd.f32 0.0, %v2260
        %v2262 = vpop.f32.mrb[0].mxu0
        %v2263 = vpop.f32.mrb[0].mxu0
        %v2264 = vadd.f32 0.0, %v2263
        %v2265 = vpop.f32.mrb[0].mxu0
        %2266 = vmatprep.mubr.bf16.mxu0 %v1910
        %2267 = vmatmul.mubr.bf16.gmra.mrb[0].mxu0 %v1893
        %v2268 = vpop.f32.mrb[0].mxu0
        %v2269 = vadd.f32 0.0, %v2268
        %v2270 = vpop.f32.mrb[0].mxu0
        %v2271 = vpop.f32.mrb[0].mxu0
        %v2272 = vadd.f32 0.0, %v2271
        %v2273 = vpop.f32.mrb[0].mxu0
        %2274 = vmatprep.mubr.bf16.mxu0 %v1951
        %2275 = vmatmul.mubr.bf16.gmra.mrb[0].mxu0 %v1934
        %v2276 = vpop.f32.mrb[0].mxu0
        %v2277 = vadd.f32 0.0, %v2276
        %v2278 = vpop.f32.mrb[0].mxu0
        %v2279 = vpop.f32.mrb[0].mxu0
        %v2280 = vadd.f32 0.0, %v2279
        %v2281 = vpop.f32.mrb[0].mxu0
        %2282 = vdwg.mxu0
        %2283 = vmatprep.subr.bf16.mxu0 0
        %2284 = vmatpush1.bf16.msra.mxu0 %v2154
        %2285 = vmatprep.subr.bf16.mxu0 0
        %2286 = vmatpush1.bf16.msra.mxu0 %v2155
        %2287 = vmatprep.subr.bf16.mxu0 0
        %2288 = vmatpush1.bf16.msra.mxu0 %v2156
        %2289 = vmatprep.subr.bf16.mxu0 0
        %2290 = vmatpush1.bf16.msra.mxu0 %v2157
        %2291 = vmatprep.subr.bf16.mxu0 0
        %2292 = vmatpush1.bf16.msra.mxu0 %v2158
        %2293 = vmatprep.subr.bf16.mxu0 0
        %2294 = vmatpush1.bf16.msra.mxu0 %v2159
        %2295 = vmatprep.subr.bf16.mxu0 0
        %2296 = vmatpush1.bf16.msra.mxu0 %v2160
        %2297 = vmatprep.subr.bf16.mxu0 0
        %2298 = vmatpush1.bf16.msra.mxu0 %v2161
        %2299 = vmatprep.subr.bf16.mxu0 0
        %2300 = vmatpush1.bf16.msra.mxu0 0
        %2301 = vmatprep.subr.bf16.mxu0 0
        %2302 = vmatpush1.bf16.msra.mxu0 0
        %2303 = vmatprep.subr.bf16.mxu0 0
        %2304 = vmatpush1.bf16.msra.mxu0 0
        %2305 = vmatprep.subr.bf16.mxu0 0
        %2306 = vmatpush1.bf16.msra.mxu0 0
        %2307 = vmatprep.subr.bf16.mxu0 0
        %2308 = vmatpush1.bf16.msra.mxu0 0
        %2309 = vmatprep.subr.bf16.mxu0 0
        %2310 = vmatpush1.bf16.msra.mxu0 0
        %2311 = vmatprep.subr.bf16.mxu0 0
        %2312 = vmatpush1.bf16.msra.mxu0 0
        %2313 = vmatprep.subr.bf16.mxu0 0
        %2314 = vmatpush1.bf16.msra.mxu0 0
        %2315 = vmatprep.mubr.bf16.mxu0 0
        %2316 = vmatmul.mubr.bf16.gmra.mrb[0].mxu0 %v1681
        %v2317 = vpop.f32.mrb[0].mxu0
        %v2318 = vadd.f32 %v2221, %v2317
        %v2319 = vpop.f32.mrb[0].mxu0
        %v2320 = vpop.f32.mrb[0].mxu0
        %v2321 = vadd.f32 %v2224, %v2320
        %v2322 = vpop.f32.mrb[0].mxu0
        %2323 = vmatprep.mubr.bf16.mxu0 0
        %2324 = vmatmul.mubr.bf16.gmra.mrb[0].mxu0 %v1722
        %v2325 = vpop.f32.mrb[0].mxu0
        %v2326 = vadd.f32 %v2229, %v2325
        %v2327 = vpop.f32.mrb[0].mxu0
        %v2328 = vpop.f32.mrb[0].mxu0
        %v2329 = vadd.f32 %v2232, %v2328
        %v2330 = vpop.f32.mrb[0].mxu0
        %2331 = vmatprep.mubr.bf16.mxu0 0
        %2332 = vmatmul.mubr.bf16.gmra.mrb[0].mxu0 %v1763
        %v2333 = vpop.f32.mrb[0].mxu0
        %v2334 = vadd.f32 %v2237, %v2333
        %v2335 = vpop.f32.mrb[0].mxu0
        %v2336 = vpop.f32.mrb[0].mxu0
        %v2337 = vadd.f32 %v2240, %v2336
        %v2338 = vpop.f32.mrb[0].mxu0
        %2339 = vmatprep.mubr.bf16.mxu0 0
        %2340 = vmatmul.mubr.bf16.gmra.mrb[0].mxu0 %v1804
        %v2341 = vpop.f32.mrb[0].mxu0
        %v2342 = vadd.f32 %v2245, %v2341
        %v2343 = vpop.f32.mrb[0].mxu0
        %v2344 = vpop.f32.mrb[0].mxu0
        %v2345 = vadd.f32 %v2248, %v2344
        %v2346 = vpop.f32.mrb[0].mxu0
        %2347 = vmatprep.mubr.bf16.mxu0 0
        %2348 = vmatmul.mubr.bf16.gmra.mrb[0].mxu0 %v1845
        %v2349 = vpop.f32.mrb[0].mxu0
        %v2350 = vadd.f32 %v2253, %v2349
        %v2351 = vpop.f32.mrb[0].mxu0
        %v2352 = vpop.f32.mrb[0].mxu0
        %v2353 = vadd.f32 %v2256, %v2352
        %v2354 = vpop.f32.mrb[0].mxu0
        %2355 = vmatprep.mubr.bf16.mxu0 0
        %2356 = vmatmul.mubr.bf16.gmra.mrb[0].mxu0 %v1886
        %v2357 = vpop.f32.mrb[0].mxu0
        %v2358 = vadd.f32 %v2261, %v2357
        %v2359 = vpop.f32.mrb[0].mxu0
        %v2360 = vpop.f32.mrb[0].mxu0
        %v2361 = vadd.f32 %v2264, %v2360
        %v2362 = vpop.f32.mrb[0].mxu0
        %2363 = vmatprep.mubr.bf16.mxu0 0
        %2364 = vmatmul.mubr.bf16.gmra.mrb[0].mxu0 %v1927
        %v2365 = vpop.f32.mrb[0].mxu0
        %v2366 = vadd.f32 %v2269, %v2365
        %v2367 = vpop.f32.mrb[0].mxu0
        %v2368 = vpop.f32.mrb[0].mxu0
        %v2369 = vadd.f32 %v2272, %v2368
        %v2370 = vpop.f32.mrb[0].mxu0
        %2371 = vmatprep.mubr.bf16.mxu0 0
        %2372 = vmatmul.mubr.bf16.gmra.mrb[0].mxu0 %v1968
        %v2373 = vpop.f32.mrb[0].mxu0
        %v2374 = vadd.f32 %v2277, %v2373
        %v2375 = vpop.f32.mrb[0].mxu0
        %v2376 = vpop.f32.mrb[0].mxu0
        %v2377 = vadd.f32 %v2280, %v2376
        %v2378 = vpop.f32.mrb[0].mxu0
        %2379 = vdwg.mxu0
        %v2428 = vunpack.c.l.b16 %v1417
        %v2429 = vunpack.c.l.b16 %v1418
        %v2430 = vunpack.c.l.b16 %v1419
        %v2431 = vunpack.c.l.b16 %v1420
        %v2432 = vunpack.c.l.b16 %v1421
        %v2433 = vunpack.c.l.b16 %v1422
        %v2434 = vunpack.c.l.b16 %v1423
        %v2435 = vunpack.c.l.b16 %v1424
        %v2436 = vunpack.c.l.b16 %v1425
        %v2437 = vunpack.c.l.b16 %v1426
        %v2438 = vunpack.c.l.b16 %v1427
        %v2439 = vunpack.c.l.b16 %v1428
        %v2440 = vunpack.c.l.b16 %v1429
        %v2441 = vunpack.c.l.b16 %v1430
        %v2442 = vunpack.c.l.b16 %v1431
        %v2443 = vunpack.c.l.b16 %v1432
        %v2444 = vunpack.c.l.b16 %v1433
        %v2445 = vunpack.c.l.b16 %v1434
        %v2446 = vunpack.c.l.b16 %v1435
        %v2447 = vunpack.c.l.b16 %v1436
        %v2448 = vunpack.c.l.b16 %v1437
        %v2449 = vunpack.c.l.b16 %v1438
        %v2450 = vunpack.c.l.b16 %v1439
        %v2451 = vunpack.c.l.b16 %v1440
        %v2452 = vunpack.c.l.b16 %v1441
        %v2453 = vunpack.c.l.b16 %v1442
        %v2454 = vunpack.c.l.b16 %v1443
        %v2455 = vunpack.c.l.b16 %v1444
        %v2456 = vunpack.c.l.b16 %v1445
        %v2457 = vunpack.c.l.b16 %v1446
        %v2458 = vunpack.c.l.b16 %v1447
        %v2459 = vunpack.c.l.b16 %v1448
        %v2460 = vunpack.c.l.b16 %v1449
        %v2461 = vunpack.c.l.b16 %v1450
        %v2462 = vunpack.c.l.b16 %v1451
        %v2463 = vunpack.c.l.b16 %v1452
        %v2464 = vunpack.c.l.b16 %v1453
        %v2465 = vunpack.c.l.b16 %v1454
        %v2466 = vunpack.c.l.b16 %v1455
        %v2467 = vunpack.c.l.b16 %v1456
        %v2468 = vunpack.c.l.b16 %v1457
        %v2469 = vunpack.c.l.b16 %v1458
        %v2470 = vunpack.c.l.b16 %v1459
        %v2471 = vunpack.c.l.b16 %v1460
        %v2472 = vunpack.c.l.b16 %v1461
        %v2473 = vunpack.c.l.b16 %v1462
        %v2474 = vunpack.c.l.b16 %v1463
        %v2475 = vunpack.c.l.b16 %v1464
        %v2476 = vpack.c.b16 %v2429, %v2428
        %v2477 = vpack.c.b16 %v2431, %v2430
        %v2478 = vpack.c.b16 %v2433, %v2432
        %v2479 = vpack.c.b16 %v2435, %v2434
        %v2480 = vpack.c.b16 %v2437, %v2436
        %v2481 = vpack.c.b16 %v2439, %v2438
        %v2482 = vpack.c.b16 %v2441, %v2440
        %v2483 = vpack.c.b16 %v2443, %v2442
        %v2484 = vpack.c.b16 %v2445, %v2444
        %v2485 = vpack.c.b16 %v2447, %v2446
        %v2486 = vpack.c.b16 %v2449, %v2448
        %v2487 = vpack.c.b16 %v2451, %v2450
        %v2488 = vpack.c.b16 %v2453, %v2452
        %v2489 = vpack.c.b16 %v2455, %v2454
        %v2490 = vpack.c.b16 %v2457, %v2456
        %v2491 = vpack.c.b16 %v2459, %v2458
        %v2492 = vpack.c.b16 %v2461, %v2460
        %v2493 = vpack.c.b16 %v2463, %v2462
        %v2494 = vpack.c.b16 %v2465, %v2464
        %v2495 = vpack.c.b16 %v2467, %v2466
        %v2496 = vpack.c.b16 %v2469, %v2468
        %v2497 = vpack.c.b16 %v2471, %v2470
        %v2498 = vpack.c.b16 %v2473, %v2472
        %v2499 = vpack.c.b16 %v2475, %v2474
        %2524 = vmatprep.subr.bf16.mxu0 0
        %2525 = vmatpush1.bf16.msra.mxu0 %v2476
        %2526 = vmatprep.subr.bf16.mxu0 0
        %2527 = vmatpush1.bf16.msra.mxu0 %v2477
        %2528 = vmatprep.subr.bf16.mxu0 0
        %2529 = vmatpush1.bf16.msra.mxu0 %v2478
        %2530 = vmatprep.subr.bf16.mxu0 0
        %2531 = vmatpush1.bf16.msra.mxu0 %v2479
        %2532 = vmatprep.subr.bf16.mxu0 0
        %2533 = vmatpush1.bf16.msra.mxu0 %v2480
        %2534 = vmatprep.subr.bf16.mxu0 0
        %2535 = vmatpush1.bf16.msra.mxu0 %v2481
        %2536 = vmatprep.subr.bf16.mxu0 0
        %2537 = vmatpush1.bf16.msra.mxu0 %v2482
        %2538 = vmatprep.subr.bf16.mxu0 0
        %2539 = vmatpush1.bf16.msra.mxu0 %v2483
        %2540 = vmatprep.subr.bf16.mxu0 0
        %2541 = vmatpush1.bf16.msra.mxu0 %v2484
        %2542 = vmatprep.subr.bf16.mxu0 0
        %2543 = vmatpush1.bf16.msra.mxu0 %v2485
        %2544 = vmatprep.subr.bf16.mxu0 0
        %2545 = vmatpush1.bf16.msra.mxu0 %v2486
        %2546 = vmatprep.subr.bf16.mxu0 0
        %2547 = vmatpush1.bf16.msra.mxu0 %v2487
        %2548 = vmatprep.subr.bf16.mxu0 0
        %2549 = vmatpush1.bf16.msra.mxu0 %v2488
        %2550 = vmatprep.subr.bf16.mxu0 0
        %2551 = vmatpush1.bf16.msra.mxu0 %v2489
        %2552 = vmatprep.subr.bf16.mxu0 0
        %2553 = vmatpush1.bf16.msra.mxu0 %v2490
        %2554 = vmatprep.subr.bf16.mxu0 0
        %2555 = vmatpush1.bf16.msra.mxu0 %v2491
        %2556 = vmatprep.mubr.bf16.mxu0 %v1088
        %2557 = vmatmul.mubr.bf16.gmra.mrb[0].mxu0 %v1071
        %v2558 = vpop.f32.mrb[0].mxu0
        %v2559 = vadd.f32 %v2318, %v2558
        %v2560 = vpop.f32.mrb[0].mxu0
        %v2561 = vpop.f32.mrb[0].mxu0
        %v2562 = vadd.f32 %v2321, %v2561
        %v2563 = vpop.f32.mrb[0].mxu0
        %2564 = vmatprep.mubr.bf16.mxu0 %v1129
        %2565 = vmatmul.mubr.bf16.gmra.mrb[0].mxu0 %v1112
        %v2566 = vpop.f32.mrb[0].mxu0
        %v2567 = vadd.f32 %v2326, %v2566
        %v2568 = vpop.f32.mrb[0].mxu0
        %v2569 = vpop.f32.mrb[0].mxu0
        %v2570 = vadd.f32 %v2329, %v2569
        %v2571 = vpop.f32.mrb[0].mxu0
        %2572 = vmatprep.mubr.bf16.mxu0 %v1170
        %2573 = vmatmul.mubr.bf16.gmra.mrb[0].mxu0 %v1153
        %v2574 = vpop.f32.mrb[0].mxu0
        %v2575 = vadd.f32 %v2334, %v2574
        %v2576 = vpop.f32.mrb[0].mxu0
        %v2577 = vpop.f32.mrb[0].mxu0
        %v2578 = vadd.f32 %v2337, %v2577
        %v2579 = vpop.f32.mrb[0].mxu0
        %2580 = vmatprep.mubr.bf16.mxu0 %v1211
        %2581 = vmatmul.mubr.bf16.gmra.mrb[0].mxu0 %v1194
        %v2582 = vpop.f32.mrb[0].mxu0
        %v2583 = vadd.f32 %v2342, %v2582
        %v2584 = vpop.f32.mrb[0].mxu0
        %v2585 = vpop.f32.mrb[0].mxu0
        %v2586 = vadd.f32 %v2345, %v2585
        %v2587 = vpop.f32.mrb[0].mxu0
        %2588 = vmatprep.mubr.bf16.mxu0 %v1252
        %2589 = vmatmul.mubr.bf16.gmra.mrb[0].mxu0 %v1235
        %v2590 = vpop.f32.mrb[0].mxu0
        %v2591 = vadd.f32 %v2350, %v2590
        %v2592 = vpop.f32.mrb[0].mxu0
        %v2593 = vpop.f32.mrb[0].mxu0
        %v2594 = vadd.f32 %v2353, %v2593
        %v2595 = vpop.f32.mrb[0].mxu0
        %2596 = vmatprep.mubr.bf16.mxu0 %v1293
        %2597 = vmatmul.mubr.bf16.gmra.mrb[0].mxu0 %v1276
        %v2598 = vpop.f32.mrb[0].mxu0
        %v2599 = vadd.f32 %v2358, %v2598
        %v2600 = vpop.f32.mrb[0].mxu0
        %v2601 = vpop.f32.mrb[0].mxu0
        %v2602 = vadd.f32 %v2361, %v2601
        %v2603 = vpop.f32.mrb[0].mxu0
        %2604 = vmatprep.mubr.bf16.mxu0 %v1334
        %2605 = vmatmul.mubr.bf16.gmra.mrb[0].mxu0 %v1317
        %v2606 = vpop.f32.mrb[0].mxu0
        %v2607 = vadd.f32 %v2366, %v2606
        %v2608 = vpop.f32.mrb[0].mxu0
        %v2609 = vpop.f32.mrb[0].mxu0
        %v2610 = vadd.f32 %v2369, %v2609
        %v2611 = vpop.f32.mrb[0].mxu0
        %2612 = vmatprep.mubr.bf16.mxu0 %v1375
        %2613 = vmatmul.mubr.bf16.gmra.mrb[0].mxu0 %v1358
        %v2614 = vpop.f32.mrb[0].mxu0
        %v2615 = vadd.f32 %v2374, %v2614
        %v2616 = vpop.f32.mrb[0].mxu0
        %v2617 = vpop.f32.mrb[0].mxu0
        %v2618 = vadd.f32 %v2377, %v2617
        %v2619 = vpop.f32.mrb[0].mxu0
        %2620 = vdwg.mxu0
        %2621 = vmatprep.subr.bf16.mxu0 0
        %2622 = vmatpush1.bf16.msra.mxu0 %v2492
        %2623 = vmatprep.subr.bf16.mxu0 0
        %2624 = vmatpush1.bf16.msra.mxu0 %v2493
        %2625 = vmatprep.subr.bf16.mxu0 0
        %2626 = vmatpush1.bf16.msra.mxu0 %v2494
        %2627 = vmatprep.subr.bf16.mxu0 0
        %2628 = vmatpush1.bf16.msra.mxu0 %v2495
        %2629 = vmatprep.subr.bf16.mxu0 0
        %2630 = vmatpush1.bf16.msra.mxu0 %v2496
        %2631 = vmatprep.subr.bf16.mxu0 0
        %2632 = vmatpush1.bf16.msra.mxu0 %v2497
        %2633 = vmatprep.subr.bf16.mxu0 0
        %2634 = vmatpush1.bf16.msra.mxu0 %v2498
        %2635 = vmatprep.subr.bf16.mxu0 0
        %2636 = vmatpush1.bf16.msra.mxu0 %v2499
        %2637 = vmatprep.subr.bf16.mxu0 0
        %2638 = vmatpush1.bf16.msra.mxu0 0
        %2639 = vmatprep.subr.bf16.mxu0 0
        %2640 = vmatpush1.bf16.msra.mxu0 0
        %2641 = vmatprep.subr.bf16.mxu0 0
        %2642 = vmatpush1.bf16.msra.mxu0 0
        %2643 = vmatprep.subr.bf16.mxu0 0
        %2644 = vmatpush1.bf16.msra.mxu0 0
        %2645 = vmatprep.subr.bf16.mxu0 0
        %2646 = vmatpush1.bf16.msra.mxu0 0
        %2647 = vmatprep.subr.bf16.mxu0 0
        %2648 = vmatpush1.bf16.msra.mxu0 0
        %2649 = vmatprep.subr.bf16.mxu0 0
        %2650 = vmatpush1.bf16.msra.mxu0 0
        %2651 = vmatprep.subr.bf16.mxu0 0
        %2652 = vmatpush1.bf16.msra.mxu0 0
        %2653 = vmatprep.mubr.bf16.mxu0 0
        %2654 = vmatmul.mubr.bf16.gmra.mrb[0].mxu0 %v1105
        %v2655 = vpop.f32.mrb[0].mxu0
        %v2656 = vadd.f32 %v2559, %v2655
        %v2657 = vpop.f32.mrb[0].mxu0
        %v2658 = vpop.f32.mrb[0].mxu0
        %v2659 = vadd.f32 %v2562, %v2658
        %v2660 = vpop.f32.mrb[0].mxu0
        %2661 = vmatprep.mubr.bf16.mxu0 0
        %2662 = vmatmul.mubr.bf16.gmra.mrb[0].mxu0 %v1146
        %v2663 = vpop.f32.mrb[0].mxu0
        %v2664 = vadd.f32 %v2567, %v2663
        %v2665 = vpop.f32.mrb[0].mxu0
        %v2666 = vpop.f32.mrb[0].mxu0
        %v2667 = vadd.f32 %v2570, %v2666
        %v2668 = vpop.f32.mrb[0].mxu0
        %2669 = vmatprep.mubr.bf16.mxu0 0
        %2670 = vmatmul.mubr.bf16.gmra.mrb[0].mxu0 %v1187
        %v2671 = vpop.f32.mrb[0].mxu0
        %v2672 = vadd.f32 %v2575, %v2671
        %v2673 = vpop.f32.mrb[0].mxu0
        %v2674 = vpop.f32.mrb[0].mxu0
        %v2675 = vadd.f32 %v2578, %v2674
        %v2676 = vpop.f32.mrb[0].mxu0
        %2677 = vmatprep.mubr.bf16.mxu0 0
        %2678 = vmatmul.mubr.bf16.gmra.mrb[0].mxu0 %v1228
        %v2679 = vpop.f32.mrb[0].mxu0
        %v2680 = vadd.f32 %v2583, %v2679
        %v2681 = vpop.f32.mrb[0].mxu0
        %v2682 = vpop.f32.mrb[0].mxu0
        %v2683 = vadd.f32 %v2586, %v2682
        %v2684 = vpop.f32.mrb[0].mxu0
        %2685 = vmatprep.mubr.bf16.mxu0 0
        %2686 = vmatmul.mubr.bf16.gmra.mrb[0].mxu0 %v1269
        %v2687 = vpop.f32.mrb[0].mxu0
        %v2688 = vadd.f32 %v2591, %v2687
        %v2689 = vpop.f32.mrb[0].mxu0
        %v2690 = vpop.f32.mrb[0].mxu0
        %v2691 = vadd.f32 %v2594, %v2690
        %v2692 = vpop.f32.mrb[0].mxu0
        %2693 = vmatprep.mubr.bf16.mxu0 0
        %2694 = vmatmul.mubr.bf16.gmra.mrb[0].mxu0 %v1310
        %v2695 = vpop.f32.mrb[0].mxu0
        %v2696 = vadd.f32 %v2599, %v2695
        %v2697 = vpop.f32.mrb[0].mxu0
        %v2698 = vpop.f32.mrb[0].mxu0
        %v2699 = vadd.f32 %v2602, %v2698
        %v2700 = vpop.f32.mrb[0].mxu0
        %2701 = vmatprep.mubr.bf16.mxu0 0
        %2702 = vmatmul.mubr.bf16.gmra.mrb[0].mxu0 %v1351
        %v2703 = vpop.f32.mrb[0].mxu0
        %v2704 = vadd.f32 %v2607, %v2703
        %v2705 = vpop.f32.mrb[0].mxu0
        %v2706 = vpop.f32.mrb[0].mxu0
        %v2707 = vadd.f32 %v2610, %v2706
        %v2708 = vpop.f32.mrb[0].mxu0
        %2709 = vmatprep.mubr.bf16.mxu0 0
        %2710 = vmatmul.mubr.bf16.gmra.mrb[0].mxu0 %v1392
        %v2711 = vpop.f32.mrb[0].mxu0
        %v2712 = vadd.f32 %v2615, %v2711
        %v2713 = vpop.f32.mrb[0].mxu0
        %v2714 = vpop.f32.mrb[0].mxu0
        %v2715 = vadd.f32 %v2618, %v2714
        %v2716 = vpop.f32.mrb[0].mxu0
        %2717 = vdwg.mxu0
        %s2718 = scalar_lea.vmem [#allocation2], 32
        %v2719 = vld [vmem:[%s2718] sm:$0xff]
        %v2720 = vld [vmem:[%s2718 + $0x8] sm:$0xff]
        %v2721 = vld [vmem:[%s2718 + $0x10] sm:$0xff]
        %v2722 = vld [vmem:[%s2718 + $0x18] sm:$0xff]
        %v2723 = vld [vmem:[%s2718 + $0x20] sm:$0xff]
        %v2724 = vld [vmem:[%s2718 + $0x28] sm:$0xff]
        %v2725 = vld [vmem:[%s2718 + $0x30] sm:$0xff]
        %v2726 = vld [vmem:[%s2718 + $0x38] sm:$0xff]
        %v2727 = vld [vmem:[%s2718 + $0x40] sm:$0xff]
        %v2728 = vld [vmem:[%s2718 + $0x48] sm:$0xff]
        %v2729 = vld [vmem:[%s2718 + $0x50] sm:$0xff]
        %v2730 = vld [vmem:[%s2718 + $0x58] sm:$0xff]
        %v2731 = vld [vmem:[%s2718 + $0x60] sm:$0xff]
        %v2732 = vld [vmem:[%s2718 + $0x68] sm:$0xff]
        %v2733 = vld [vmem:[%s2718 + $0x70] sm:$0xff]
        %v2734 = vld [vmem:[%s2718 + $0x78] sm:$0xff]
        %v2736 = vshrl.u32 %v2719, 16
        %v2738 = vshll.u32 %v2719, 16
        %v2740 = vrot.slane %v2738, 1
        %v2741 = vor.u32 %v2736, %v2740
        %v2743 = vshll.u32 %v2720, 16
        %v2745 = vrot.slane %v2743, 1
        %v2746 = vsel %vm902, %v2741, %v2745
        %v2747 = vshrl.u32 %v2720, 16
        %v2749 = vor.u32 %v2747, %v2745
        %v2751 = vshrl.u32 %v2721, 16
        %v2753 = vshll.u32 %v2721, 16
        %v2755 = vrot.slane %v2753, 1
        %v2756 = vor.u32 %v2751, %v2755
        %v2758 = vshll.u32 %v2722, 16
        %v2760 = vrot.slane %v2758, 1
        %v2761 = vsel %vm902, %v2756, %v2760
        %v2762 = vshrl.u32 %v2722, 16
        %v2764 = vor.u32 %v2762, %v2760
        %v2766 = vshrl.u32 %v2723, 16
        %v2768 = vshll.u32 %v2723, 16
        %v2770 = vrot.slane %v2768, 1
        %v2771 = vor.u32 %v2766, %v2770
        %v2773 = vshll.u32 %v2724, 16
        %v2775 = vrot.slane %v2773, 1
        %v2776 = vsel %vm902, %v2771, %v2775
        %v2777 = vshrl.u32 %v2724, 16
        %v2779 = vor.u32 %v2777, %v2775
        %v2781 = vshrl.u32 %v2725, 16
        %v2783 = vshll.u32 %v2725, 16
        %v2785 = vrot.slane %v2783, 1
        %v2786 = vor.u32 %v2781, %v2785
        %v2788 = vshll.u32 %v2726, 16
        %v2790 = vrot.slane %v2788, 1
        %v2791 = vsel %vm902, %v2786, %v2790
        %v2792 = vshrl.u32 %v2726, 16
        %v2794 = vor.u32 %v2792, %v2790
        %v2796 = vshrl.u32 %v2727, 16
        %v2798 = vshll.u32 %v2727, 16
        %v2800 = vrot.slane %v2798, 1
        %v2801 = vor.u32 %v2796, %v2800
        %v2803 = vshll.u32 %v2728, 16
        %v2805 = vrot.slane %v2803, 1
        %v2806 = vsel %vm902, %v2801, %v2805
        %v2807 = vshrl.u32 %v2728, 16
        %v2809 = vor.u32 %v2807, %v2805
        %v2811 = vshrl.u32 %v2729, 16
        %v2813 = vshll.u32 %v2729, 16
        %v2815 = vrot.slane %v2813, 1
        %v2816 = vor.u32 %v2811, %v2815
        %v2818 = vshll.u32 %v2730, 16
        %v2820 = vrot.slane %v2818, 1
        %v2821 = vsel %vm902, %v2816, %v2820
        %v2822 = vshrl.u32 %v2730, 16
        %v2824 = vor.u32 %v2822, %v2820
        %v2826 = vshrl.u32 %v2731, 16
        %v2828 = vshll.u32 %v2731, 16
        %v2830 = vrot.slane %v2828, 1
        %v2831 = vor.u32 %v2826, %v2830
        %v2833 = vshll.u32 %v2732, 16
        %v2835 = vrot.slane %v2833, 1
        %v2836 = vsel %vm902, %v2831, %v2835
        %v2837 = vshrl.u32 %v2732, 16
        %v2839 = vor.u32 %v2837, %v2835
        %v2841 = vshrl.u32 %v2733, 16
        %v2843 = vshll.u32 %v2733, 16
        %v2845 = vrot.slane %v2843, 1
        %v2846 = vor.u32 %v2841, %v2845
        %v2848 = vshll.u32 %v2734, 16
        %v2850 = vrot.slane %v2848, 1
        %v2851 = vsel %vm902, %v2846, %v2850
        %v2852 = vshrl.u32 %v2734, 16
        %v2854 = vor.u32 %v2852, %v2850
        %v2871 = vrot.slane %v2719, 1
        %v2872 = vrot.slane %v2720, 1
        %v2873 = vsel %vm1039, %v2871, %v2872
        %v2874 = vrot.slane %v2721, 1
        %v2875 = vrot.slane %v2722, 1
        %v2876 = vsel %vm1039, %v2874, %v2875
        %v2877 = vrot.slane %v2723, 1
        %v2878 = vrot.slane %v2724, 1
        %v2879 = vsel %vm1039, %v2877, %v2878
        %v2880 = vrot.slane %v2725, 1
        %v2881 = vrot.slane %v2726, 1
        %v2882 = vsel %vm1039, %v2880, %v2881
        %v2883 = vrot.slane %v2727, 1
        %v2884 = vrot.slane %v2728, 1
        %v2885 = vsel %vm1039, %v2883, %v2884
        %v2886 = vrot.slane %v2729, 1
        %v2887 = vrot.slane %v2730, 1
        %v2888 = vsel %vm1039, %v2886, %v2887
        %v2889 = vrot.slane %v2731, 1
        %v2890 = vrot.slane %v2732, 1
        %v2891 = vsel %vm1039, %v2889, %v2890
        %v2892 = vrot.slane %v2733, 1
        %v2893 = vrot.slane %v2734, 1
        %v2894 = vsel %vm1039, %v2892, %v2893
        %v2895 = vrot.slane %v2736, 3
        %v2896 = vrot.slane %v2738, 4
        %v2897 = vor.u32 %v2895, %v2896
        %v2898 = vrot.slane %v2747, 3
        %v2899 = vrot.slane %v2743, 4
        %v2900 = vor.u32 %v2898, %v2899
        %v2901 = vsel %vm1064, %v2897, %v2900
        %v2903 = vshrl.u32 %v2746, 16
        %v2905 = vrot.slane %v2903, 3
        %v2906 = vshll.u32 %v2746, 16
        %v2908 = vrot.slane %v2906, 4
        %v2909 = vor.u32 %v2905, %v2908
        %v2911 = vshrl.u32 %v2749, 16
        %v2913 = vrot.slane %v2911, 3
        %v2914 = vshll.u32 %v2749, 16
        %v2916 = vrot.slane %v2914, 4
        %v2917 = vor.u32 %v2913, %v2916
        %v2918 = vsel %vm1064, %v2909, %v2917
        %v2920 = vshrl.u32 %v2873, 16
        %v2922 = vrot.slane %v2920, 3
        %v2923 = vshll.u32 %v2873, 16
        %v2925 = vrot.slane %v2923, 4
        %v2926 = vor.u32 %v2922, %v2925
        %v2928 = vshrl.u32 %v2872, 16
        %v2930 = vrot.slane %v2928, 3
        %v2931 = vshll.u32 %v2872, 16
        %v2933 = vrot.slane %v2931, 4
        %v2934 = vor.u32 %v2930, %v2933
        %v2935 = vsel %vm1064, %v2926, %v2934
        %v2936 = vrot.slane %v2751, 3
        %v2937 = vrot.slane %v2753, 4
        %v2938 = vor.u32 %v2936, %v2937
        %v2939 = vrot.slane %v2762, 3
        %v2940 = vrot.slane %v2758, 4
        %v2941 = vor.u32 %v2939, %v2940
        %v2942 = vsel %vm1064, %v2938, %v2941
        %v2944 = vshrl.u32 %v2761, 16
        %v2946 = vrot.slane %v2944, 3
        %v2947 = vshll.u32 %v2761, 16
        %v2949 = vrot.slane %v2947, 4
        %v2950 = vor.u32 %v2946, %v2949
        %v2952 = vshrl.u32 %v2764, 16
        %v2954 = vrot.slane %v2952, 3
        %v2955 = vshll.u32 %v2764, 16
        %v2957 = vrot.slane %v2955, 4
        %v2958 = vor.u32 %v2954, %v2957
        %v2959 = vsel %vm1064, %v2950, %v2958
        %v2961 = vshrl.u32 %v2876, 16
        %v2963 = vrot.slane %v2961, 3
        %v2964 = vshll.u32 %v2876, 16
        %v2966 = vrot.slane %v2964, 4
        %v2967 = vor.u32 %v2963, %v2966
        %v2969 = vshrl.u32 %v2875, 16
        %v2971 = vrot.slane %v2969, 3
        %v2972 = vshll.u32 %v2875, 16
        %v2974 = vrot.slane %v2972, 4
        %v2975 = vor.u32 %v2971, %v2974
        %v2976 = vsel %vm1064, %v2967, %v2975
        %v2977 = vrot.slane %v2766, 3
        %v2978 = vrot.slane %v2768, 4
        %v2979 = vor.u32 %v2977, %v2978
        %v2980 = vrot.slane %v2777, 3
        %v2981 = vrot.slane %v2773, 4
        %v2982 = vor.u32 %v2980, %v2981
        %v2983 = vsel %vm1064, %v2979, %v2982
        %v2985 = vshrl.u32 %v2776, 16
        %v2987 = vrot.slane %v2985, 3
        %v2988 = vshll.u32 %v2776, 16
        %v2990 = vrot.slane %v2988, 4
        %v2991 = vor.u32 %v2987, %v2990
        %v2993 = vshrl.u32 %v2779, 16
        %v2995 = vrot.slane %v2993, 3
        %v2996 = vshll.u32 %v2779, 16
        %v2998 = vrot.slane %v2996, 4
        %v2999 = vor.u32 %v2995, %v2998
        %v3000 = vsel %vm1064, %v2991, %v2999
        %v3002 = vshrl.u32 %v2879, 16
        %v3004 = vrot.slane %v3002, 3
        %v3005 = vshll.u32 %v2879, 16
        %v3007 = vrot.slane %v3005, 4
        %v3008 = vor.u32 %v3004, %v3007
        %v3010 = vshrl.u32 %v2878, 16
        %v3012 = vrot.slane %v3010, 3
        %v3013 = vshll.u32 %v2878, 16
        %v3015 = vrot.slane %v3013, 4
        %v3016 = vor.u32 %v3012, %v3015
        %v3017 = vsel %vm1064, %v3008, %v3016
        %v3018 = vrot.slane %v2781, 3
        %v3019 = vrot.slane %v2783, 4
        %v3020 = vor.u32 %v3018, %v3019
        %v3021 = vrot.slane %v2792, 3
        %v3022 = vrot.slane %v2788, 4
        %v3023 = vor.u32 %v3021, %v3022
        %v3024 = vsel %vm1064, %v3020, %v3023
        %v3026 = vshrl.u32 %v2791, 16
        %v3028 = vrot.slane %v3026, 3
        %v3029 = vshll.u32 %v2791, 16
        %v3031 = vrot.slane %v3029, 4
        %v3032 = vor.u32 %v3028, %v3031
        %v3034 = vshrl.u32 %v2794, 16
        %v3036 = vrot.slane %v3034, 3
        %v3037 = vshll.u32 %v2794, 16
        %v3039 = vrot.slane %v3037, 4
        %v3040 = vor.u32 %v3036, %v3039
        %v3041 = vsel %vm1064, %v3032, %v3040
        %v3043 = vshrl.u32 %v2882, 16
        %v3045 = vrot.slane %v3043, 3
        %v3046 = vshll.u32 %v2882, 16
        %v3048 = vrot.slane %v3046, 4
        %v3049 = vor.u32 %v3045, %v3048
        %v3051 = vshrl.u32 %v2881, 16
        %v3053 = vrot.slane %v3051, 3
        %v3054 = vshll.u32 %v2881, 16
        %v3056 = vrot.slane %v3054, 4
        %v3057 = vor.u32 %v3053, %v3056
        %v3058 = vsel %vm1064, %v3049, %v3057
        %v3059 = vrot.slane %v2796, 3
        %v3060 = vrot.slane %v2798, 4
        %v3061 = vor.u32 %v3059, %v3060
        %v3062 = vrot.slane %v2807, 3
        %v3063 = vrot.slane %v2803, 4
        %v3064 = vor.u32 %v3062, %v3063
        %v3065 = vsel %vm1064, %v3061, %v3064
        %v3067 = vshrl.u32 %v2806, 16
        %v3069 = vrot.slane %v3067, 3
        %v3070 = vshll.u32 %v2806, 16
        %v3072 = vrot.slane %v3070, 4
        %v3073 = vor.u32 %v3069, %v3072
        %v3075 = vshrl.u32 %v2809, 16
        %v3077 = vrot.slane %v3075, 3
        %v3078 = vshll.u32 %v2809, 16
        %v3080 = vrot.slane %v3078, 4
        %v3081 = vor.u32 %v3077, %v3080
        %v3082 = vsel %vm1064, %v3073, %v3081
        %v3084 = vshrl.u32 %v2885, 16
        %v3086 = vrot.slane %v3084, 3
        %v3087 = vshll.u32 %v2885, 16
        %v3089 = vrot.slane %v3087, 4
        %v3090 = vor.u32 %v3086, %v3089
        %v3092 = vshrl.u32 %v2884, 16
        %v3094 = vrot.slane %v3092, 3
        %v3095 = vshll.u32 %v2884, 16
        %v3097 = vrot.slane %v3095, 4
        %v3098 = vor.u32 %v3094, %v3097
        %v3099 = vsel %vm1064, %v3090, %v3098
        %v3100 = vrot.slane %v2811, 3
        %v3101 = vrot.slane %v2813, 4
        %v3102 = vor.u32 %v3100, %v3101
        %v3103 = vrot.slane %v2822, 3
        %v3104 = vrot.slane %v2818, 4
        %v3105 = vor.u32 %v3103, %v3104
        %v3106 = vsel %vm1064, %v3102, %v3105
        %v3108 = vshrl.u32 %v2821, 16
        %v3110 = vrot.slane %v3108, 3
        %v3111 = vshll.u32 %v2821, 16
        %v3113 = vrot.slane %v3111, 4
        %v3114 = vor.u32 %v3110, %v3113
        %v3116 = vshrl.u32 %v2824, 16
        %v3118 = vrot.slane %v3116, 3
        %v3119 = vshll.u32 %v2824, 16
        %v3121 = vrot.slane %v3119, 4
        %v3122 = vor.u32 %v3118, %v3121
        %v3123 = vsel %vm1064, %v3114, %v3122
        %v3125 = vshrl.u32 %v2888, 16
        %v3127 = vrot.slane %v3125, 3
        %v3128 = vshll.u32 %v2888, 16
        %v3130 = vrot.slane %v3128, 4
        %v3131 = vor.u32 %v3127, %v3130
        %v3133 = vshrl.u32 %v2887, 16
        %v3135 = vrot.slane %v3133, 3
        %v3136 = vshll.u32 %v2887, 16
        %v3138 = vrot.slane %v3136, 4
        %v3139 = vor.u32 %v3135, %v3138
        %v3140 = vsel %vm1064, %v3131, %v3139
        %v3141 = vrot.slane %v2826, 3
        %v3142 = vrot.slane %v2828, 4
        %v3143 = vor.u32 %v3141, %v3142
        %v3144 = vrot.slane %v2837, 3
        %v3145 = vrot.slane %v2833, 4
        %v3146 = vor.u32 %v3144, %v3145
        %v3147 = vsel %vm1064, %v3143, %v3146
        %v3149 = vshrl.u32 %v2836, 16
        %v3151 = vrot.slane %v3149, 3
        %v3152 = vshll.u32 %v2836, 16
        %v3154 = vrot.slane %v3152, 4
        %v3155 = vor.u32 %v3151, %v3154
        %v3157 = vshrl.u32 %v2839, 16
        %v3159 = vrot.slane %v3157, 3
        %v3160 = vshll.u32 %v2839, 16
        %v3162 = vrot.slane %v3160, 4
        %v3163 = vor.u32 %v3159, %v3162
        %v3164 = vsel %vm1064, %v3155, %v3163
        %v3166 = vshrl.u32 %v2891, 16
        %v3168 = vrot.slane %v3166, 3
        %v3169 = vshll.u32 %v2891, 16
        %v3171 = vrot.slane %v3169, 4
        %v3172 = vor.u32 %v3168, %v3171
        %v3174 = vshrl.u32 %v2890, 16
        %v3176 = vrot.slane %v3174, 3
        %v3177 = vshll.u32 %v2890, 16
        %v3179 = vrot.slane %v3177, 4
        %v3180 = vor.u32 %v3176, %v3179
        %v3181 = vsel %vm1064, %v3172, %v3180
        %v3182 = vrot.slane %v2841, 3
        %v3183 = vrot.slane %v2843, 4
        %v3184 = vor.u32 %v3182, %v3183
        %v3185 = vrot.slane %v2852, 3
        %v3186 = vrot.slane %v2848, 4
        %v3187 = vor.u32 %v3185, %v3186
        %v3188 = vsel %vm1064, %v3184, %v3187
        %v3190 = vshrl.u32 %v2851, 16
        %v3192 = vrot.slane %v3190, 3
        %v3193 = vshll.u32 %v2851, 16
        %v3195 = vrot.slane %v3193, 4
        %v3196 = vor.u32 %v3192, %v3195
        %v3198 = vshrl.u32 %v2854, 16
        %v3200 = vrot.slane %v3198, 3
        %v3201 = vshll.u32 %v2854, 16
        %v3203 = vrot.slane %v3201, 4
        %v3204 = vor.u32 %v3200, %v3203
        %v3205 = vsel %vm1064, %v3196, %v3204
        %v3207 = vshrl.u32 %v2894, 16
        %v3209 = vrot.slane %v3207, 3
        %v3210 = vshll.u32 %v2894, 16
        %v3212 = vrot.slane %v3210, 4
        %v3213 = vor.u32 %v3209, %v3212
        %v3215 = vshrl.u32 %v2893, 16
        %v3217 = vrot.slane %v3215, 3
        %v3218 = vshll.u32 %v2893, 16
        %v3220 = vrot.slane %v3218, 4
        %v3221 = vor.u32 %v3217, %v3220
        %v3222 = vsel %vm1064, %v3213, %v3221
        %s3247 = scalar_lea.vmem [#allocation11], 384
        %v3248 = vld [vmem:[%s3247] sm:$0xf]
        %v3249 = vld [vmem:[%s3247 + $0x4] sm:$0xf]
        %v3250 = vld [vmem:[%s3247 + $0x8] sm:$0xf]
        %v3251 = vld [vmem:[%s3247 + $0xc] sm:$0xf]
        %v3252 = vld [vmem:[%s3247 + $0x10] sm:$0xf]
        %v3253 = vld [vmem:[%s3247 + $0x14] sm:$0xf]
        %v3254 = vld [vmem:[%s3247 + $0x18] sm:$0xf]
        %v3255 = vld [vmem:[%s3247 + $0x1c] sm:$0xf]
        %v3256 = vld [vmem:[%s3247 + $0x20] sm:$0xf]
        %v3257 = vld [vmem:[%s3247 + $0x24] sm:$0xf]
        %v3258 = vld [vmem:[%s3247 + $0x28] sm:$0xf]
        %v3259 = vld [vmem:[%s3247 + $0x2c] sm:$0xf]
        %v3260 = vld [vmem:[%s3247 + $0x30] sm:$0xf]
        %v3261 = vld [vmem:[%s3247 + $0x34] sm:$0xf]
        %v3262 = vld [vmem:[%s3247 + $0x38] sm:$0xf]
        %v3263 = vld [vmem:[%s3247 + $0x3c] sm:$0xf]
        %v3264 = vld [vmem:[%s3247 + $0x40] sm:$0xf]
        %v3265 = vld [vmem:[%s3247 + $0x44] sm:$0xf]
        %v3266 = vld [vmem:[%s3247 + $0x48] sm:$0xf]
        %v3267 = vld [vmem:[%s3247 + $0x4c] sm:$0xf]
        %v3268 = vld [vmem:[%s3247 + $0x50] sm:$0xf]
        %v3269 = vld [vmem:[%s3247 + $0x54] sm:$0xf]
        %v3270 = vld [vmem:[%s3247 + $0x58] sm:$0xf]
        %v3271 = vld [vmem:[%s3247 + $0x5c] sm:$0xf]
        %v3272 = vld [vmem:[%s3247 + $0x60] sm:$0xf]
        %v3273 = vld [vmem:[%s3247 + $0x64] sm:$0xf]
        %v3274 = vld [vmem:[%s3247 + $0x68] sm:$0xf]
        %v3275 = vld [vmem:[%s3247 + $0x6c] sm:$0xf]
        %v3276 = vld [vmem:[%s3247 + $0x70] sm:$0xf]
        %v3277 = vld [vmem:[%s3247 + $0x74] sm:$0xf]
        %v3278 = vld [vmem:[%s3247 + $0x78] sm:$0xf]
        %v3279 = vld [vmem:[%s3247 + $0x7c] sm:$0xf]
        %v3280 = vld [vmem:[%s3247 + $0x80] sm:$0xf]
        %v3281 = vld [vmem:[%s3247 + $0x84] sm:$0xf]
        %v3282 = vld [vmem:[%s3247 + $0x88] sm:$0xf]
        %v3283 = vld [vmem:[%s3247 + $0x8c] sm:$0xf]
        %v3284 = vld [vmem:[%s3247 + $0x90] sm:$0xf]
        %v3285 = vld [vmem:[%s3247 + $0x94] sm:$0xf]
        %v3286 = vld [vmem:[%s3247 + $0x98] sm:$0xf]
        %v3287 = vld [vmem:[%s3247 + $0x9c] sm:$0xf]
        %v3288 = vld [vmem:[%s3247 + $0xa0] sm:$0xf]
        %v3289 = vld [vmem:[%s3247 + $0xa4] sm:$0xf]
        %v3290 = vld [vmem:[%s3247 + $0xa8] sm:$0xf]
        %v3291 = vld [vmem:[%s3247 + $0xac] sm:$0xf]
        %v3292 = vld [vmem:[%s3247 + $0xb0] sm:$0xf]
        %v3293 = vld [vmem:[%s3247 + $0xb4] sm:$0xf]
        %v3294 = vld [vmem:[%s3247 + $0xb8] sm:$0xf]
        %v3295 = vld [vmem:[%s3247 + $0xbc] sm:$0xf]
        %v3344 = vunpack.c.l.b16 %v3248
        %v3345 = vunpack.c.l.b16 %v3249
        %v3346 = vunpack.c.l.b16 %v3250
        %v3347 = vunpack.c.l.b16 %v3251
        %v3348 = vunpack.c.l.b16 %v3252
        %v3349 = vunpack.c.l.b16 %v3253
        %v3350 = vunpack.c.l.b16 %v3254
        %v3351 = vunpack.c.l.b16 %v3255
        %v3352 = vunpack.c.l.b16 %v3256
        %v3353 = vunpack.c.l.b16 %v3257
        %v3354 = vunpack.c.l.b16 %v3258
        %v3355 = vunpack.c.l.b16 %v3259
        %v3356 = vunpack.c.l.b16 %v3260
        %v3357 = vunpack.c.l.b16 %v3261
        %v3358 = vunpack.c.l.b16 %v3262
        %v3359 = vunpack.c.l.b16 %v3263
        %v3360 = vunpack.c.l.b16 %v3264
        %v3361 = vunpack.c.l.b16 %v3265
        %v3362 = vunpack.c.l.b16 %v3266
        %v3363 = vunpack.c.l.b16 %v3267
        %v3364 = vunpack.c.l.b16 %v3268
        %v3365 = vunpack.c.l.b16 %v3269
        %v3366 = vunpack.c.l.b16 %v3270
        %v3367 = vunpack.c.l.b16 %v3271
        %v3368 = vunpack.c.l.b16 %v3272
        %v3369 = vunpack.c.l.b16 %v3273
        %v3370 = vunpack.c.l.b16 %v3274
        %v3371 = vunpack.c.l.b16 %v3275
        %v3372 = vunpack.c.l.b16 %v3276
        %v3373 = vunpack.c.l.b16 %v3277
        %v3374 = vunpack.c.l.b16 %v3278
        %v3375 = vunpack.c.l.b16 %v3279
        %v3376 = vunpack.c.l.b16 %v3280
        %v3377 = vunpack.c.l.b16 %v3281
        %v3378 = vunpack.c.l.b16 %v3282
        %v3379 = vunpack.c.l.b16 %v3283
        %v3380 = vunpack.c.l.b16 %v3284
        %v3381 = vunpack.c.l.b16 %v3285
        %v3382 = vunpack.c.l.b16 %v3286
        %v3383 = vunpack.c.l.b16 %v3287
        %v3384 = vunpack.c.l.b16 %v3288
        %v3385 = vunpack.c.l.b16 %v3289
        %v3386 = vunpack.c.l.b16 %v3290
        %v3387 = vunpack.c.l.b16 %v3291
        %v3388 = vunpack.c.l.b16 %v3292
        %v3389 = vunpack.c.l.b16 %v3293
        %v3390 = vunpack.c.l.b16 %v3294
        %v3391 = vunpack.c.l.b16 %v3295
        %v3392 = vpack.c.b16 %v3345, %v3344
        %v3393 = vpack.c.b16 %v3347, %v3346
        %v3394 = vpack.c.b16 %v3349, %v3348
        %v3395 = vpack.c.b16 %v3351, %v3350
        %v3396 = vpack.c.b16 %v3353, %v3352
        %v3397 = vpack.c.b16 %v3355, %v3354
        %v3398 = vpack.c.b16 %v3357, %v3356
        %v3399 = vpack.c.b16 %v3359, %v3358
        %v3400 = vpack.c.b16 %v3361, %v3360
        %v3401 = vpack.c.b16 %v3363, %v3362
        %v3402 = vpack.c.b16 %v3365, %v3364
        %v3403 = vpack.c.b16 %v3367, %v3366
        %v3404 = vpack.c.b16 %v3369, %v3368
        %v3405 = vpack.c.b16 %v3371, %v3370
        %v3406 = vpack.c.b16 %v3373, %v3372
        %v3407 = vpack.c.b16 %v3375, %v3374
        %v3408 = vpack.c.b16 %v3377, %v3376
        %v3409 = vpack.c.b16 %v3379, %v3378
        %v3410 = vpack.c.b16 %v3381, %v3380
        %v3411 = vpack.c.b16 %v3383, %v3382
        %v3412 = vpack.c.b16 %v3385, %v3384
        %v3413 = vpack.c.b16 %v3387, %v3386
        %v3414 = vpack.c.b16 %v3389, %v3388
        %v3415 = vpack.c.b16 %v3391, %v3390
        %3440 = vmatprep.subr.bf16.mxu0 0
        %3441 = vmatpush1.bf16.msra.mxu0 %v3392
        %3442 = vmatprep.subr.bf16.mxu0 0
        %3443 = vmatpush1.bf16.msra.mxu0 %v3393
        %3444 = vmatprep.subr.bf16.mxu0 0
        %3445 = vmatpush1.bf16.msra.mxu0 %v3394
        %3446 = vmatprep.subr.bf16.mxu0 0
        %3447 = vmatpush1.bf16.msra.mxu0 %v3395
        %3448 = vmatprep.subr.bf16.mxu0 0
        %3449 = vmatpush1.bf16.msra.mxu0 %v3396
        %3450 = vmatprep.subr.bf16.mxu0 0
        %3451 = vmatpush1.bf16.msra.mxu0 %v3397
        %3452 = vmatprep.subr.bf16.mxu0 0
        %3453 = vmatpush1.bf16.msra.mxu0 %v3398
        %3454 = vmatprep.subr.bf16.mxu0 0
        %3455 = vmatpush1.bf16.msra.mxu0 %v3399
        %3456 = vmatprep.subr.bf16.mxu0 0
        %3457 = vmatpush1.bf16.msra.mxu0 %v3400
        %3458 = vmatprep.subr.bf16.mxu0 0
        %3459 = vmatpush1.bf16.msra.mxu0 %v3401
        %3460 = vmatprep.subr.bf16.mxu0 0
        %3461 = vmatpush1.bf16.msra.mxu0 %v3402
        %3462 = vmatprep.subr.bf16.mxu0 0
        %3463 = vmatpush1.bf16.msra.mxu0 %v3403
        %3464 = vmatprep.subr.bf16.mxu0 0
        %3465 = vmatpush1.bf16.msra.mxu0 %v3404
        %3466 = vmatprep.subr.bf16.mxu0 0
        %3467 = vmatpush1.bf16.msra.mxu0 %v3405
        %3468 = vmatprep.subr.bf16.mxu0 0
        %3469 = vmatpush1.bf16.msra.mxu0 %v3406
        %3470 = vmatprep.subr.bf16.mxu0 0
        %3471 = vmatpush1.bf16.msra.mxu0 %v3407
        %3472 = vmatprep.mubr.bf16.mxu0 %v2918
        %3473 = vmatmul.mubr.bf16.gmra.mrb[0].mxu0 %v2901
        %v3474 = vpop.f32.mrb[0].mxu0
        %v3475 = vadd.f32 0.0, %v3474
        %v3476 = vpop.f32.mrb[0].mxu0
        %v3477 = vpop.f32.mrb[0].mxu0
        %v3478 = vadd.f32 0.0, %v3477
        %v3479 = vpop.f32.mrb[0].mxu0
        %3480 = vmatprep.mubr.bf16.mxu0 %v2959
        %3481 = vmatmul.mubr.bf16.gmra.mrb[0].mxu0 %v2942
        %v3482 = vpop.f32.mrb[0].mxu0
        %v3483 = vadd.f32 0.0, %v3482
        %v3484 = vpop.f32.mrb[0].mxu0
        %v3485 = vpop.f32.mrb[0].mxu0
        %v3486 = vadd.f32 0.0, %v3485
        %v3487 = vpop.f32.mrb[0].mxu0
        %3488 = vmatprep.mubr.bf16.mxu0 %v3000
        %3489 = vmatmul.mubr.bf16.gmra.mrb[0].mxu0 %v2983
        %v3490 = vpop.f32.mrb[0].mxu0
        %v3491 = vadd.f32 0.0, %v3490
        %v3492 = vpop.f32.mrb[0].mxu0
        %v3493 = vpop.f32.mrb[0].mxu0
        %v3494 = vadd.f32 0.0, %v3493
        %v3495 = vpop.f32.mrb[0].mxu0
        %3496 = vmatprep.mubr.bf16.mxu0 %v3041
        %3497 = vmatmul.mubr.bf16.gmra.mrb[0].mxu0 %v3024
        %v3498 = vpop.f32.mrb[0].mxu0
        %v3499 = vadd.f32 0.0, %v3498
        %v3500 = vpop.f32.mrb[0].mxu0
        %v3501 = vpop.f32.mrb[0].mxu0
        %v3502 = vadd.f32 0.0, %v3501
        %v3503 = vpop.f32.mrb[0].mxu0
        %3504 = vmatprep.mubr.bf16.mxu0 %v3082
        %3505 = vmatmul.mubr.bf16.gmra.mrb[0].mxu0 %v3065
        %v3506 = vpop.f32.mrb[0].mxu0
        %v3507 = vadd.f32 0.0, %v3506
        %v3508 = vpop.f32.mrb[0].mxu0
        %v3509 = vpop.f32.mrb[0].mxu0
        %v3510 = vadd.f32 0.0, %v3509
        %v3511 = vpop.f32.mrb[0].mxu0
        %3512 = vmatprep.mubr.bf16.mxu0 %v3123
        %3513 = vmatmul.mubr.bf16.gmra.mrb[0].mxu0 %v3106
        %v3514 = vpop.f32.mrb[0].mxu0
        %v3515 = vadd.f32 0.0, %v3514
        %v3516 = vpop.f32.mrb[0].mxu0
        %v3517 = vpop.f32.mrb[0].mxu0
        %v3518 = vadd.f32 0.0, %v3517
        %v3519 = vpop.f32.mrb[0].mxu0
        %3520 = vmatprep.mubr.bf16.mxu0 %v3164
        %3521 = vmatmul.mubr.bf16.gmra.mrb[0].mxu0 %v3147
        %v3522 = vpop.f32.mrb[0].mxu0
        %v3523 = vadd.f32 0.0, %v3522
        %v3524 = vpop.f32.mrb[0].mxu0
        %v3525 = vpop.f32.mrb[0].mxu0
        %v3526 = vadd.f32 0.0, %v3525
        %v3527 = vpop.f32.mrb[0].mxu0
        %3528 = vmatprep.mubr.bf16.mxu0 %v3205
        %3529 = vmatmul.mubr.bf16.gmra.mrb[0].mxu0 %v3188
        %v3530 = vpop.f32.mrb[0].mxu0
        %v3531 = vadd.f32 0.0, %v3530
        %v3532 = vpop.f32.mrb[0].mxu0
        %v3533 = vpop.f32.mrb[0].mxu0
        %v3534 = vadd.f32 0.0, %v3533
        %v3535 = vpop.f32.mrb[0].mxu0
        %3536 = vdwg.mxu0
        %3537 = vmatprep.subr.bf16.mxu0 0
        %3538 = vmatpush1.bf16.msra.mxu0 %v3408
        %3539 = vmatprep.subr.bf16.mxu0 0
        %3540 = vmatpush1.bf16.msra.mxu0 %v3409
        %3541 = vmatprep.subr.bf16.mxu0 0
        %3542 = vmatpush1.bf16.msra.mxu0 %v3410
        %3543 = vmatprep.subr.bf16.mxu0 0
        %3544 = vmatpush1.bf16.msra.mxu0 %v3411
        %3545 = vmatprep.subr.bf16.mxu0 0
        %3546 = vmatpush1.bf16.msra.mxu0 %v3412
        %3547 = vmatprep.subr.bf16.mxu0 0
        %3548 = vmatpush1.bf16.msra.mxu0 %v3413
        %3549 = vmatprep.subr.bf16.mxu0 0
        %3550 = vmatpush1.bf16.msra.mxu0 %v3414
        %3551 = vmatprep.subr.bf16.mxu0 0
        %3552 = vmatpush1.bf16.msra.mxu0 %v3415
        %3553 = vmatprep.subr.bf16.mxu0 0
        %3554 = vmatpush1.bf16.msra.mxu0 0
        %3555 = vmatprep.subr.bf16.mxu0 0
        %3556 = vmatpush1.bf16.msra.mxu0 0
        %3557 = vmatprep.subr.bf16.mxu0 0
        %3558 = vmatpush1.bf16.msra.mxu0 0
        %3559 = vmatprep.subr.bf16.mxu0 0
        %3560 = vmatpush1.bf16.msra.mxu0 0
        %3561 = vmatprep.subr.bf16.mxu0 0
        %3562 = vmatpush1.bf16.msra.mxu0 0
        %3563 = vmatprep.subr.bf16.mxu0 0
        %3564 = vmatpush1.bf16.msra.mxu0 0
        %3565 = vmatprep.subr.bf16.mxu0 0
        %3566 = vmatpush1.bf16.msra.mxu0 0
        %3567 = vmatprep.subr.bf16.mxu0 0
        %3568 = vmatpush1.bf16.msra.mxu0 0
        %3569 = vmatprep.mubr.bf16.mxu0 0
        %3570 = vmatmul.mubr.bf16.gmra.mrb[0].mxu0 %v2935
        %v3571 = vpop.f32.mrb[0].mxu0
        %v3572 = vadd.f32 %v3475, %v3571
        %v3573 = vpop.f32.mrb[0].mxu0
        %v3574 = vpop.f32.mrb[0].mxu0
        %v3575 = vadd.f32 %v3478, %v3574
        %v3576 = vpop.f32.mrb[0].mxu0
        %3577 = vmatprep.mubr.bf16.mxu0 0
        %3578 = vmatmul.mubr.bf16.gmra.mrb[0].mxu0 %v2976
        %v3579 = vpop.f32.mrb[0].mxu0
        %v3580 = vadd.f32 %v3483, %v3579
        %v3581 = vpop.f32.mrb[0].mxu0
        %v3582 = vpop.f32.mrb[0].mxu0
        %v3583 = vadd.f32 %v3486, %v3582
        %v3584 = vpop.f32.mrb[0].mxu0
        %3585 = vmatprep.mubr.bf16.mxu0 0
        %3586 = vmatmul.mubr.bf16.gmra.mrb[0].mxu0 %v3017
        %v3587 = vpop.f32.mrb[0].mxu0
        %v3588 = vadd.f32 %v3491, %v3587
        %v3589 = vpop.f32.mrb[0].mxu0
        %v3590 = vpop.f32.mrb[0].mxu0
        %v3591 = vadd.f32 %v3494, %v3590
        %v3592 = vpop.f32.mrb[0].mxu0
        %3593 = vmatprep.mubr.bf16.mxu0 0
        %3594 = vmatmul.mubr.bf16.gmra.mrb[0].mxu0 %v3058
        %v3595 = vpop.f32.mrb[0].mxu0
        %v3596 = vadd.f32 %v3499, %v3595
        %v3597 = vpop.f32.mrb[0].mxu0
        %v3598 = vpop.f32.mrb[0].mxu0
        %v3599 = vadd.f32 %v3502, %v3598
        %v3600 = vpop.f32.mrb[0].mxu0
        %3601 = vmatprep.mubr.bf16.mxu0 0
        %3602 = vmatmul.mubr.bf16.gmra.mrb[0].mxu0 %v3099
        %v3603 = vpop.f32.mrb[0].mxu0
        %v3604 = vadd.f32 %v3507, %v3603
        %v3605 = vpop.f32.mrb[0].mxu0
        %v3606 = vpop.f32.mrb[0].mxu0
        %v3607 = vadd.f32 %v3510, %v3606
        %v3608 = vpop.f32.mrb[0].mxu0
        %3609 = vmatprep.mubr.bf16.mxu0 0
        %3610 = vmatmul.mubr.bf16.gmra.mrb[0].mxu0 %v3140
        %v3611 = vpop.f32.mrb[0].mxu0
        %v3612 = vadd.f32 %v3515, %v3611
        %v3613 = vpop.f32.mrb[0].mxu0
        %v3614 = vpop.f32.mrb[0].mxu0
        %v3615 = vadd.f32 %v3518, %v3614
        %v3616 = vpop.f32.mrb[0].mxu0
        %3617 = vmatprep.mubr.bf16.mxu0 0
        %3618 = vmatmul.mubr.bf16.gmra.mrb[0].mxu0 %v3181
        %v3619 = vpop.f32.mrb[0].mxu0
        %v3620 = vadd.f32 %v3523, %v3619
        %v3621 = vpop.f32.mrb[0].mxu0
        %v3622 = vpop.f32.mrb[0].mxu0
        %v3623 = vadd.f32 %v3526, %v3622
        %v3624 = vpop.f32.mrb[0].mxu0
        %3625 = vmatprep.mubr.bf16.mxu0 0
        %3626 = vmatmul.mubr.bf16.gmra.mrb[0].mxu0 %v3222
        %v3627 = vpop.f32.mrb[0].mxu0
        %v3628 = vadd.f32 %v3531, %v3627
        %v3629 = vpop.f32.mrb[0].mxu0
        %v3630 = vpop.f32.mrb[0].mxu0
        %v3631 = vadd.f32 %v3534, %v3630
        %v3632 = vpop.f32.mrb[0].mxu0
        %3633 = vdwg.mxu0
        %v3634 = vadd.f32 %v2656, %v3572
        %v3635 = vadd.f32 %v2659, %v3575
        %v3636 = vadd.f32 %v2664, %v3580
        %v3637 = vadd.f32 %v2667, %v3583
        %v3638 = vadd.f32 %v2672, %v3588
        %v3639 = vadd.f32 %v2675, %v3591
        %v3640 = vadd.f32 %v2680, %v3596
        %v3641 = vadd.f32 %v2683, %v3599
        %v3642 = vadd.f32 %v2688, %v3604
        %v3643 = vadd.f32 %v2691, %v3607
        %v3644 = vadd.f32 %v2696, %v3612
        %v3645 = vadd.f32 %v2699, %v3615
        %v3646 = vadd.f32 %v2704, %v3620
        %v3647 = vadd.f32 %v2707, %v3623
        %v3648 = vadd.f32 %v2712, %v3628
        %v3649 = vadd.f32 %v2715, %v3631
        %v3650 = vlaneseq
        %v3651 = vshrl.u32 %v3650, 7
        %v3652 = vsub.s32 0, %v3651
        %v3653 = vrot.slane %v884, %v3652
        %v3654 = vmul.f32 %v3634, %v3653
        %v3655 = vmul.f32 %v3635, %v3653
        %v3656 = vmul.f32 %v3636, %v3653
        %v3657 = vmul.f32 %v3637, %v3653
        %v3658 = vmul.f32 %v3638, %v3653
        %v3659 = vmul.f32 %v3639, %v3653
        %v3660 = vmul.f32 %v3640, %v3653
        %v3661 = vmul.f32 %v3641, %v3653
        %v3662 = vmul.f32 %v3642, %v3653
        %v3663 = vmul.f32 %v3643, %v3653
        %v3664 = vmul.f32 %v3644, %v3653
        %v3665 = vmul.f32 %v3645, %v3653
        %v3666 = vmul.f32 %v3646, %v3653
        %v3667 = vmul.f32 %v3647, %v3653
        %v3668 = vmul.f32 %v3648, %v3653
        %v3669 = vmul.f32 %v3649, %v3653
        %v3670 = vlaneseq
        %v3671 = vshrl.u32 %v3670, 7
        %v3672 = vsub.s32 0, %v3671
        %v3673 = vrot.slane %v885, %v3672
        %v3674 = vadd.f32 %v3654, %v3673
        %v3675 = vadd.f32 %v3655, %v3673
        %v3676 = vadd.f32 %v3656, %v3673
        %v3677 = vadd.f32 %v3657, %v3673
        %v3678 = vadd.f32 %v3658, %v3673
        %v3679 = vadd.f32 %v3659, %v3673
        %v3680 = vadd.f32 %v3660, %v3673
        %v3681 = vadd.f32 %v3661, %v3673
        %v3682 = vadd.f32 %v3662, %v3673
        %v3683 = vadd.f32 %v3663, %v3673
        %v3684 = vadd.f32 %v3664, %v3673
        %v3685 = vadd.f32 %v3665, %v3673
        %v3686 = vadd.f32 %v3666, %v3673
        %v3687 = vadd.f32 %v3667, %v3673
        %v3688 = vadd.f32 %v3668, %v3673
        %v3689 = vadd.f32 %v3669, %v3673
        %v3690 = vmax.f32 %v3674, 0.0
        %v3691 = vmax.f32 %v3675, 0.0
        %v3692 = vmax.f32 %v3676, 0.0
        %v3693 = vmax.f32 %v3677, 0.0
        %v3694 = vmax.f32 %v3678, 0.0
        %v3695 = vmax.f32 %v3679, 0.0
        %v3696 = vmax.f32 %v3680, 0.0
        %v3697 = vmax.f32 %v3681, 0.0
        %v3698 = vmax.f32 %v3682, 0.0
        %v3699 = vmax.f32 %v3683, 0.0
        %v3700 = vmax.f32 %v3684, 0.0
        %v3701 = vmax.f32 %v3685, 0.0
        %v3702 = vmax.f32 %v3686, 0.0
        %v3703 = vmax.f32 %v3687, 0.0
        %v3704 = vmax.f32 %v3688, 0.0
        %v3705 = vmax.f32 %v3689, 0.0
        %v3706 = vpack.c.bf16 %v3691, %v3690
        %v3707 = vpack.c.bf16 %v3693, %v3692
        %v3708 = vpack.c.bf16 %v3695, %v3694
        %v3709 = vpack.c.bf16 %v3697, %v3696
        %v3710 = vpack.c.bf16 %v3699, %v3698
        %v3711 = vpack.c.bf16 %v3701, %v3700
        %v3712 = vpack.c.bf16 %v3703, %v3702
        %v3713 = vpack.c.bf16 %v3705, %v3704
        %v3714 = vld [vmem:[%s6 + $0x4] sm:$0x1]
        %v3715 = vld [vmem:[%s6 + $0x5] sm:$0x1]
        %v3716 = vld [vmem:[#allocation12] sm:$0xf]
        %v3717 = vld [vmem:[#allocation12 + $0x4] sm:$0xf]
        %v3718 = vld [vmem:[#allocation12 + $0x8] sm:$0xf]
        %v3719 = vld [vmem:[#allocation12 + $0xc] sm:$0xf]
        %v3720 = vld [vmem:[#allocation12 + $0x10] sm:$0xf]
        %v3721 = vld [vmem:[#allocation12 + $0x14] sm:$0xf]
        %v3722 = vld [vmem:[#allocation12 + $0x18] sm:$0xf]
        %v3723 = vld [vmem:[#allocation12 + $0x1c] sm:$0xf]
        %v3724 = vld [vmem:[#allocation12 + $0x20] sm:$0xf]
        %v3725 = vld [vmem:[#allocation12 + $0x24] sm:$0xf]
        %v3726 = vld [vmem:[#allocation12 + $0x28] sm:$0xf]
        %v3727 = vld [vmem:[#allocation12 + $0x2c] sm:$0xf]
        %v3728 = vld [vmem:[#allocation12 + $0x30] sm:$0xf]
        %v3729 = vld [vmem:[#allocation12 + $0x34] sm:$0xf]
        %v3730 = vld [vmem:[#allocation12 + $0x38] sm:$0xf]
        %v3731 = vld [vmem:[#allocation12 + $0x3c] sm:$0xf]
        %v3748 = vunpack.c.l.b16 %v3716
        %v3749 = vunpack.c.l.b16 %v3717
        %v3750 = vunpack.c.l.b16 %v3718
        %v3751 = vunpack.c.l.b16 %v3719
        %v3752 = vunpack.c.l.b16 %v3720
        %v3753 = vunpack.c.l.b16 %v3721
        %v3754 = vunpack.c.l.b16 %v3722
        %v3755 = vunpack.c.l.b16 %v3723
        %v3756 = vunpack.c.l.b16 %v3724
        %v3757 = vunpack.c.l.b16 %v3725
        %v3758 = vunpack.c.l.b16 %v3726
        %v3759 = vunpack.c.l.b16 %v3727
        %v3760 = vunpack.c.l.b16 %v3728
        %v3761 = vunpack.c.l.b16 %v3729
        %v3762 = vunpack.c.l.b16 %v3730
        %v3763 = vunpack.c.l.b16 %v3731
        %v3764 = vpack.c.b16 %v3749, %v3748
        %v3765 = vpack.c.b16 %v3751, %v3750
        %v3766 = vpack.c.b16 %v3753, %v3752
        %v3767 = vpack.c.b16 %v3755, %v3754
        %v3768 = vpack.c.b16 %v3757, %v3756
        %v3769 = vpack.c.b16 %v3759, %v3758
        %v3770 = vpack.c.b16 %v3761, %v3760
        %v3771 = vpack.c.b16 %v3763, %v3762
        %3780 = vmatprep.subr.bf16.mxu0 0
        %3781 = vmatpush1.bf16.msra.mxu0 %v3764
        %3782 = vmatprep.subr.bf16.mxu0 0
        %3783 = vmatpush1.bf16.msra.mxu0 %v3765
        %3784 = vmatprep.subr.bf16.mxu0 0
        %3785 = vmatpush1.bf16.msra.mxu0 %v3766
        %3786 = vmatprep.subr.bf16.mxu0 0
        %3787 = vmatpush1.bf16.msra.mxu0 %v3767
        %3788 = vmatprep.subr.bf16.mxu0 0
        %3789 = vmatpush1.bf16.msra.mxu0 %v3768
        %3790 = vmatprep.subr.bf16.mxu0 0
        %3791 = vmatpush1.bf16.msra.mxu0 %v3769
        %3792 = vmatprep.subr.bf16.mxu0 0
        %3793 = vmatpush1.bf16.msra.mxu0 %v3770
        %3794 = vmatprep.subr.bf16.mxu0 0
        %3795 = vmatpush1.bf16.msra.mxu0 %v3771
        %3796 = vmatprep.subr.bf16.mxu0 0
        %3797 = vmatpush1.bf16.msra.mxu0 0
        %3798 = vmatprep.subr.bf16.mxu0 0
        %3799 = vmatpush1.bf16.msra.mxu0 0
        %3800 = vmatprep.subr.bf16.mxu0 0
        %3801 = vmatpush1.bf16.msra.mxu0 0
        %3802 = vmatprep.subr.bf16.mxu0 0
        %3803 = vmatpush1.bf16.msra.mxu0 0
        %3804 = vmatprep.subr.bf16.mxu0 0
        %3805 = vmatpush1.bf16.msra.mxu0 0
        %3806 = vmatprep.subr.bf16.mxu0 0
        %3807 = vmatpush1.bf16.msra.mxu0 0
        %3808 = vmatprep.subr.bf16.mxu0 0
        %3809 = vmatpush1.bf16.msra.mxu0 0
        %3810 = vmatprep.subr.bf16.mxu0 0
        %3811 = vmatpush1.bf16.msra.mxu0 0
        %3812 = vmatprep.mubr.bf16.mxu0 0
        %3813 = vmatmul.mubr.bf16.gmra.mrb[0].mxu0 %v3706
        %v3814 = vpop.f32.mrb[0].mxu0
        %v3815 = vadd.f32 0.0, %v3814
        %v3816 = vpop.f32.mrb[0].mxu0
        %v3817 = vpop.f32.mrb[0].mxu0
        %v3818 = vadd.f32 0.0, %v3817
        %v3819 = vpop.f32.mrb[0].mxu0
        %3820 = vmatprep.mubr.bf16.mxu0 0
        %3821 = vmatmul.mubr.bf16.gmra.mrb[0].mxu0 %v3707
        %v3822 = vpop.f32.mrb[0].mxu0
        %v3823 = vadd.f32 0.0, %v3822
        %v3824 = vpop.f32.mrb[0].mxu0
        %v3825 = vpop.f32.mrb[0].mxu0
        %v3826 = vadd.f32 0.0, %v3825
        %v3827 = vpop.f32.mrb[0].mxu0
        %3828 = vmatprep.mubr.bf16.mxu0 0
        %3829 = vmatmul.mubr.bf16.gmra.mrb[0].mxu0 %v3708
        %v3830 = vpop.f32.mrb[0].mxu0
        %v3831 = vadd.f32 0.0, %v3830
        %v3832 = vpop.f32.mrb[0].mxu0
        %v3833 = vpop.f32.mrb[0].mxu0
        %v3834 = vadd.f32 0.0, %v3833
        %v3835 = vpop.f32.mrb[0].mxu0
        %3836 = vmatprep.mubr.bf16.mxu0 0
        %3837 = vmatmul.mubr.bf16.gmra.mrb[0].mxu0 %v3709
        %v3838 = vpop.f32.mrb[0].mxu0
        %v3839 = vadd.f32 0.0, %v3838
        %v3840 = vpop.f32.mrb[0].mxu0
        %v3841 = vpop.f32.mrb[0].mxu0
        %v3842 = vadd.f32 0.0, %v3841
        %v3843 = vpop.f32.mrb[0].mxu0
        %3844 = vmatprep.mubr.bf16.mxu0 0
        %3845 = vmatmul.mubr.bf16.gmra.mrb[0].mxu0 %v3710
        %v3846 = vpop.f32.mrb[0].mxu0
        %v3847 = vadd.f32 0.0, %v3846
        %v3848 = vpop.f32.mrb[0].mxu0
        %v3849 = vpop.f32.mrb[0].mxu0
        %v3850 = vadd.f32 0.0, %v3849
        %v3851 = vpop.f32.mrb[0].mxu0
        %3852 = vmatprep.mubr.bf16.mxu0 0
        %3853 = vmatmul.mubr.bf16.gmra.mrb[0].mxu0 %v3711
        %v3854 = vpop.f32.mrb[0].mxu0
        %v3855 = vadd.f32 0.0, %v3854
        %v3856 = vpop.f32.mrb[0].mxu0
        %v3857 = vpop.f32.mrb[0].mxu0
        %v3858 = vadd.f32 0.0, %v3857
        %v3859 = vpop.f32.mrb[0].mxu0
        %3860 = vmatprep.mubr.bf16.mxu0 0
        %3861 = vmatmul.mubr.bf16.gmra.mrb[0].mxu0 %v3712
        %v3862 = vpop.f32.mrb[0].mxu0
        %v3863 = vadd.f32 0.0, %v3862
        %v3864 = vpop.f32.mrb[0].mxu0
        %v3865 = vpop.f32.mrb[0].mxu0
        %v3866 = vadd.f32 0.0, %v3865
        %v3867 = vpop.f32.mrb[0].mxu0
        %3868 = vmatprep.mubr.bf16.mxu0 0
        %3869 = vmatmul.mubr.bf16.gmra.mrb[0].mxu0 %v3713
        %v3870 = vpop.f32.mrb[0].mxu0
        %v3871 = vadd.f32 0.0, %v3870
        %v3872 = vpop.f32.mrb[0].mxu0
        %v3873 = vpop.f32.mrb[0].mxu0
        %v3874 = vadd.f32 0.0, %v3873
        %v3875 = vpop.f32.mrb[0].mxu0
        %3876 = vdwg.mxu0
        %v3877 = vlaneseq
        %v3878 = vshrl.u32 %v3877, 7
        %v3879 = vsub.s32 0, %v3878
        %v3880 = vrot.slane %v3714, %v3879
        %v3881 = vmul.f32 %v3815, %v3880
        %v3882 = vmul.f32 %v3818, %v3880
        %v3883 = vmul.f32 %v3823, %v3880
        %v3884 = vmul.f32 %v3826, %v3880
        %v3885 = vmul.f32 %v3831, %v3880
        %v3886 = vmul.f32 %v3834, %v3880
        %v3887 = vmul.f32 %v3839, %v3880
        %v3888 = vmul.f32 %v3842, %v3880
        %v3889 = vmul.f32 %v3847, %v3880
        %v3890 = vmul.f32 %v3850, %v3880
        %v3891 = vmul.f32 %v3855, %v3880
        %v3892 = vmul.f32 %v3858, %v3880
        %v3893 = vmul.f32 %v3863, %v3880
        %v3894 = vmul.f32 %v3866, %v3880
        %v3895 = vmul.f32 %v3871, %v3880
        %v3896 = vmul.f32 %v3874, %v3880
        %v3897 = vlaneseq
        %v3898 = vshrl.u32 %v3897, 7
        %v3899 = vsub.s32 0, %v3898
        %v3900 = vrot.slane %v3715, %v3899
        %v3901 = vadd.f32 %v3881, %v3900
        %v3902 = vadd.f32 %v3882, %v3900
        %v3903 = vadd.f32 %v3883, %v3900
        %v3904 = vadd.f32 %v3884, %v3900
        %v3905 = vadd.f32 %v3885, %v3900
        %v3906 = vadd.f32 %v3886, %v3900
        %v3907 = vadd.f32 %v3887, %v3900
        %v3908 = vadd.f32 %v3888, %v3900
        %v3909 = vadd.f32 %v3889, %v3900
        %v3910 = vadd.f32 %v3890, %v3900
        %v3911 = vadd.f32 %v3891, %v3900
        %v3912 = vadd.f32 %v3892, %v3900
        %v3913 = vadd.f32 %v3893, %v3900
        %v3914 = vadd.f32 %v3894, %v3900
        %v3915 = vadd.f32 %v3895, %v3900
        %v3916 = vadd.f32 %v3896, %v3900
        %v3917 = vld [vmem:[%s398] sm:$0xff]
        %v3918 = vld [vmem:[%s398 + $0x8] sm:$0xff]
        %v3919 = vld [vmem:[%s398 + $0x10] sm:$0xff]
        %v3920 = vld [vmem:[%s398 + $0x18] sm:$0xff]
        %v3921 = vld [vmem:[%s398 + $0x20] sm:$0xff]
        %v3922 = vld [vmem:[%s398 + $0x28] sm:$0xff]
        %v3923 = vld [vmem:[%s398 + $0x30] sm:$0xff]
        %v3924 = vld [vmem:[%s398 + $0x38] sm:$0xff]
        %v3925 = vld [vmem:[%s398 + $0x40] sm:$0xff]
        %v3926 = vld [vmem:[%s398 + $0x48] sm:$0xff]
        %v3927 = vld [vmem:[%s398 + $0x50] sm:$0xff]
        %v3928 = vld [vmem:[%s398 + $0x58] sm:$0xff]
        %v3929 = vld [vmem:[%s398 + $0x60] sm:$0xff]
        %v3930 = vld [vmem:[%s398 + $0x68] sm:$0xff]
        %v3931 = vld [vmem:[%s398 + $0x70] sm:$0xff]
        %v3932 = vld [vmem:[%s398 + $0x78] sm:$0xff]
        %v3933 = vadd.f32 %v3901, %v3917
        %v3934 = vadd.f32 %v3902, %v3918
        %v3935 = vadd.f32 %v3903, %v3919
        %v3936 = vadd.f32 %v3904, %v3920
        %v3937 = vadd.f32 %v3905, %v3921
        %v3938 = vadd.f32 %v3906, %v3922
        %v3939 = vadd.f32 %v3907, %v3923
        %v3940 = vadd.f32 %v3908, %v3924
        %v3941 = vadd.f32 %v3909, %v3925
        %v3942 = vadd.f32 %v3910, %v3926
        %v3943 = vadd.f32 %v3911, %v3927
        %v3944 = vadd.f32 %v3912, %v3928
        %v3945 = vadd.f32 %v3913, %v3929
        %v3946 = vadd.f32 %v3914, %v3930
        %v3947 = vadd.f32 %v3915, %v3931
        %v3948 = vadd.f32 %v3916, %v3932
        %v3949 = vmax.f32 %v3933, 0.0
        %v3950 = vmax.f32 %v3934, 0.0
        %v3951 = vmax.f32 %v3935, 0.0
        %v3952 = vmax.f32 %v3936, 0.0
        %v3953 = vmax.f32 %v3937, 0.0
        %v3954 = vmax.f32 %v3938, 0.0
        %v3955 = vmax.f32 %v3939, 0.0
        %v3956 = vmax.f32 %v3940, 0.0
        %v3957 = vmax.f32 %v3941, 0.0
        %v3958 = vmax.f32 %v3942, 0.0
        %v3959 = vmax.f32 %v3943, 0.0
        %v3960 = vmax.f32 %v3944, 0.0
        %v3961 = vmax.f32 %v3945, 0.0
        %v3962 = vmax.f32 %v3946, 0.0
        %v3963 = vmax.f32 %v3947, 0.0
        %v3964 = vmax.f32 %v3948, 0.0
        %3965 = vst [vmem:[%s468] sm:$0xff] %v3949
        %3966 = vst [vmem:[%s468 + $0x8] sm:$0xff] %v3950
        %3967 = vst [vmem:[%s468 + $0x10] sm:$0xff] %v3951
        %3968 = vst [vmem:[%s468 + $0x18] sm:$0xff] %v3952
        %3969 = vst [vmem:[%s468 + $0x20] sm:$0xff] %v3953
        %3970 = vst [vmem:[%s468 + $0x28] sm:$0xff] %v3954
        %3971 = vst [vmem:[%s468 + $0x30] sm:$0xff] %v3955
        %3972 = vst [vmem:[%s468 + $0x38] sm:$0xff] %v3956
        %3973 = vst [vmem:[%s468 + $0x40] sm:$0xff] %v3957
        %3974 = vst [vmem:[%s468 + $0x48] sm:$0xff] %v3958
        %3975 = vst [vmem:[%s468 + $0x50] sm:$0xff] %v3959
        %3976 = vst [vmem:[%s468 + $0x58] sm:$0xff] %v3960
        %3977 = vst [vmem:[%s468 + $0x60] sm:$0xff] %v3961
        %3978 = vst [vmem:[%s468 + $0x68] sm:$0xff] %v3962
        %3979 = vst [vmem:[%s468 + $0x70] sm:$0xff] %v3963
        %3980 = vst [vmem:[%s468 + $0x78] sm:$0xff] %v3964
        %s3981 = sand.u32 %s235, 1
        %s3982 = scalar_lea.sflag [#allocation5], %s3981
        %s3983 = sand.u32 %s235, 1
        %s3984 = smul.addr %s3983, 128
        %s3985 = scalar_lea.vmem [#allocation14], %s3984
        // Predicated region
        $region73: #{tpu_custom_call.1} parent=47 // pred_check
          %p3986 = pneg %p245
        $region74: #{tpu_custom_call.1} parent=47 // pred_check_branch
          %3988 = sbr.rel (%p3986) target = $region76
        $region75: #{tpu_custom_call.1} parent=47 // pred_region
          %s3989 = smul.u32 8, %s34
          %s3991 = ssub.s32 2048, 2048
          %3992 = vsyncadd %s3982, %s3991
          %s3993 = smul.addr %s3989, 2
          %s3994 = smul.addr %s33, 32
          %s3995 = sadd.s32 %s3993, %s3994
          %s3996 = smul.addr %s3995, 128
          %s3997 = scalar_lea.hbm %s7, %s3996
          %s3998 = sshll.u32 %s3985, 4
          %s3999 = int_to_ptr.vmem [resolvable:$true] %s3998
          %4004 = dma.vmem_to_hbm [thread:$0]  %s3999, 2048, %s3997, %s3982, 128, 128, 8
        $region76: #{tpu_custom_call.1} parent=47 // pred_fallthru
          _
      $region48: #{tpu_custom_call.1} parent=5 // pred_fallthru
        _
      %p4005 = scmp.le.s32.totalorder 2, %s24
      // Predicated region
      $region77: #{tpu_custom_call.1} parent=5 // pred_check
        %p4006 = pneg %p4005
      $region78: #{tpu_custom_call.1} parent=5 // pred_check_branch
        %4008 = sbr.rel (%p4006) target = $region80
      $region79: #{tpu_custom_call.1} parent=5 // pred_region
        %s4009 = ssub.s32 %s24, 2
        // Predicated region
        $region81: #{tpu_custom_call.1} parent=79 // pred_check
          %p4010 = pneg %p251
        $region82: #{tpu_custom_call.1} parent=79 // pred_check_branch
          %4012 = sbr.rel (%p4010) target = $region84
        $region83: #{tpu_custom_call.1} parent=79 // pred_region
          %s4013 = sand.u32 %s236, 1
          %s4014 = scalar_lea.sflag [#allocation5], %s4013
          %s4015 = sand.u32 %s236, 1
          %s4016 = smul.addr %s4015, 128
          %s4017 = scalar_lea.vmem [#allocation14], %s4016
          %4018 = dma.done %s4014, 2048
        $region84: #{tpu_custom_call.1} parent=79 // pred_fallthru
          _
      $region80: #{tpu_custom_call.1} parent=5 // pred_fallthru
        _
    $region6: #{tpu_custom_call.1} parent=1 // loop_footer
      %s28 = sadd.s32 1, %s24
    $region7: #{tpu_custom_call.1} parent=1 // loop_footer_branch
      %23 = sbr.rel target = $region3
    $region8: #{tpu_custom_call.1} parent=1 // loop_exit
      _
    %4019 = vsyncpa [#allocation4], 1
    %s4020 = scalar_lea.sflag [#allocation4], 1
    %4021 = vsyncpa %s4020, 1
    %4022 = vsyncpa [#allocation7], 1
    %s4023 = scalar_lea.sflag [#allocation7], 1
    %4024 = vsyncpa %s4023, 1
    %4025 = vsyncpa [#allocation10], 1
    %4026 = vsyncpa [#allocation13], 1
    %4027 = vsyncpa [#allocation5], 1
    %s4028 = scalar_lea.sflag [#allocation5], 1
    %4029 = vsyncpa %s4028, 1

</llo_original>
